<compile_context>
chip_gen: v5e
topology: v5e:2x2
jax: 0.10.0
libtpu: 0.0.40
codegen_flags: <defaults>
</compile_context>

<pallas_src>
import jax
import jax.numpy as jnp
import numpy as np
from jax.experimental import pallas as pl
from jax.experimental.pallas import tpu as pltpu

EMB = 300                                  # embedding width == conv kernel width
NFILT = 100                                # out_channels per conv
KS = (3, 4, 5)                             # conv kernel heights
KMAX = max(KS)                             # 5 fused taps
PMAX = KMAX - 2                            # max sequence padding (=3), applied once outside
EMBP = ((EMB + 127) // 128) * 128          # 384: lane-padded embedding dim
FP = ((3 * NFILT + 127) // 128) * 128      # 384: lane-padded fused filter dim


def classifier_cnn_kernel(x_ref, wf_ref, bf_ref, mask_ref, wfc_ref, bfc_ref, out_ref):
    # x_ref    : (TB*Lpp, EMBP)   bf16  batch-flattened, zero-padded token embeddings
    # wf_ref   : (KMAX, EMBP, FP) bf16  fused conv weights (zero taps for shorter kernels)
    # bf_ref   : (1, FP)          f32   fused conv bias
    # mask_ref : (Lpp, FP)        f32   1.0 where a conv output position is valid
    # wfc_ref  : (FP, NLP)        bf16  fc1 weight (rows/cols zero-padded)
    # bfc_ref  : (1, NLP)         f32   fc1 bias (cols zero-padded)
    # out_ref  : (TB, NLP)        f32   logits (padded label dim)
    M = x_ref.shape[0]
    Lpp, _ = mask_ref.shape
    TB = out_ref.shape[0]

    x = x_ref[...]                                                    # (M, EMBP) bf16

    # conv as 5 fused shifted matmuls: z[t] = sum_s x[t+s] @ Wf[s]
    acc = jnp.dot(x, wf_ref[0], preferred_element_type=jnp.float32)   # (M, FP) f32, MXU
    for s in range(1, KMAX):
        y = jnp.dot(x, wf_ref[s], preferred_element_type=jnp.float32)
        # align tap s: need y[t+s] == roll(y, -s)[t] == roll(y, M-s)[t].  Rows that wrap
        # across a batch boundary only land in positions the mask zeroes out.
        acc = acc + pltpu.roll(y, shift=M - s, axis=0)

    z = jnp.maximum(acc + bf_ref[...], 0.0)                           # + conv bias, ReLU
    z = z.reshape(TB, Lpp, FP) * mask_ref[...]                        # zero invalid rows
    pooled = jnp.max(z, axis=1)                                       # (TB, FP) max over seq

    logits = jnp.dot(pooled.astype(wfc_ref.dtype), wfc_ref[...],
                     preferred_element_type=jnp.float32) + bfc_ref[...]
    out_ref[...] = logits


def _fuse_conv_weights(params):
    """Pack the three conv weights into (KMAX, EMBP, FP) bf16 with zero taps + fused bias."""
    wf = jnp.zeros((KMAX, EMBP, FP), jnp.float32)
    bf = jnp.zeros((1, FP), jnp.float32)
    for j, k in enumerate(KS):
        w = params[f"w{k}"]                                  # (k, EMB, NFILT)
        # conv k (torch padding k-2) uses taps s in [KMAX-k, KMAX): Wf[s] <- W_k[s-(KMAX-k)]
        wf = wf.at[KMAX - k:, :EMB, j * NFILT:(j + 1) * NFILT].set(w)
        bf = bf.at[:, j * NFILT:(j + 1) * NFILT].set(params[f"b{k}"])
    return wf.astype(jnp.bfloat16), bf


def _valid_mask(L, Lpp):
    """mask[t, c] = 1 iff row t is a valid output position of the conv owning filter c."""
    t = np.arange(Lpp)[:, None]
    m = np.zeros((Lpp, FP), np.float32)
    for j, k in enumerate(KS):
        l_out = L + k - 3                                    # torch: L + 2*(k-2) - k + 1
        m[:, j * NFILT:(j + 1) * NFILT] = (t < l_out).astype(np.float32)
    return jnp.asarray(m)


def classifier_cnn_forward(params, token2, input_ids=None, segment_ids=None, input_mask=None):
    """token2: (B, L, 300) float32. input_ids/segment_ids/input_mask are unused (as in the module)."""
    B, L, D = token2.shape
    assert D == EMB
    n_labels = params["b_fc"].shape[-1]
    NLP = ((n_labels + 127) // 128) * 128                    # lane-padded label dim

    Lpp = ((L + 2 * PMAX + 7) // 8) * 8                      # sublane-aligned padded seq length
    TB = B if B < 8 else 8                                   # batch tile: == B, or multiple of 8
    Bp = ((B + TB - 1) // TB) * TB

    # zero-pad: seq (PMAX left, rest right), emb 300->384, batch B->Bp; bf16; flatten batch into M
    x = jnp.zeros((Bp, Lpp, EMBP), jnp.bfloat16)
    x = x.at[:B, PMAX:PMAX + L, :EMB].set(token2.astype(jnp.bfloat16))
    x = x.reshape(Bp * Lpp, EMBP)

    wf, bf = _fuse_conv_weights(params)
    mask = _valid_mask(L, Lpp)
    wfc = jnp.zeros((FP, NLP), jnp.bfloat16).at[:3 * NFILT, :n_labels].set(
        params["w_fc"].astype(jnp.bfloat16))
    bfc = jnp.zeros((1, NLP), jnp.float32).at[:, :n_labels].set(params["b_fc"])

    # TODO(synk): nn.Dropout(0.5) is identity in eval mode; training-mode RNG dropout not implemented.
    out = pl.pallas_call(
        classifier_cnn_kernel,
        out_shape=jax.ShapeDtypeStruct((Bp, NLP), jnp.float32),
        grid=(Bp // TB,),
        in_specs=[
            pl.BlockSpec((TB * Lpp, EMBP), lambda i: (i, 0)),     # x: tiled over batch
            pl.BlockSpec((KMAX, EMBP, FP), lambda i: (0, 0, 0)),  # fused conv weights: resident
            pl.BlockSpec((1, FP), lambda i: (0, 0)),              # fused conv bias
            pl.BlockSpec((Lpp, FP), lambda i: (0, 0)),            # validity mask
            pl.BlockSpec((FP, NLP), lambda i: (0, 0)),            # fc1 weight
            pl.BlockSpec((1, NLP), lambda i: (0, 0)),             # fc1 bias
        ],
        out_specs=pl.BlockSpec((TB, NLP), lambda i: (i, 0)),
        compiler_params=pltpu.CompilerParams(
            dimension_semantics=("parallel",),
            vmem_limit_bytes=32 * 1024 * 1024),
    )(x, wf, bf, mask, wfc, bfc)

    logits = out[:B, :n_labels]
    return logits, logits


def init_params(key, n_labels):
    """Deterministic synthetic parameters matching the module's shapes."""
    keys = jax.random.split(key, 8)

    def nrm(k, shape, scale=0.05):
        return (scale * jax.random.normal(k, shape)).astype(jnp.float32)

    params = {}
    for i, ksz in enumerate(KS):
        # torch Conv2d weight (100, 1, k, 300) stored as (k, 300, 100)
        params[f"w{ksz}"] = nrm(keys[2 * i], (ksz, EMB, NFILT))
        params[f"b{ksz}"] = nrm(keys[2 * i + 1], (1, NFILT))
    # torch fc1 weight (n_labels, 300) stored transposed as (300, n_labels)
    params["w_fc"] = nrm(keys[6], (3 * NFILT, n_labels))
    params["b_fc"] = nrm(keys[7], (1, n_labels))
    return params


def reference_forward(params, token2):
    """Pure-JAX reference of the module's math (same bf16 quantization as the kernel)."""
    B, L, _ = token2.shape
    x_pad = jnp.pad(token2, ((0, 0), (PMAX, PMAX), (0, 0))).astype(jnp.bfloat16)
    feats = []
    for k in KS:
        p = k - 2
        start = PMAX - p
        l_out = L + k - 3
        w = params[f"w{k}"].astype(jnp.bfloat16)
        z = jnp.zeros((B, l_out, NFILT), jnp.float32) + params[f"b{k}"][None]
        for dk in range(k):
            xs = x_pad[:, start + dk: start + dk + l_out, :]
            z = z + jnp.einsum("bld,dc->blc", xs, w[dk],
                               preferred_element_type=jnp.float32)
        feats.append(jnp.max(jax.nn.relu(z), axis=1))                # (B, NFILT)
    x = jnp.concatenate(feats, axis=1)                               # (B, 300)
    return jnp.dot(x.astype(jnp.bfloat16), params["w_fc"].astype(jnp.bfloat16),
                   preferred_element_type=jnp.float32) + params["b_fc"]


if __name__ == "__main__":
    key = jax.random.PRNGKey(0)
    k_in, k_par = jax.random.split(key)
    B, L, n_labels = 2, 8, 4

    token2 = jax.random.normal(k_in, (B, L, EMB), dtype=jnp.float32)
    input_ids = jnp.zeros((B, L), jnp.int32)     # unused by the forward pass
    segment_ids = jnp.zeros((B, L), jnp.int32)   # unused
    input_mask = jnp.ones((B, L), jnp.int32)     # unused

    params = init_params(k_par, n_labels)

    logits, logits2 = classifier_cnn_forward(params, token2, input_ids, segment_ids, input_mask)
    jax.block_until_ready(logits)

    ref = reference_forward(params, token2)
    np.testing.assert_allclose(np.asarray(logits), np.asarray(ref), rtol=2e-2, atol=2e-2)
    assert logits.shape == (B, n_labels) and logits2.shape == (B, n_labels)

    print("KERNEL_OK")
</pallas_src>

<mosaic_0001>
module attributes {stable_mosaic.version = 11 : i64} {
  func.func @classifier_cnn_kernel(%arg0: i32, %arg1: memref<32x384xbf16, #tpu.memory_space<vmem>>, %arg2: memref<5x384x384xbf16, #tpu.memory_space<vmem>>, %arg3: memref<1x384xf32, #tpu.memory_space<vmem>>, %arg4: memref<16x384xf32, #tpu.memory_space<vmem>>, %arg5: memref<384x128xbf16, #tpu.memory_space<vmem>>, %arg6: memref<1x128xf32, #tpu.memory_space<vmem>>, %arg7: memref<2x128xf32, #tpu.memory_space<vmem>>) attributes {dimension_semantics = [#tpu.dimension_semantics<parallel>], iteration_bounds = array<i64: 1>, scalar_prefetch = 0 : i64, scratch_operands = 0 : i64, tpu.core_type = #tpu.core_type<tc>, window_params = [{transform_indices = @transform_0, window_bounds = array<i64: 32, 384>}, {pipeline_mode = #tpu.pipeline_mode<synchronous>, transform_indices = @transform_1, window_bounds = array<i64: 5, 384, 384>}, {pipeline_mode = #tpu.pipeline_mode<synchronous>, transform_indices = @transform_2, window_bounds = array<i64: 1, 384>}, {pipeline_mode = #tpu.pipeline_mode<synchronous>, transform_indices = @transform_3, window_bounds = array<i64: 16, 384>}, {pipeline_mode = #tpu.pipeline_mode<synchronous>, transform_indices = @transform_4, window_bounds = array<i64: 384, 128>}, {pipeline_mode = #tpu.pipeline_mode<synchronous>, transform_indices = @transform_5, window_bounds = array<i64: 1, 128>}, {transform_indices = @transform_6, window_bounds = array<i64: 2, 128>}]} {
    %c0 = arith.constant 0 : index
    %c0_0 = arith.constant 0 : index
    %0 = vector.load %arg1[%c0, %c0_0] : memref<32x384xbf16, #tpu.memory_space<vmem>>, vector<32x384xbf16>
    %c0_1 = arith.constant 0 : index
    %c0_2 = arith.constant 0 : index
    %c0_3 = arith.constant 0 : index
    %1 = vector.load %arg2[%c0_1, %c0_2, %c0_3] : memref<5x384x384xbf16, #tpu.memory_space<vmem>>, vector<1x384x384xbf16>
    %2 = vector.shape_cast %1 : vector<1x384x384xbf16> to vector<384x384xbf16>
    %cst = arith.constant dense<0.000000e+00> : vector<32x384xf32>
    %3 = tpu.matmul %0, %2, %cst {dimension_numbers = #tpu.dot_dimension_numbers<[1], [0], [0], [1], [0, 0, 1, 1], [], []>} : vector<32x384xbf16>, vector<384x384xbf16>, vector<32x384xf32> -> vector<32x384xf32>
    %c1 = arith.constant 1 : index
    %c0_4 = arith.constant 0 : index
    %c0_5 = arith.constant 0 : index
    %4 = vector.load %arg2[%c1, %c0_4, %c0_5] : memref<5x384x384xbf16, #tpu.memory_space<vmem>>, vector<1x384x384xbf16>
    %5 = vector.shape_cast %4 : vector<1x384x384xbf16> to vector<384x384xbf16>
    %cst_6 = arith.constant dense<0.000000e+00> : vector<32x384xf32>
    %6 = tpu.matmul %0, %5, %cst_6 {dimension_numbers = #tpu.dot_dimension_numbers<[1], [0], [0], [1], [0, 0, 1, 1], [], []>} : vector<32x384xbf16>, vector<384x384xbf16>, vector<32x384xf32> -> vector<32x384xf32>
    %c31_i32 = arith.constant 31 : i32
    %7 = tpu.dynamic_rotate %6 by %c31_i32 dim 0 : vector<32x384xf32>, i32 -> vector<32x384xf32>
    %8 = arith.addf %3, %7 : vector<32x384xf32>
    %c2 = arith.constant 2 : index
    %c0_7 = arith.constant 0 : index
    %c0_8 = arith.constant 0 : index
    %9 = vector.load %arg2[%c2, %c0_7, %c0_8] : memref<5x384x384xbf16, #tpu.memory_space<vmem>>, vector<1x384x384xbf16>
    %10 = vector.shape_cast %9 : vector<1x384x384xbf16> to vector<384x384xbf16>
    %cst_9 = arith.constant dense<0.000000e+00> : vector<32x384xf32>
    %11 = tpu.matmul %0, %10, %cst_9 {dimension_numbers = #tpu.dot_dimension_numbers<[1], [0], [0], [1], [0, 0, 1, 1], [], []>} : vector<32x384xbf16>, vector<384x384xbf16>, vector<32x384xf32> -> vector<32x384xf32>
    %c30_i32 = arith.constant 30 : i32
    %12 = tpu.dynamic_rotate %11 by %c30_i32 dim 0 : vector<32x384xf32>, i32 -> vector<32x384xf32>
    %13 = arith.addf %8, %12 : vector<32x384xf32>
    %c3 = arith.constant 3 : index
    %c0_10 = arith.constant 0 : index
    %c0_11 = arith.constant 0 : index
    %14 = vector.load %arg2[%c3, %c0_10, %c0_11] : memref<5x384x384xbf16, #tpu.memory_space<vmem>>, vector<1x384x384xbf16>
    %15 = vector.shape_cast %14 : vector<1x384x384xbf16> to vector<384x384xbf16>
    %cst_12 = arith.constant dense<0.000000e+00> : vector<32x384xf32>
    %16 = tpu.matmul %0, %15, %cst_12 {dimension_numbers = #tpu.dot_dimension_numbers<[1], [0], [0], [1], [0, 0, 1, 1], [], []>} : vector<32x384xbf16>, vector<384x384xbf16>, vector<32x384xf32> -> vector<32x384xf32>
    %c29_i32 = arith.constant 29 : i32
    %17 = tpu.dynamic_rotate %16 by %c29_i32 dim 0 : vector<32x384xf32>, i32 -> vector<32x384xf32>
    %18 = arith.addf %13, %17 : vector<32x384xf32>
    %c4 = arith.constant 4 : index
    %c0_13 = arith.constant 0 : index
    %c0_14 = arith.constant 0 : index
    %19 = vector.load %arg2[%c4, %c0_13, %c0_14] : memref<5x384x384xbf16, #tpu.memory_space<vmem>>, vector<1x384x384xbf16>
    %20 = vector.shape_cast %19 : vector<1x384x384xbf16> to vector<384x384xbf16>
    %cst_15 = arith.constant dense<0.000000e+00> : vector<32x384xf32>
    %21 = tpu.matmul %0, %20, %cst_15 {dimension_numbers = #tpu.dot_dimension_numbers<[1], [0], [0], [1], [0, 0, 1, 1], [], []>} : vector<32x384xbf16>, vector<384x384xbf16>, vector<32x384xf32> -> vector<32x384xf32>
    %c28_i32 = arith.constant 28 : i32
    %22 = tpu.dynamic_rotate %21 by %c28_i32 dim 0 : vector<32x384xf32>, i32 -> vector<32x384xf32>
    %23 = arith.addf %18, %22 : vector<32x384xf32>
    %c0_16 = arith.constant 0 : index
    %c0_17 = arith.constant 0 : index
    %24 = vector.load %arg3[%c0_16, %c0_17] : memref<1x384xf32, #tpu.memory_space<vmem>>, vector<1x384xf32>
    %25 = vector.broadcast %24 : vector<1x384xf32> to vector<32x384xf32>
    %26 = arith.addf %23, %25 : vector<32x384xf32>
    %cst_18 = arith.constant 0.000000e+00 : f32
    %27 = vector.broadcast %cst_18 : f32 to vector<32x384xf32>
    %28 = arith.maximumf %26, %27 : vector<32x384xf32>
    %29 = vector.shape_cast %28 : vector<32x384xf32> to vector<2x16x384xf32>
    %c0_19 = arith.constant 0 : index
    %c0_20 = arith.constant 0 : index
    %30 = vector.load %arg4[%c0_19, %c0_20] : memref<16x384xf32, #tpu.memory_space<vmem>>, vector<16x384xf32>
    %31 = vector.shape_cast %30 : vector<16x384xf32> to vector<1x16x384xf32>
    %32 = vector.broadcast %31 : vector<1x16x384xf32> to vector<2x16x384xf32>
    %33 = arith.mulf %29, %32 : vector<2x16x384xf32>
    %cst_21 = arith.constant dense<0xFF800000> : vector<2x384xf32>
    %34 = vector.multi_reduction <maximumf>, %33, %cst_21 [1] : vector<2x16x384xf32> to vector<2x384xf32>
    %35 = arith.truncf %34 : vector<2x384xf32> to vector<2x384xbf16>
    %c0_22 = arith.constant 0 : index
    %c0_23 = arith.constant 0 : index
    %36 = vector.load %arg5[%c0_22, %c0_23] : memref<384x128xbf16, #tpu.memory_space<vmem>>, vector<384x128xbf16>
    %cst_24 = arith.constant dense<0.000000e+00> : vector<2x128xf32>
    %37 = tpu.matmul %35, %36, %cst_24 {dimension_numbers = #tpu.dot_dimension_numbers<[1], [0], [0], [1], [0, 0, 1, 1], [], []>} : vector<2x384xbf16>, vector<384x128xbf16>, vector<2x128xf32> -> vector<2x128xf32>
    %c0_25 = arith.constant 0 : index
    %c0_26 = arith.constant 0 : index
    %38 = vector.load %arg6[%c0_25, %c0_26] : memref<1x128xf32, #tpu.memory_space<vmem>>, vector<1x128xf32>
    %39 = vector.broadcast %38 : vector<1x128xf32> to vector<2x128xf32>
    %40 = arith.addf %37, %39 : vector<2x128xf32>
    %c0_27 = arith.constant 0 : index
    %c0_28 = arith.constant 0 : index
    %41 = vector.load %arg7[%c0_27, %c0_28] : memref<2x128xf32, #tpu.memory_space<vmem>>, vector<2x128xf32>
    tpu.vector_store %arg7[%c0_27, %c0_28], %40 {strides = array<i32>} : memref<2x128xf32, #tpu.memory_space<vmem>>, vector<2x128xf32>,
    return
  }
  func.func @transform_0(%arg0: i32) -> (i32, i32) {
    %c0_i32 = arith.constant 0 : i32
    %c0_i32_0 = arith.constant 0 : i32
    return %arg0, %c0_i32 : i32, i32
  }
  func.func @transform_1(%arg0: i32) -> (i32, i32, i32) {
    %c0_i32 = arith.constant 0 : i32
    %c0_i32_0 = arith.constant 0 : i32
    %c0_i32_1 = arith.constant 0 : i32
    %c0_i32_2 = arith.constant 0 : i32
    return %c0_i32, %c0_i32_0, %c0_i32_1 : i32, i32, i32
  }
  func.func @transform_2(%arg0: i32) -> (i32, i32) {
    %c0_i32 = arith.constant 0 : i32
    %c0_i32_0 = arith.constant 0 : i32
    %c0_i32_1 = arith.constant 0 : i32
    return %c0_i32, %c0_i32_0 : i32, i32
  }
  func.func @transform_3(%arg0: i32) -> (i32, i32) {
    %c0_i32 = arith.constant 0 : i32
    %c0_i32_0 = arith.constant 0 : i32
    %c0_i32_1 = arith.constant 0 : i32
    return %c0_i32, %c0_i32_0 : i32, i32
  }
  func.func @transform_4(%arg0: i32) -> (i32, i32) {
    %c0_i32 = arith.constant 0 : i32
    %c0_i32_0 = arith.constant 0 : i32
    %c0_i32_1 = arith.constant 0 : i32
    return %c0_i32, %c0_i32_0 : i32, i32
  }
  func.func @transform_5(%arg0: i32) -> (i32, i32) {
    %c0_i32 = arith.constant 0 : i32
    %c0_i32_0 = arith.constant 0 : i32
    %c0_i32_1 = arith.constant 0 : i32
    return %c0_i32, %c0_i32_0 : i32, i32
  }
  func.func @transform_6(%arg0: i32) -> (i32, i32) {
    %c0_i32 = arith.constant 0 : i32
    %c0_i32_0 = arith.constant 0 : i32
    return %arg0, %c0_i32 : i32, i32
  }
}

</mosaic_0001>

<llo_original>
// kernel: tpu_custom_call.1
$region0: #{tpu_custom_call.1}
  #allocation0 [shape = 'u32[]', space=smem, size = 0x4, offset = 0x4, fixed_abs, tag = 'smem constant byte address 0x4 - core index']
  #allocation1 [shape = 'u32[72,128]{1,0:T(1,128)}', space=vmem, size = 0x9000, scoped, tag = 'internal scratch']
  %s0 = inlined_call_operand.hbm [shape: bf16[32,384], index: 0, kind: input, shape index: {}]
  %s1 = inlined_call_operand.hbm [shape: bf16[5,384,384], index: 1, kind: input, shape index: {}]
  %s2 = inlined_call_operand.hbm [shape: f32[1,384], index: 2, kind: input, shape index: {}]
  %s3 = inlined_call_operand.hbm [shape: f32[16,384], index: 3, kind: input, shape index: {}]
  %s4 = inlined_call_operand.hbm [shape: bf16[384,128], index: 4, kind: input, shape index: {}]
  %s5 = inlined_call_operand.hbm [shape: f32[1,128], index: 5, kind: input, shape index: {}]
  %s6 = inlined_call_operand.hbm [shape: f32[2,128], index: 6, kind: output, shape index: {}]
  %s7 = sld [smem:[#allocation0]]
  $region58: #{tpu_custom_call.1} parent=0
    _
  %s9 = ssub.s32 1, %s7
  %s10 = scalar_select 0, %s9, %s7
  $region1: #{tpu_custom_call.1} parent=0
    #allocation2 [shape = 'u8[24576]{0}', space=vmem, size = 0x6000, scoped, tag = 'input window, operand 0, single buffered']
    #allocation3 [shape = 's32[1]{0}', space=sflag, size = 0x4, scoped, tag = 'scoped memory for tpu_custom_call.1']
    #allocation4 [shape = 's32[1]{0}', space=sflag, size = 0x4, scoped, tag = 'scoped memory for tpu_custom_call.1']
    #allocation5 [shape = 'u8[1474560]{0}', space=vmem, size = 0x168000, scoped, tag = 'input window, operand 1, single buffered']
    #allocation6 [shape = 's32[1]{0}', space=sflag, size = 0x4, scoped, tag = 'scoped memory for tpu_custom_call.1']
    #allocation7 [shape = 'u8[1536]{0}', space=vmem, size = 0x800, scoped, tag = 'input window, operand 2, single buffered']
    #allocation8 [shape = 'u8[24576]{0}', space=vmem, size = 0x6000, scoped, tag = 'input window, operand 3, single buffered']
    #allocation9 [shape = 's32[1]{0}', space=sflag, size = 0x4, scoped, tag = 'scoped memory for tpu_custom_call.1']
    #allocation10 [shape = 'u8[98304]{0}', space=vmem, size = 0x18000, scoped, tag = 'input window, operand 4, single buffered']
    #allocation11 [shape = 'u8[512]{0}', space=vmem, size = 0x400, scoped, tag = 'input window, operand 5, single buffered']
    #allocation12 [shape = 's32[1]{0}', space=sflag, size = 0x4, scoped, tag = 'scoped memory for tpu_custom_call.1']
    #allocation13 [shape = 'u8[1024]{0}', space=vmem, size = 0x400, scoped, tag = 'output window, operand 0, single buffered']
    %11 = vsyncpa [#allocation3], 0
    %12 = vsyncpa [#allocation6], 0
    %13 = vsyncpa [#allocation9], 0
    %14 = vsyncpa [#allocation12], 0
    %15 = vsyncpa [#allocation4], 0
    // Predicated region
    $region2: #{tpu_custom_call.1} parent=1 // pred_check
      _
    $region3: #{tpu_custom_call.1} parent=1 // pred_check_branch
      %17 = sbr.rel (0) target = $region5
    $region4: #{tpu_custom_call.1} parent=1 // pred_region
      %19 = vsyncadd [#allocation3], 0
      %s20 = sshll.u32 %s0, 4
      %s21 = int_to_ptr.hbm [resolvable:$true] %s20
      %s22 = sshll.u32 [#allocation2], 4
      %s23 = int_to_ptr.vmem [resolvable:$true] %s22
      %28 = dma.hbm_to_vmem [thread:$0]  %s21, 768, %s23, [#allocation3], 192, 192, 12
    $region5: #{tpu_custom_call.1} parent=1 // pred_fallthru
      _
    // Predicated region
    $region6: #{tpu_custom_call.1} parent=1 // pred_check
      _
    $region7: #{tpu_custom_call.1} parent=1 // pred_check_branch
      %30 = sbr.rel (0) target = $region9
    $region8: #{tpu_custom_call.1} parent=1 // pred_region
      %32 = vsyncadd [#allocation6], 0
      %s33 = sshll.u32 %s1, 4
      %s34 = int_to_ptr.hbm [resolvable:$true] %s33
      %s35 = sshll.u32 [#allocation5], 4
      %s36 = int_to_ptr.vmem [resolvable:$true] %s35
      %41 = dma.hbm_to_vmem [thread:$0]  %s34, 46080, %s36, [#allocation6], 192, 192, 12
    $region9: #{tpu_custom_call.1} parent=1 // pred_fallthru
      _
    // Predicated region
    $region10: #{tpu_custom_call.1} parent=1 // pred_check
      _
    $region11: #{tpu_custom_call.1} parent=1 // pred_check_branch
      %43 = sbr.rel (0) target = $region13
    $region12: #{tpu_custom_call.1} parent=1 // pred_region
      %45 = vsyncadd [#allocation6], 0
      %s47 = sshll.u32 %s2, 4
      %s48 = int_to_ptr.hbm [resolvable:$true] %s47
      %s49 = sshll.u32 [#allocation7], 4
      %s50 = int_to_ptr.vmem [resolvable:$true] %s49
      %52 = dma.hbm_to_vmem [thread:$0]  %s48, 48, %s50, [#allocation6]
    $region13: #{tpu_custom_call.1} parent=1 // pred_fallthru
      _
    // Predicated region
    $region14: #{tpu_custom_call.1} parent=1 // pred_check
      _
    $region15: #{tpu_custom_call.1} parent=1 // pred_check_branch
      %54 = sbr.rel (0) target = $region17
    $region16: #{tpu_custom_call.1} parent=1 // pred_region
      %56 = vsyncadd [#allocation9], 0
      %s57 = sshll.u32 %s3, 4
      %s58 = int_to_ptr.hbm [resolvable:$true] %s57
      %s59 = sshll.u32 [#allocation8], 4
      %s60 = int_to_ptr.vmem [resolvable:$true] %s59
      %65 = dma.hbm_to_vmem [thread:$0]  %s58, 768, %s60, [#allocation9], 384, 384, 24
    $region17: #{tpu_custom_call.1} parent=1 // pred_fallthru
      _
    // Predicated region
    $region18: #{tpu_custom_call.1} parent=1 // pred_check
      _
    $region19: #{tpu_custom_call.1} parent=1 // pred_check_branch
      %67 = sbr.rel (0) target = $region21
    $region20: #{tpu_custom_call.1} parent=1 // pred_region
      %69 = vsyncadd [#allocation9], 0
      %s70 = sshll.u32 %s4, 4
      %s71 = int_to_ptr.hbm [resolvable:$true] %s70
      %s72 = sshll.u32 [#allocation10], 4
      %s73 = int_to_ptr.vmem [resolvable:$true] %s72
      %78 = dma.hbm_to_vmem [thread:$0]  %s71, 3072, %s73, [#allocation9], 64, 64, 4
    $region21: #{tpu_custom_call.1} parent=1 // pred_fallthru
      _
    // Predicated region
    $region22: #{tpu_custom_call.1} parent=1 // pred_check
      _
    $region23: #{tpu_custom_call.1} parent=1 // pred_check_branch
      %80 = sbr.rel (0) target = $region25
    $region24: #{tpu_custom_call.1} parent=1 // pred_region
      %82 = vsyncadd [#allocation12], 0
      %s84 = sshll.u32 %s5, 4
      %s85 = int_to_ptr.hbm [resolvable:$true] %s84
      %s86 = sshll.u32 [#allocation11], 4
      %s87 = int_to_ptr.vmem [resolvable:$true] %s86
      %89 = dma.hbm_to_vmem [thread:$0]  %s85, 16, %s87, [#allocation12]
    $region25: #{tpu_custom_call.1} parent=1 // pred_fallthru
      _
    // Predicated region
    $region26: #{tpu_custom_call.1} parent=1 // pred_check
      _
    $region27: #{tpu_custom_call.1} parent=1 // pred_check_branch
      %91 = sbr.rel (0) target = $region29
    $region28: #{tpu_custom_call.1} parent=1 // pred_region
      %93 = dma.done [#allocation3], 768
    $region29: #{tpu_custom_call.1} parent=1 // pred_fallthru
      _
    // Predicated region
    $region30: #{tpu_custom_call.1} parent=1 // pred_check
      _
    $region31: #{tpu_custom_call.1} parent=1 // pred_check_branch
      %95 = sbr.rel (0) target = $region33
    $region32: #{tpu_custom_call.1} parent=1 // pred_region
      %97 = dma.done [#allocation6], 46080
    $region33: #{tpu_custom_call.1} parent=1 // pred_fallthru
      _
    // Predicated region
    $region34: #{tpu_custom_call.1} parent=1 // pred_check
      _
    $region35: #{tpu_custom_call.1} parent=1 // pred_check_branch
      %99 = sbr.rel (0) target = $region37
    $region36: #{tpu_custom_call.1} parent=1 // pred_region
      %101 = dma.done [#allocation6], 48
    $region37: #{tpu_custom_call.1} parent=1 // pred_fallthru
      _
    // Predicated region
    $region38: #{tpu_custom_call.1} parent=1 // pred_check
      _
    $region39: #{tpu_custom_call.1} parent=1 // pred_check_branch
      %103 = sbr.rel (0) target = $region41
    $region40: #{tpu_custom_call.1} parent=1 // pred_region
      %105 = dma.done [#allocation9], 768
    $region41: #{tpu_custom_call.1} parent=1 // pred_fallthru
      _
    // Predicated region
    $region42: #{tpu_custom_call.1} parent=1 // pred_check
      _
    $region43: #{tpu_custom_call.1} parent=1 // pred_check_branch
      %107 = sbr.rel (0) target = $region45
    $region44: #{tpu_custom_call.1} parent=1 // pred_region
      %109 = dma.done [#allocation9], 3072
    $region45: #{tpu_custom_call.1} parent=1 // pred_fallthru
      _
    // Predicated region
    $region46: #{tpu_custom_call.1} parent=1 // pred_check
      _
    $region47: #{tpu_custom_call.1} parent=1 // pred_check_branch
      %111 = sbr.rel (0) target = $region49
    $region48: #{tpu_custom_call.1} parent=1 // pred_region
      %113 = dma.done [#allocation12], 16
    $region49: #{tpu_custom_call.1} parent=1 // pred_fallthru
      _
    %v114 = vld [vmem:[#allocation2] sm:$0xff]
    %v115 = vld [vmem:[#allocation2 + $0x8] sm:$0xf]
    %v116 = vld [vmem:[#allocation2 + $0xc] sm:$0xff]
    %v117 = vld [vmem:[#allocation2 + $0x14] sm:$0xf]
    %v118 = vld [vmem:[#allocation2 + $0x18] sm:$0xff]
    %v119 = vld [vmem:[#allocation2 + $0x20] sm:$0xf]
    %v120 = vld [vmem:[#allocation2 + $0x24] sm:$0xff]
    %v121 = vld [vmem:[#allocation2 + $0x2c] sm:$0xf]
    %v122 = vld [vmem:[#allocation5] sm:$0xff]
    %v123 = vld [vmem:[#allocation5 + $0x8] sm:$0xf]
    %v124 = vld [vmem:[#allocation5 + $0xc] sm:$0xff]
    %v125 = vld [vmem:[#allocation5 + $0x14] sm:$0xf]
    %v126 = vld [vmem:[#allocation5 + $0x18] sm:$0xff]
    %v127 = vld [vmem:[#allocation5 + $0x20] sm:$0xf]
    %v128 = vld [vmem:[#allocation5 + $0x24] sm:$0xff]
    %v129 = vld [vmem:[#allocation5 + $0x2c] sm:$0xf]
    %v130 = vld [vmem:[#allocation5 + $0x30] sm:$0xff]
    %v131 = vld [vmem:[#allocation5 + $0x38] sm:$0xf]
    %v132 = vld [vmem:[#allocation5 + $0x3c] sm:$0xff]
    %v133 = vld [vmem:[#allocation5 + $0x44] sm:$0xf]
    %v134 = vld [vmem:[#allocation5 + $0x48] sm:$0xff]
    %v135 = vld [vmem:[#allocation5 + $0x50] sm:$0xf]
    %v136 = vld [vmem:[#allocation5 + $0x54] sm:$0xff]
    %v137 = vld [vmem:[#allocation5 + $0x5c] sm:$0xf]
    %v138 = vld [vmem:[#allocation5 + $0x60] sm:$0xff]
    %v139 = vld [vmem:[#allocation5 + $0x68] sm:$0xf]
    %v140 = vld [vmem:[#allocation5 + $0x6c] sm:$0xff]
    %v141 = vld [vmem:[#allocation5 + $0x74] sm:$0xf]
    %v142 = vld [vmem:[#allocation5 + $0x78] sm:$0xff]
    %v143 = vld [vmem:[#allocation5 + $0x80] sm:$0xf]
    %v144 = vld [vmem:[#allocation5 + $0x84] sm:$0xff]
    %v145 = vld [vmem:[#allocation5 + $0x8c] sm:$0xf]
    %v146 = vld [vmem:[#allocation5 + $0x90] sm:$0xff]
    %v147 = vld [vmem:[#allocation5 + $0x98] sm:$0xf]
    %v148 = vld [vmem:[#allocation5 + $0x9c] sm:$0xff]
    %v149 = vld [vmem:[#allocation5 + $0xa4] sm:$0xf]
    %v150 = vld [vmem:[#allocation5 + $0xa8] sm:$0xff]
    %v151 = vld [vmem:[#allocation5 + $0xb0] sm:$0xf]
    %v152 = vld [vmem:[#allocation5 + $0xb4] sm:$0xff]
    %v153 = vld [vmem:[#allocation5 + $0xbc] sm:$0xf]
    %v154 = vld [vmem:[#allocation5 + $0xc0] sm:$0xff]
    %v155 = vld [vmem:[#allocation5 + $0xc8] sm:$0xf]
    %v156 = vld [vmem:[#allocation5 + $0xcc] sm:$0xff]
    %v157 = vld [vmem:[#allocation5 + $0xd4] sm:$0xf]
    %v158 = vld [vmem:[#allocation5 + $0xd8] sm:$0xff]
    %v159 = vld [vmem:[#allocation5 + $0xe0] sm:$0xf]
    %v160 = vld [vmem:[#allocation5 + $0xe4] sm:$0xff]
    %v161 = vld [vmem:[#allocation5 + $0xec] sm:$0xf]
    %v162 = vld [vmem:[#allocation5 + $0xf0] sm:$0xff]
    %v163 = vld [vmem:[#allocation5 + $0xf8] sm:$0xf]
    %v164 = vld [vmem:[#allocation5 + $0xfc] sm:$0xff]
    %v165 = vld [vmem:[#allocation5 + $0x104] sm:$0xf]
    %v166 = vld [vmem:[#allocation5 + $0x108] sm:$0xff]
    %v167 = vld [vmem:[#allocation5 + $0x110] sm:$0xf]
    %v168 = vld [vmem:[#allocation5 + $0x114] sm:$0xff]
    %v169 = vld [vmem:[#allocation5 + $0x11c] sm:$0xf]
    %v170 = vld [vmem:[#allocation5 + $0x120] sm:$0xff]
    %v171 = vld [vmem:[#allocation5 + $0x128] sm:$0xf]
    %v172 = vld [vmem:[#allocation5 + $0x12c] sm:$0xff]
    %v173 = vld [vmem:[#allocation5 + $0x134] sm:$0xf]
    %v174 = vld [vmem:[#allocation5 + $0x138] sm:$0xff]
    %v175 = vld [vmem:[#allocation5 + $0x140] sm:$0xf]
    %v176 = vld [vmem:[#allocation5 + $0x144] sm:$0xff]
    %v177 = vld [vmem:[#allocation5 + $0x14c] sm:$0xf]
    %v178 = vld [vmem:[#allocation5 + $0x150] sm:$0xff]
    %v179 = vld [vmem:[#allocation5 + $0x158] sm:$0xf]
    %v180 = vld [vmem:[#allocation5 + $0x15c] sm:$0xff]
    %v181 = vld [vmem:[#allocation5 + $0x164] sm:$0xf]
    %v182 = vld [vmem:[#allocation5 + $0x168] sm:$0xff]
    %v183 = vld [vmem:[#allocation5 + $0x170] sm:$0xf]
    %v184 = vld [vmem:[#allocation5 + $0x174] sm:$0xff]
    %v185 = vld [vmem:[#allocation5 + $0x17c] sm:$0xf]
    %v186 = vld [vmem:[#allocation5 + $0x180] sm:$0xff]
    %v187 = vld [vmem:[#allocation5 + $0x188] sm:$0xf]
    %v188 = vld [vmem:[#allocation5 + $0x18c] sm:$0xff]
    %v189 = vld [vmem:[#allocation5 + $0x194] sm:$0xf]
    %v190 = vld [vmem:[#allocation5 + $0x198] sm:$0xff]
    %v191 = vld [vmem:[#allocation5 + $0x1a0] sm:$0xf]
    %v192 = vld [vmem:[#allocation5 + $0x1a4] sm:$0xff]
    %v193 = vld [vmem:[#allocation5 + $0x1ac] sm:$0xf]
    %v194 = vld [vmem:[#allocation5 + $0x1b0] sm:$0xff]
    %v195 = vld [vmem:[#allocation5 + $0x1b8] sm:$0xf]
    %v196 = vld [vmem:[#allocation5 + $0x1bc] sm:$0xff]
    %v197 = vld [vmem:[#allocation5 + $0x1c4] sm:$0xf]
    %v198 = vld [vmem:[#allocation5 + $0x1c8] sm:$0xff]
    %v199 = vld [vmem:[#allocation5 + $0x1d0] sm:$0xf]
    %v200 = vld [vmem:[#allocation5 + $0x1d4] sm:$0xff]
    %v201 = vld [vmem:[#allocation5 + $0x1dc] sm:$0xf]
    %v202 = vld [vmem:[#allocation5 + $0x1e0] sm:$0xff]
    %v203 = vld [vmem:[#allocation5 + $0x1e8] sm:$0xf]
    %v204 = vld [vmem:[#allocation5 + $0x1ec] sm:$0xff]
    %v205 = vld [vmem:[#allocation5 + $0x1f4] sm:$0xf]
    %v206 = vld [vmem:[#allocation5 + $0x1f8] sm:$0xff]
    %v207 = vld [vmem:[#allocation5 + $0x200] sm:$0xf]
    %v208 = vld [vmem:[#allocation5 + $0x204] sm:$0xff]
    %v209 = vld [vmem:[#allocation5 + $0x20c] sm:$0xf]
    %v210 = vld [vmem:[#allocation5 + $0x210] sm:$0xff]
    %v211 = vld [vmem:[#allocation5 + $0x218] sm:$0xf]
    %v212 = vld [vmem:[#allocation5 + $0x21c] sm:$0xff]
    %v213 = vld [vmem:[#allocation5 + $0x224] sm:$0xf]
    %v214 = vld [vmem:[#allocation5 + $0x228] sm:$0xff]
    %v215 = vld [vmem:[#allocation5 + $0x230] sm:$0xf]
    %v216 = vld [vmem:[#allocation5 + $0x234] sm:$0xff]
    %v217 = vld [vmem:[#allocation5 + $0x23c] sm:$0xf]
    %s218 = scalar_lea.vmem [#allocation5], 576
    %v219 = vld [vmem:[%s218] sm:$0xff]
    %v220 = vld [vmem:[%s218 + $0x8] sm:$0xf]
    %v221 = vld [vmem:[%s218 + $0xc] sm:$0xff]
    %v222 = vld [vmem:[%s218 + $0x14] sm:$0xf]
    %v223 = vld [vmem:[%s218 + $0x18] sm:$0xff]
    %v224 = vld [vmem:[%s218 + $0x20] sm:$0xf]
    %v225 = vld [vmem:[%s218 + $0x24] sm:$0xff]
    %v226 = vld [vmem:[%s218 + $0x2c] sm:$0xf]
    %v227 = vld [vmem:[%s218 + $0x30] sm:$0xff]
    %v228 = vld [vmem:[%s218 + $0x38] sm:$0xf]
    %v229 = vld [vmem:[%s218 + $0x3c] sm:$0xff]
    %v230 = vld [vmem:[%s218 + $0x44] sm:$0xf]
    %v231 = vld [vmem:[%s218 + $0x48] sm:$0xff]
    %v232 = vld [vmem:[%s218 + $0x50] sm:$0xf]
    %v233 = vld [vmem:[%s218 + $0x54] sm:$0xff]
    %v234 = vld [vmem:[%s218 + $0x5c] sm:$0xf]
    %v235 = vld [vmem:[%s218 + $0x60] sm:$0xff]
    %v236 = vld [vmem:[%s218 + $0x68] sm:$0xf]
    %v237 = vld [vmem:[%s218 + $0x6c] sm:$0xff]
    %v238 = vld [vmem:[%s218 + $0x74] sm:$0xf]
    %v239 = vld [vmem:[%s218 + $0x78] sm:$0xff]
    %v240 = vld [vmem:[%s218 + $0x80] sm:$0xf]
    %v241 = vld [vmem:[%s218 + $0x84] sm:$0xff]
    %v242 = vld [vmem:[%s218 + $0x8c] sm:$0xf]
    %v243 = vld [vmem:[%s218 + $0x90] sm:$0xff]
    %v244 = vld [vmem:[%s218 + $0x98] sm:$0xf]
    %v245 = vld [vmem:[%s218 + $0x9c] sm:$0xff]
    %v246 = vld [vmem:[%s218 + $0xa4] sm:$0xf]
    %v247 = vld [vmem:[%s218 + $0xa8] sm:$0xff]
    %v248 = vld [vmem:[%s218 + $0xb0] sm:$0xf]
    %v249 = vld [vmem:[%s218 + $0xb4] sm:$0xff]
    %v250 = vld [vmem:[%s218 + $0xbc] sm:$0xf]
    %v251 = vld [vmem:[%s218 + $0xc0] sm:$0xff]
    %v252 = vld [vmem:[%s218 + $0xc8] sm:$0xf]
    %v253 = vld [vmem:[%s218 + $0xcc] sm:$0xff]
    %v254 = vld [vmem:[%s218 + $0xd4] sm:$0xf]
    %v255 = vld [vmem:[%s218 + $0xd8] sm:$0xff]
    %v256 = vld [vmem:[%s218 + $0xe0] sm:$0xf]
    %v257 = vld [vmem:[%s218 + $0xe4] sm:$0xff]
    %v258 = vld [vmem:[%s218 + $0xec] sm:$0xf]
    %v259 = vld [vmem:[%s218 + $0xf0] sm:$0xff]
    %v260 = vld [vmem:[%s218 + $0xf8] sm:$0xf]
    %v261 = vld [vmem:[%s218 + $0xfc] sm:$0xff]
    %v262 = vld [vmem:[%s218 + $0x104] sm:$0xf]
    %v263 = vld [vmem:[%s218 + $0x108] sm:$0xff]
    %v264 = vld [vmem:[%s218 + $0x110] sm:$0xf]
    %v265 = vld [vmem:[%s218 + $0x114] sm:$0xff]
    %v266 = vld [vmem:[%s218 + $0x11c] sm:$0xf]
    %v267 = vld [vmem:[%s218 + $0x120] sm:$0xff]
    %v268 = vld [vmem:[%s218 + $0x128] sm:$0xf]
    %v269 = vld [vmem:[%s218 + $0x12c] sm:$0xff]
    %v270 = vld [vmem:[%s218 + $0x134] sm:$0xf]
    %v271 = vld [vmem:[%s218 + $0x138] sm:$0xff]
    %v272 = vld [vmem:[%s218 + $0x140] sm:$0xf]
    %v273 = vld [vmem:[%s218 + $0x144] sm:$0xff]
    %v274 = vld [vmem:[%s218 + $0x14c] sm:$0xf]
    %v275 = vld [vmem:[%s218 + $0x150] sm:$0xff]
    %v276 = vld [vmem:[%s218 + $0x158] sm:$0xf]
    %v277 = vld [vmem:[%s218 + $0x15c] sm:$0xff]
    %v278 = vld [vmem:[%s218 + $0x164] sm:$0xf]
    %v279 = vld [vmem:[%s218 + $0x168] sm:$0xff]
    %v280 = vld [vmem:[%s218 + $0x170] sm:$0xf]
    %v281 = vld [vmem:[%s218 + $0x174] sm:$0xff]
    %v282 = vld [vmem:[%s218 + $0x17c] sm:$0xf]
    %v283 = vld [vmem:[%s218 + $0x180] sm:$0xff]
    %v284 = vld [vmem:[%s218 + $0x188] sm:$0xf]
    %v285 = vld [vmem:[%s218 + $0x18c] sm:$0xff]
    %v286 = vld [vmem:[%s218 + $0x194] sm:$0xf]
    %v287 = vld [vmem:[%s218 + $0x198] sm:$0xff]
    %v288 = vld [vmem:[%s218 + $0x1a0] sm:$0xf]
    %v289 = vld [vmem:[%s218 + $0x1a4] sm:$0xff]
    %v290 = vld [vmem:[%s218 + $0x1ac] sm:$0xf]
    %v291 = vld [vmem:[%s218 + $0x1b0] sm:$0xff]
    %v292 = vld [vmem:[%s218 + $0x1b8] sm:$0xf]
    %v293 = vld [vmem:[%s218 + $0x1bc] sm:$0xff]
    %v294 = vld [vmem:[%s218 + $0x1c4] sm:$0xf]
    %v295 = vld [vmem:[%s218 + $0x1c8] sm:$0xff]
    %v296 = vld [vmem:[%s218 + $0x1d0] sm:$0xf]
    %v297 = vld [vmem:[%s218 + $0x1d4] sm:$0xff]
    %v298 = vld [vmem:[%s218 + $0x1dc] sm:$0xf]
    %v299 = vld [vmem:[%s218 + $0x1e0] sm:$0xff]
    %v300 = vld [vmem:[%s218 + $0x1e8] sm:$0xf]
    %v301 = vld [vmem:[%s218 + $0x1ec] sm:$0xff]
    %v302 = vld [vmem:[%s218 + $0x1f4] sm:$0xf]
    %v303 = vld [vmem:[%s218 + $0x1f8] sm:$0xff]
    %v304 = vld [vmem:[%s218 + $0x200] sm:$0xf]
    %v305 = vld [vmem:[%s218 + $0x204] sm:$0xff]
    %v306 = vld [vmem:[%s218 + $0x20c] sm:$0xf]
    %v307 = vld [vmem:[%s218 + $0x210] sm:$0xff]
    %v308 = vld [vmem:[%s218 + $0x218] sm:$0xf]
    %v309 = vld [vmem:[%s218 + $0x21c] sm:$0xff]
    %v310 = vld [vmem:[%s218 + $0x224] sm:$0xf]
    %v311 = vld [vmem:[%s218 + $0x228] sm:$0xff]
    %v312 = vld [vmem:[%s218 + $0x230] sm:$0xf]
    %v313 = vld [vmem:[%s218 + $0x234] sm:$0xff]
    %v314 = vld [vmem:[%s218 + $0x23c] sm:$0xf]
    %v323 = vunpack.c.l.b16 %v114
    %v324 = vunpack.c.h.b16 %v114
    %v325 = vunpack.c.l.b16 %v115
    %v326 = vunpack.c.l.b16 %v116
    %v327 = vunpack.c.h.b16 %v116
    %v328 = vunpack.c.l.b16 %v117
    %v329 = vunpack.c.l.b16 %v118
    %v330 = vunpack.c.h.b16 %v118
    %v331 = vunpack.c.l.b16 %v119
    %v332 = vunpack.c.l.b16 %v120
    %v333 = vunpack.c.h.b16 %v120
    %v334 = vunpack.c.l.b16 %v121
    %v335 = vpack.c.b16 %v326, %v323
    %v336 = vpack.c.b16 %v327, %v324
    %v337 = vpack.c.b16 %v328, %v325
    %v338 = vpack.c.b16 %v332, %v329
    %v339 = vpack.c.b16 %v333, %v330
    %v340 = vpack.c.b16 %v334, %v331
    %v443 = vunpack.c.l.b16 %v219
    %v444 = vunpack.c.h.b16 %v219
    %v445 = vunpack.c.l.b16 %v220
    %v446 = vunpack.c.l.b16 %v221
    %v447 = vunpack.c.h.b16 %v221
    %v448 = vunpack.c.l.b16 %v222
    %v449 = vunpack.c.l.b16 %v223
    %v450 = vunpack.c.h.b16 %v223
    %v451 = vunpack.c.l.b16 %v224
    %v452 = vunpack.c.l.b16 %v225
    %v453 = vunpack.c.h.b16 %v225
    %v454 = vunpack.c.l.b16 %v226
    %v455 = vunpack.c.l.b16 %v227
    %v456 = vunpack.c.h.b16 %v227
    %v457 = vunpack.c.l.b16 %v228
    %v458 = vunpack.c.l.b16 %v229
    %v459 = vunpack.c.h.b16 %v229
    %v460 = vunpack.c.l.b16 %v230
    %v461 = vunpack.c.l.b16 %v231
    %v462 = vunpack.c.h.b16 %v231
    %v463 = vunpack.c.l.b16 %v232
    %v464 = vunpack.c.l.b16 %v233
    %v465 = vunpack.c.h.b16 %v233
    %v466 = vunpack.c.l.b16 %v234
    %v467 = vunpack.c.l.b16 %v235
    %v468 = vunpack.c.h.b16 %v235
    %v469 = vunpack.c.l.b16 %v236
    %v470 = vunpack.c.l.b16 %v237
    %v471 = vunpack.c.h.b16 %v237
    %v472 = vunpack.c.l.b16 %v238
    %v473 = vunpack.c.l.b16 %v239
    %v474 = vunpack.c.h.b16 %v239
    %v475 = vunpack.c.l.b16 %v240
    %v476 = vunpack.c.l.b16 %v241
    %v477 = vunpack.c.h.b16 %v241
    %v478 = vunpack.c.l.b16 %v242
    %v479 = vunpack.c.l.b16 %v243
    %v480 = vunpack.c.h.b16 %v243
    %v481 = vunpack.c.l.b16 %v244
    %v482 = vunpack.c.l.b16 %v245
    %v483 = vunpack.c.h.b16 %v245
    %v484 = vunpack.c.l.b16 %v246
    %v485 = vunpack.c.l.b16 %v247
    %v486 = vunpack.c.h.b16 %v247
    %v487 = vunpack.c.l.b16 %v248
    %v488 = vunpack.c.l.b16 %v249
    %v489 = vunpack.c.h.b16 %v249
    %v490 = vunpack.c.l.b16 %v250
    %v491 = vunpack.c.l.b16 %v251
    %v492 = vunpack.c.h.b16 %v251
    %v493 = vunpack.c.l.b16 %v252
    %v494 = vunpack.c.l.b16 %v253
    %v495 = vunpack.c.h.b16 %v253
    %v496 = vunpack.c.l.b16 %v254
    %v497 = vunpack.c.l.b16 %v255
    %v498 = vunpack.c.h.b16 %v255
    %v499 = vunpack.c.l.b16 %v256
    %v500 = vunpack.c.l.b16 %v257
    %v501 = vunpack.c.h.b16 %v257
    %v502 = vunpack.c.l.b16 %v258
    %v503 = vunpack.c.l.b16 %v259
    %v504 = vunpack.c.h.b16 %v259
    %v505 = vunpack.c.l.b16 %v260
    %v506 = vunpack.c.l.b16 %v261
    %v507 = vunpack.c.h.b16 %v261
    %v508 = vunpack.c.l.b16 %v262
    %v509 = vunpack.c.l.b16 %v263
    %v510 = vunpack.c.h.b16 %v263
    %v511 = vunpack.c.l.b16 %v264
    %v512 = vunpack.c.l.b16 %v265
    %v513 = vunpack.c.h.b16 %v265
    %v514 = vunpack.c.l.b16 %v266
    %v515 = vunpack.c.l.b16 %v267
    %v516 = vunpack.c.h.b16 %v267
    %v517 = vunpack.c.l.b16 %v268
    %v518 = vunpack.c.l.b16 %v269
    %v519 = vunpack.c.h.b16 %v269
    %v520 = vunpack.c.l.b16 %v270
    %v521 = vunpack.c.l.b16 %v271
    %v522 = vunpack.c.h.b16 %v271
    %v523 = vunpack.c.l.b16 %v272
    %v524 = vunpack.c.l.b16 %v273
    %v525 = vunpack.c.h.b16 %v273
    %v526 = vunpack.c.l.b16 %v274
    %v527 = vunpack.c.l.b16 %v275
    %v528 = vunpack.c.h.b16 %v275
    %v529 = vunpack.c.l.b16 %v276
    %v530 = vunpack.c.l.b16 %v277
    %v531 = vunpack.c.h.b16 %v277
    %v532 = vunpack.c.l.b16 %v278
    %v533 = vunpack.c.l.b16 %v279
    %v534 = vunpack.c.h.b16 %v279
    %v535 = vunpack.c.l.b16 %v280
    %v536 = vunpack.c.l.b16 %v281
    %v537 = vunpack.c.h.b16 %v281
    %v538 = vunpack.c.l.b16 %v282
    %v539 = vunpack.c.l.b16 %v283
    %v540 = vunpack.c.h.b16 %v283
    %v541 = vunpack.c.l.b16 %v284
    %v542 = vunpack.c.l.b16 %v285
    %v543 = vunpack.c.h.b16 %v285
    %v544 = vunpack.c.l.b16 %v286
    %v545 = vunpack.c.l.b16 %v287
    %v546 = vunpack.c.h.b16 %v287
    %v547 = vunpack.c.l.b16 %v288
    %v548 = vunpack.c.l.b16 %v289
    %v549 = vunpack.c.h.b16 %v289
    %v550 = vunpack.c.l.b16 %v290
    %v551 = vunpack.c.l.b16 %v291
    %v552 = vunpack.c.h.b16 %v291
    %v553 = vunpack.c.l.b16 %v292
    %v554 = vunpack.c.l.b16 %v293
    %v555 = vunpack.c.h.b16 %v293
    %v556 = vunpack.c.l.b16 %v294
    %v557 = vunpack.c.l.b16 %v295
    %v558 = vunpack.c.h.b16 %v295
    %v559 = vunpack.c.l.b16 %v296
    %v560 = vunpack.c.l.b16 %v297
    %v561 = vunpack.c.h.b16 %v297
    %v562 = vunpack.c.l.b16 %v298
    %v563 = vunpack.c.l.b16 %v299
    %v564 = vunpack.c.h.b16 %v299
    %v565 = vunpack.c.l.b16 %v300
    %v566 = vunpack.c.l.b16 %v301
    %v567 = vunpack.c.h.b16 %v301
    %v568 = vunpack.c.l.b16 %v302
    %v569 = vunpack.c.l.b16 %v303
    %v570 = vunpack.c.h.b16 %v303
    %v571 = vunpack.c.l.b16 %v304
    %v572 = vunpack.c.l.b16 %v305
    %v573 = vunpack.c.h.b16 %v305
    %v574 = vunpack.c.l.b16 %v306
    %v575 = vunpack.c.l.b16 %v307
    %v576 = vunpack.c.h.b16 %v307
    %v577 = vunpack.c.l.b16 %v308
    %v578 = vunpack.c.l.b16 %v309
    %v579 = vunpack.c.h.b16 %v309
    %v580 = vunpack.c.l.b16 %v310
    %v581 = vunpack.c.l.b16 %v311
    %v582 = vunpack.c.h.b16 %v311
    %v583 = vunpack.c.l.b16 %v312
    %v584 = vunpack.c.l.b16 %v313
    %v585 = vunpack.c.h.b16 %v313
    %v586 = vunpack.c.l.b16 %v314
    %v587 = vpack.c.b16 %v446, %v443
    %v588 = vpack.c.b16 %v447, %v444
    %v589 = vpack.c.b16 %v448, %v445
    %v590 = vpack.c.b16 %v452, %v449
    %v591 = vpack.c.b16 %v453, %v450
    %v592 = vpack.c.b16 %v454, %v451
    %v593 = vpack.c.b16 %v458, %v455
    %v594 = vpack.c.b16 %v459, %v456
    %v595 = vpack.c.b16 %v460, %v457
    %v596 = vpack.c.b16 %v464, %v461
    %v597 = vpack.c.b16 %v465, %v462
    %v598 = vpack.c.b16 %v466, %v463
    %v599 = vpack.c.b16 %v470, %v467
    %v600 = vpack.c.b16 %v471, %v468
    %v601 = vpack.c.b16 %v472, %v469
    %v602 = vpack.c.b16 %v476, %v473
    %v603 = vpack.c.b16 %v477, %v474
    %v604 = vpack.c.b16 %v478, %v475
    %v605 = vpack.c.b16 %v482, %v479
    %v606 = vpack.c.b16 %v483, %v480
    %v607 = vpack.c.b16 %v484, %v481
    %v608 = vpack.c.b16 %v488, %v485
    %v609 = vpack.c.b16 %v489, %v486
    %v610 = vpack.c.b16 %v490, %v487
    %v611 = vpack.c.b16 %v494, %v491
    %v612 = vpack.c.b16 %v495, %v492
    %v613 = vpack.c.b16 %v496, %v493
    %v614 = vpack.c.b16 %v500, %v497
    %v615 = vpack.c.b16 %v501, %v498
    %v616 = vpack.c.b16 %v502, %v499
    %v617 = vpack.c.b16 %v506, %v503
    %v618 = vpack.c.b16 %v507, %v504
    %v619 = vpack.c.b16 %v508, %v505
    %v620 = vpack.c.b16 %v512, %v509
    %v621 = vpack.c.b16 %v513, %v510
    %v622 = vpack.c.b16 %v514, %v511
    %v623 = vpack.c.b16 %v518, %v515
    %v624 = vpack.c.b16 %v519, %v516
    %v625 = vpack.c.b16 %v520, %v517
    %v626 = vpack.c.b16 %v524, %v521
    %v627 = vpack.c.b16 %v525, %v522
    %v628 = vpack.c.b16 %v526, %v523
    %v629 = vpack.c.b16 %v530, %v527
    %v630 = vpack.c.b16 %v531, %v528
    %v631 = vpack.c.b16 %v532, %v529
    %v632 = vpack.c.b16 %v536, %v533
    %v633 = vpack.c.b16 %v537, %v534
    %v634 = vpack.c.b16 %v538, %v535
    %v635 = vpack.c.b16 %v542, %v539
    %v636 = vpack.c.b16 %v543, %v540
    %v637 = vpack.c.b16 %v544, %v541
    %v638 = vpack.c.b16 %v548, %v545
    %v639 = vpack.c.b16 %v549, %v546
    %v640 = vpack.c.b16 %v550, %v547
    %v641 = vpack.c.b16 %v554, %v551
    %v642 = vpack.c.b16 %v555, %v552
    %v643 = vpack.c.b16 %v556, %v553
    %v644 = vpack.c.b16 %v560, %v557
    %v645 = vpack.c.b16 %v561, %v558
    %v646 = vpack.c.b16 %v562, %v559
    %v647 = vpack.c.b16 %v566, %v563
    %v648 = vpack.c.b16 %v567, %v564
    %v649 = vpack.c.b16 %v568, %v565
    %v650 = vpack.c.b16 %v572, %v569
    %v651 = vpack.c.b16 %v573, %v570
    %v652 = vpack.c.b16 %v574, %v571
    %v653 = vpack.c.b16 %v578, %v575
    %v654 = vpack.c.b16 %v579, %v576
    %v655 = vpack.c.b16 %v580, %v577
    %v656 = vpack.c.b16 %v584, %v581
    %v657 = vpack.c.b16 %v585, %v582
    %v658 = vpack.c.b16 %v586, %v583
    %731 = vmatpush.bf16.msra.mxu0 %v608
    %732 = vmatpush.bf16.msra.mxu0 %v605
    %733 = vmatpush.bf16.msra.mxu0 %v602
    %734 = vmatpush.bf16.msra.mxu0 %v599
    %735 = vmatpush.bf16.msra.mxu0 %v596
    %736 = vmatpush.bf16.msra.mxu0 %v593
    %737 = vmatpush.bf16.msra.mxu0 %v590
    %738 = vmatpush.bf16.msra.mxu0 %v587
    %739 = vmatmul.bf16.gmra.mxu0 %v335
    %v740 = vpop.f32.mrf.mxu0
    %v741 = vadd.f32 0.0, %v740
    %v742 = vpop.f32.mrf.mxu0
    %v743 = vadd.f32 0.0, %v742
    %744 = vmatmul.bf16.gmra.mxu0 %v338
    %v745 = vpop.f32.mrf.mxu0
    %v746 = vadd.f32 0.0, %v745
    %v747 = vpop.f32.mrf.mxu0
    %v748 = vadd.f32 0.0, %v747
    %749 = vdwg.mxu0
    %750 = vmatpush.bf16.msra.mxu0 %v632
    %751 = vmatpush.bf16.msra.mxu0 %v629
    %752 = vmatpush.bf16.msra.mxu0 %v626
    %753 = vmatpush.bf16.msra.mxu0 %v623
    %754 = vmatpush.bf16.msra.mxu0 %v620
    %755 = vmatpush.bf16.msra.mxu0 %v617
    %756 = vmatpush.bf16.msra.mxu0 %v614
    %757 = vmatpush.bf16.msra.mxu0 %v611
    %758 = vmatmul.bf16.gmra.mxu0 %v336
    %v759 = vpop.f32.mrf.mxu0
    %v760 = vadd.f32 %v741, %v759
    %v761 = vpop.f32.mrf.mxu0
    %v762 = vadd.f32 %v743, %v761
    %763 = vmatmul.bf16.gmra.mxu0 %v339
    %v764 = vpop.f32.mrf.mxu0
    %v765 = vadd.f32 %v746, %v764
    %v766 = vpop.f32.mrf.mxu0
    %v767 = vadd.f32 %v748, %v766
    %768 = vdwg.mxu0
    %769 = vmatpush.bf16.msra.mxu0 %v656
    %770 = vmatpush.bf16.msra.mxu0 %v653
    %771 = vmatpush.bf16.msra.mxu0 %v650
    %772 = vmatpush.bf16.msra.mxu0 %v647
    %773 = vmatpush.bf16.msra.mxu0 %v644
    %774 = vmatpush.bf16.msra.mxu0 %v641
    %775 = vmatpush.bf16.msra.mxu0 %v638
    %776 = vmatpush.bf16.msra.mxu0 %v635
    %777 = vmatmul.bf16.gmra.mxu0 %v337
    %v778 = vpop.f32.mrf.mxu0
    %v779 = vadd.f32 %v760, %v778
    %v780 = vpop.f32.mrf.mxu0
    %v781 = vadd.f32 %v762, %v780
    %782 = vmatmul.bf16.gmra.mxu0 %v340
    %v783 = vpop.f32.mrf.mxu0
    %v784 = vadd.f32 %v765, %v783
    %v785 = vpop.f32.mrf.mxu0
    %v786 = vadd.f32 %v767, %v785
    %787 = vdwg.mxu0
    %788 = vmatpush.bf16.msra.mxu0 %v609
    %789 = vmatpush.bf16.msra.mxu0 %v606
    %790 = vmatpush.bf16.msra.mxu0 %v603
    %791 = vmatpush.bf16.msra.mxu0 %v600
    %792 = vmatpush.bf16.msra.mxu0 %v597
    %793 = vmatpush.bf16.msra.mxu0 %v594
    %794 = vmatpush.bf16.msra.mxu0 %v591
    %795 = vmatpush.bf16.msra.mxu0 %v588
    %796 = vmatmul.bf16.gmra.mxu0 %v335
    %v797 = vpop.f32.mrf.mxu0
    %v798 = vadd.f32 0.0, %v797
    %v799 = vpop.f32.mrf.mxu0
    %v800 = vadd.f32 0.0, %v799
    %801 = vmatmul.bf16.gmra.mxu0 %v338
    %v802 = vpop.f32.mrf.mxu0
    %v803 = vadd.f32 0.0, %v802
    %v804 = vpop.f32.mrf.mxu0
    %v805 = vadd.f32 0.0, %v804
    %806 = vdwg.mxu0
    %807 = vmatpush.bf16.msra.mxu0 %v633
    %808 = vmatpush.bf16.msra.mxu0 %v630
    %809 = vmatpush.bf16.msra.mxu0 %v627
    %810 = vmatpush.bf16.msra.mxu0 %v624
    %811 = vmatpush.bf16.msra.mxu0 %v621
    %812 = vmatpush.bf16.msra.mxu0 %v618
    %813 = vmatpush.bf16.msra.mxu0 %v615
    %814 = vmatpush.bf16.msra.mxu0 %v612
    %815 = vmatmul.bf16.gmra.mxu0 %v336
    %v816 = vpop.f32.mrf.mxu0
    %v817 = vadd.f32 %v798, %v816
    %v818 = vpop.f32.mrf.mxu0
    %v819 = vadd.f32 %v800, %v818
    %820 = vmatmul.bf16.gmra.mxu0 %v339
    %v821 = vpop.f32.mrf.mxu0
    %v822 = vadd.f32 %v803, %v821
    %v823 = vpop.f32.mrf.mxu0
    %v824 = vadd.f32 %v805, %v823
    %825 = vdwg.mxu0
    %826 = vmatpush.bf16.msra.mxu0 %v657
    %827 = vmatpush.bf16.msra.mxu0 %v654
    %828 = vmatpush.bf16.msra.mxu0 %v651
    %829 = vmatpush.bf16.msra.mxu0 %v648
    %830 = vmatpush.bf16.msra.mxu0 %v645
    %831 = vmatpush.bf16.msra.mxu0 %v642
    %832 = vmatpush.bf16.msra.mxu0 %v639
    %833 = vmatpush.bf16.msra.mxu0 %v636
    %834 = vmatmul.bf16.gmra.mxu0 %v337
    %v835 = vpop.f32.mrf.mxu0
    %v836 = vadd.f32 %v817, %v835
    %v837 = vpop.f32.mrf.mxu0
    %v838 = vadd.f32 %v819, %v837
    %839 = vmatmul.bf16.gmra.mxu0 %v340
    %v840 = vpop.f32.mrf.mxu0
    %v841 = vadd.f32 %v822, %v840
    %v842 = vpop.f32.mrf.mxu0
    %v843 = vadd.f32 %v824, %v842
    %844 = vdwg.mxu0
    %845 = vmatpush.bf16.msra.mxu0 %v610
    %846 = vmatpush.bf16.msra.mxu0 %v607
    %847 = vmatpush.bf16.msra.mxu0 %v604
    %848 = vmatpush.bf16.msra.mxu0 %v601
    %849 = vmatpush.bf16.msra.mxu0 %v598
    %850 = vmatpush.bf16.msra.mxu0 %v595
    %851 = vmatpush.bf16.msra.mxu0 %v592
    %852 = vmatpush.bf16.msra.mxu0 %v589
    %853 = vmatmul.bf16.gmra.mxu0 %v335
    %v854 = vpop.f32.mrf.mxu0
    %v855 = vadd.f32 0.0, %v854
    %v856 = vpop.f32.mrf.mxu0
    %v857 = vadd.f32 0.0, %v856
    %858 = vmatmul.bf16.gmra.mxu0 %v338
    %v859 = vpop.f32.mrf.mxu0
    %v860 = vadd.f32 0.0, %v859
    %v861 = vpop.f32.mrf.mxu0
    %v862 = vadd.f32 0.0, %v861
    %863 = vdwg.mxu0
    %864 = vmatpush.bf16.msra.mxu0 %v634
    %865 = vmatpush.bf16.msra.mxu0 %v631
    %866 = vmatpush.bf16.msra.mxu0 %v628
    %867 = vmatpush.bf16.msra.mxu0 %v625
    %868 = vmatpush.bf16.msra.mxu0 %v622
    %869 = vmatpush.bf16.msra.mxu0 %v619
    %870 = vmatpush.bf16.msra.mxu0 %v616
    %871 = vmatpush.bf16.msra.mxu0 %v613
    %872 = vmatmul.bf16.gmra.mxu0 %v336
    %v873 = vpop.f32.mrf.mxu0
    %v874 = vadd.f32 %v855, %v873
    %v875 = vpop.f32.mrf.mxu0
    %v876 = vadd.f32 %v857, %v875
    %877 = vmatmul.bf16.gmra.mxu0 %v339
    %v878 = vpop.f32.mrf.mxu0
    %v879 = vadd.f32 %v860, %v878
    %v880 = vpop.f32.mrf.mxu0
    %v881 = vadd.f32 %v862, %v880
    %882 = vdwg.mxu0
    %883 = vmatpush.bf16.msra.mxu0 %v658
    %884 = vmatpush.bf16.msra.mxu0 %v655
    %885 = vmatpush.bf16.msra.mxu0 %v652
    %886 = vmatpush.bf16.msra.mxu0 %v649
    %887 = vmatpush.bf16.msra.mxu0 %v646
    %888 = vmatpush.bf16.msra.mxu0 %v643
    %889 = vmatpush.bf16.msra.mxu0 %v640
    %890 = vmatpush.bf16.msra.mxu0 %v637
    %891 = vmatmul.bf16.gmra.mxu0 %v337
    %v892 = vpop.f32.mrf.mxu0
    %v893 = vadd.f32 %v874, %v892
    %v894 = vpop.f32.mrf.mxu0
    %v895 = vadd.f32 %v876, %v894
    %896 = vmatmul.bf16.gmra.mxu0 %v340
    %v897 = vpop.f32.mrf.mxu0
    %v898 = vadd.f32 %v879, %v897
    %v899 = vpop.f32.mrf.mxu0
    %v900 = vadd.f32 %v881, %v899
    %901 = vdwg.mxu0
    %v902 = vrot.slane %v779, 1
    %v903 = vrot.slane %v836, 1
    %v904 = vrot.slane %v893, 1
    %v905 = vrot.slane %v781, 1
    %v906 = vrot.slane %v838, 1
    %v907 = vrot.slane %v895, 1
    %v908 = vrot.slane %v784, 1
    %v909 = vrot.slane %v841, 1
    %v910 = vrot.slane %v898, 1
    %v911 = vrot.slane %v786, 1
    %v912 = vrot.slane %v843, 1
    %v913 = vrot.slane %v900, 1
    %v914 = vlaneseq
    %v915 = vshrl.u32 %v914, 7
    %vm916 = vcmp.lt.s32.totalorder %v915, 7
    %v917 = vsel %vm916, %v908, %v911
    %v918 = vsel %vm916, %v909, %v912
    %v919 = vsel %vm916, %v910, %v913
    %v920 = vsel %vm916, %v905, %v908
    %v921 = vsel %vm916, %v906, %v909
    %v922 = vsel %vm916, %v907, %v910
    %v923 = vsel %vm916, %v902, %v905
    %v924 = vsel %vm916, %v903, %v906
    %v925 = vsel %vm916, %v904, %v907
    %v926 = vsel %vm916, %v911, %v902
    %v927 = vsel %vm916, %v912, %v903
    %v928 = vsel %vm916, %v913, %v904
    %v1025 = vunpack.c.l.b16 %v122
    %v1026 = vunpack.c.h.b16 %v122
    %v1027 = vunpack.c.l.b16 %v123
    %v1028 = vunpack.c.l.b16 %v124
    %v1029 = vunpack.c.h.b16 %v124
    %v1030 = vunpack.c.l.b16 %v125
    %v1031 = vunpack.c.l.b16 %v126
    %v1032 = vunpack.c.h.b16 %v126
    %v1033 = vunpack.c.l.b16 %v127
    %v1034 = vunpack.c.l.b16 %v128
    %v1035 = vunpack.c.h.b16 %v128
    %v1036 = vunpack.c.l.b16 %v129
    %v1037 = vunpack.c.l.b16 %v130
    %v1038 = vunpack.c.h.b16 %v130
    %v1039 = vunpack.c.l.b16 %v131
    %v1040 = vunpack.c.l.b16 %v132
    %v1041 = vunpack.c.h.b16 %v132
    %v1042 = vunpack.c.l.b16 %v133
    %v1043 = vunpack.c.l.b16 %v134
    %v1044 = vunpack.c.h.b16 %v134
    %v1045 = vunpack.c.l.b16 %v135
    %v1046 = vunpack.c.l.b16 %v136
    %v1047 = vunpack.c.h.b16 %v136
    %v1048 = vunpack.c.l.b16 %v137
    %v1049 = vunpack.c.l.b16 %v138
    %v1050 = vunpack.c.h.b16 %v138
    %v1051 = vunpack.c.l.b16 %v139
    %v1052 = vunpack.c.l.b16 %v140
    %v1053 = vunpack.c.h.b16 %v140
    %v1054 = vunpack.c.l.b16 %v141
    %v1055 = vunpack.c.l.b16 %v142
    %v1056 = vunpack.c.h.b16 %v142
    %v1057 = vunpack.c.l.b16 %v143
    %v1058 = vunpack.c.l.b16 %v144
    %v1059 = vunpack.c.h.b16 %v144
    %v1060 = vunpack.c.l.b16 %v145
    %v1061 = vunpack.c.l.b16 %v146
    %v1062 = vunpack.c.h.b16 %v146
    %v1063 = vunpack.c.l.b16 %v147
    %v1064 = vunpack.c.l.b16 %v148
    %v1065 = vunpack.c.h.b16 %v148
    %v1066 = vunpack.c.l.b16 %v149
    %v1067 = vunpack.c.l.b16 %v150
    %v1068 = vunpack.c.h.b16 %v150
    %v1069 = vunpack.c.l.b16 %v151
    %v1070 = vunpack.c.l.b16 %v152
    %v1071 = vunpack.c.h.b16 %v152
    %v1072 = vunpack.c.l.b16 %v153
    %v1073 = vunpack.c.l.b16 %v154
    %v1074 = vunpack.c.h.b16 %v154
    %v1075 = vunpack.c.l.b16 %v155
    %v1076 = vunpack.c.l.b16 %v156
    %v1077 = vunpack.c.h.b16 %v156
    %v1078 = vunpack.c.l.b16 %v157
    %v1079 = vunpack.c.l.b16 %v158
    %v1080 = vunpack.c.h.b16 %v158
    %v1081 = vunpack.c.l.b16 %v159
    %v1082 = vunpack.c.l.b16 %v160
    %v1083 = vunpack.c.h.b16 %v160
    %v1084 = vunpack.c.l.b16 %v161
    %v1085 = vunpack.c.l.b16 %v162
    %v1086 = vunpack.c.h.b16 %v162
    %v1087 = vunpack.c.l.b16 %v163
    %v1088 = vunpack.c.l.b16 %v164
    %v1089 = vunpack.c.h.b16 %v164
    %v1090 = vunpack.c.l.b16 %v165
    %v1091 = vunpack.c.l.b16 %v166
    %v1092 = vunpack.c.h.b16 %v166
    %v1093 = vunpack.c.l.b16 %v167
    %v1094 = vunpack.c.l.b16 %v168
    %v1095 = vunpack.c.h.b16 %v168
    %v1096 = vunpack.c.l.b16 %v169
    %v1097 = vunpack.c.l.b16 %v170
    %v1098 = vunpack.c.h.b16 %v170
    %v1099 = vunpack.c.l.b16 %v171
    %v1100 = vunpack.c.l.b16 %v172
    %v1101 = vunpack.c.h.b16 %v172
    %v1102 = vunpack.c.l.b16 %v173
    %v1103 = vunpack.c.l.b16 %v174
    %v1104 = vunpack.c.h.b16 %v174
    %v1105 = vunpack.c.l.b16 %v175
    %v1106 = vunpack.c.l.b16 %v176
    %v1107 = vunpack.c.h.b16 %v176
    %v1108 = vunpack.c.l.b16 %v177
    %v1109 = vunpack.c.l.b16 %v178
    %v1110 = vunpack.c.h.b16 %v178
    %v1111 = vunpack.c.l.b16 %v179
    %v1112 = vunpack.c.l.b16 %v180
    %v1113 = vunpack.c.h.b16 %v180
    %v1114 = vunpack.c.l.b16 %v181
    %v1115 = vunpack.c.l.b16 %v182
    %v1116 = vunpack.c.h.b16 %v182
    %v1117 = vunpack.c.l.b16 %v183
    %v1118 = vunpack.c.l.b16 %v184
    %v1119 = vunpack.c.h.b16 %v184
    %v1120 = vunpack.c.l.b16 %v185
    %v1121 = vunpack.c.l.b16 %v186
    %v1122 = vunpack.c.h.b16 %v186
    %v1123 = vunpack.c.l.b16 %v187
    %v1124 = vunpack.c.l.b16 %v188
    %v1125 = vunpack.c.h.b16 %v188
    %v1126 = vunpack.c.l.b16 %v189
    %v1127 = vunpack.c.l.b16 %v190
    %v1128 = vunpack.c.h.b16 %v190
    %v1129 = vunpack.c.l.b16 %v191
    %v1130 = vunpack.c.l.b16 %v192
    %v1131 = vunpack.c.h.b16 %v192
    %v1132 = vunpack.c.l.b16 %v193
    %v1133 = vunpack.c.l.b16 %v194
    %v1134 = vunpack.c.h.b16 %v194
    %v1135 = vunpack.c.l.b16 %v195
    %v1136 = vunpack.c.l.b16 %v196
    %v1137 = vunpack.c.h.b16 %v196
    %v1138 = vunpack.c.l.b16 %v197
    %v1139 = vunpack.c.l.b16 %v198
    %v1140 = vunpack.c.h.b16 %v198
    %v1141 = vunpack.c.l.b16 %v199
    %v1142 = vunpack.c.l.b16 %v200
    %v1143 = vunpack.c.h.b16 %v200
    %v1144 = vunpack.c.l.b16 %v201
    %v1145 = vunpack.c.l.b16 %v202
    %v1146 = vunpack.c.h.b16 %v202
    %v1147 = vunpack.c.l.b16 %v203
    %v1148 = vunpack.c.l.b16 %v204
    %v1149 = vunpack.c.h.b16 %v204
    %v1150 = vunpack.c.l.b16 %v205
    %v1151 = vunpack.c.l.b16 %v206
    %v1152 = vunpack.c.h.b16 %v206
    %v1153 = vunpack.c.l.b16 %v207
    %v1154 = vunpack.c.l.b16 %v208
    %v1155 = vunpack.c.h.b16 %v208
    %v1156 = vunpack.c.l.b16 %v209
    %v1157 = vunpack.c.l.b16 %v210
    %v1158 = vunpack.c.h.b16 %v210
    %v1159 = vunpack.c.l.b16 %v211
    %v1160 = vunpack.c.l.b16 %v212
    %v1161 = vunpack.c.h.b16 %v212
    %v1162 = vunpack.c.l.b16 %v213
    %v1163 = vunpack.c.l.b16 %v214
    %v1164 = vunpack.c.h.b16 %v214
    %v1165 = vunpack.c.l.b16 %v215
    %v1166 = vunpack.c.l.b16 %v216
    %v1167 = vunpack.c.h.b16 %v216
    %v1168 = vunpack.c.l.b16 %v217
    %v1169 = vpack.c.b16 %v1028, %v1025
    %v1170 = vpack.c.b16 %v1029, %v1026
    %v1171 = vpack.c.b16 %v1030, %v1027
    %v1172 = vpack.c.b16 %v1034, %v1031
    %v1173 = vpack.c.b16 %v1035, %v1032
    %v1174 = vpack.c.b16 %v1036, %v1033
    %v1175 = vpack.c.b16 %v1040, %v1037
    %v1176 = vpack.c.b16 %v1041, %v1038
    %v1177 = vpack.c.b16 %v1042, %v1039
    %v1178 = vpack.c.b16 %v1046, %v1043
    %v1179 = vpack.c.b16 %v1047, %v1044
    %v1180 = vpack.c.b16 %v1048, %v1045
    %v1181 = vpack.c.b16 %v1052, %v1049
    %v1182 = vpack.c.b16 %v1053, %v1050
    %v1183 = vpack.c.b16 %v1054, %v1051
    %v1184 = vpack.c.b16 %v1058, %v1055
    %v1185 = vpack.c.b16 %v1059, %v1056
    %v1186 = vpack.c.b16 %v1060, %v1057
    %v1187 = vpack.c.b16 %v1064, %v1061
    %v1188 = vpack.c.b16 %v1065, %v1062
    %v1189 = vpack.c.b16 %v1066, %v1063
    %v1190 = vpack.c.b16 %v1070, %v1067
    %v1191 = vpack.c.b16 %v1071, %v1068
    %v1192 = vpack.c.b16 %v1072, %v1069
    %v1193 = vpack.c.b16 %v1076, %v1073
    %v1194 = vpack.c.b16 %v1077, %v1074
    %v1195 = vpack.c.b16 %v1078, %v1075
    %v1196 = vpack.c.b16 %v1082, %v1079
    %v1197 = vpack.c.b16 %v1083, %v1080
    %v1198 = vpack.c.b16 %v1084, %v1081
    %v1199 = vpack.c.b16 %v1088, %v1085
    %v1200 = vpack.c.b16 %v1089, %v1086
    %v1201 = vpack.c.b16 %v1090, %v1087
    %v1202 = vpack.c.b16 %v1094, %v1091
    %v1203 = vpack.c.b16 %v1095, %v1092
    %v1204 = vpack.c.b16 %v1096, %v1093
    %v1205 = vpack.c.b16 %v1100, %v1097
    %v1206 = vpack.c.b16 %v1101, %v1098
    %v1207 = vpack.c.b16 %v1102, %v1099
    %v1208 = vpack.c.b16 %v1106, %v1103
    %v1209 = vpack.c.b16 %v1107, %v1104
    %v1210 = vpack.c.b16 %v1108, %v1105
    %v1211 = vpack.c.b16 %v1112, %v1109
    %v1212 = vpack.c.b16 %v1113, %v1110
    %v1213 = vpack.c.b16 %v1114, %v1111
    %v1214 = vpack.c.b16 %v1118, %v1115
    %v1215 = vpack.c.b16 %v1119, %v1116
    %v1216 = vpack.c.b16 %v1120, %v1117
    %v1217 = vpack.c.b16 %v1124, %v1121
    %v1218 = vpack.c.b16 %v1125, %v1122
    %v1219 = vpack.c.b16 %v1126, %v1123
    %v1220 = vpack.c.b16 %v1130, %v1127
    %v1221 = vpack.c.b16 %v1131, %v1128
    %v1222 = vpack.c.b16 %v1132, %v1129
    %v1223 = vpack.c.b16 %v1136, %v1133
    %v1224 = vpack.c.b16 %v1137, %v1134
    %v1225 = vpack.c.b16 %v1138, %v1135
    %v1226 = vpack.c.b16 %v1142, %v1139
    %v1227 = vpack.c.b16 %v1143, %v1140
    %v1228 = vpack.c.b16 %v1144, %v1141
    %v1229 = vpack.c.b16 %v1148, %v1145
    %v1230 = vpack.c.b16 %v1149, %v1146
    %v1231 = vpack.c.b16 %v1150, %v1147
    %v1232 = vpack.c.b16 %v1154, %v1151
    %v1233 = vpack.c.b16 %v1155, %v1152
    %v1234 = vpack.c.b16 %v1156, %v1153
    %v1235 = vpack.c.b16 %v1160, %v1157
    %v1236 = vpack.c.b16 %v1161, %v1158
    %v1237 = vpack.c.b16 %v1162, %v1159
    %v1238 = vpack.c.b16 %v1166, %v1163
    %v1239 = vpack.c.b16 %v1167, %v1164
    %v1240 = vpack.c.b16 %v1168, %v1165
    %1313 = vmatpush.bf16.msra.mxu0 %v1190
    %1314 = vmatpush.bf16.msra.mxu0 %v1187
    %1315 = vmatpush.bf16.msra.mxu0 %v1184
    %1316 = vmatpush.bf16.msra.mxu0 %v1181
    %1317 = vmatpush.bf16.msra.mxu0 %v1178
    %1318 = vmatpush.bf16.msra.mxu0 %v1175
    %1319 = vmatpush.bf16.msra.mxu0 %v1172
    %1320 = vmatpush.bf16.msra.mxu0 %v1169
    %1321 = vmatmul.bf16.gmra.mxu0 %v335
    %v1322 = vpop.f32.mrf.mxu0
    %v1323 = vadd.f32 %v923, %v1322
    %v1324 = vpop.f32.mrf.mxu0
    %v1325 = vadd.f32 %v920, %v1324
    %1326 = vmatmul.bf16.gmra.mxu0 %v338
    %v1327 = vpop.f32.mrf.mxu0
    %v1328 = vadd.f32 %v917, %v1327
    %v1329 = vpop.f32.mrf.mxu0
    %v1330 = vadd.f32 %v926, %v1329
    %1331 = vdwg.mxu0
    %1332 = vmatpush.bf16.msra.mxu0 %v1214
    %1333 = vmatpush.bf16.msra.mxu0 %v1211
    %1334 = vmatpush.bf16.msra.mxu0 %v1208
    %1335 = vmatpush.bf16.msra.mxu0 %v1205
    %1336 = vmatpush.bf16.msra.mxu0 %v1202
    %1337 = vmatpush.bf16.msra.mxu0 %v1199
    %1338 = vmatpush.bf16.msra.mxu0 %v1196
    %1339 = vmatpush.bf16.msra.mxu0 %v1193
    %1340 = vmatmul.bf16.gmra.mxu0 %v336
    %v1341 = vpop.f32.mrf.mxu0
    %v1342 = vadd.f32 %v1323, %v1341
    %v1343 = vpop.f32.mrf.mxu0
    %v1344 = vadd.f32 %v1325, %v1343
    %1345 = vmatmul.bf16.gmra.mxu0 %v339
    %v1346 = vpop.f32.mrf.mxu0
    %v1347 = vadd.f32 %v1328, %v1346
    %v1348 = vpop.f32.mrf.mxu0
    %v1349 = vadd.f32 %v1330, %v1348
    %1350 = vdwg.mxu0
    %1351 = vmatpush.bf16.msra.mxu0 %v1238
    %1352 = vmatpush.bf16.msra.mxu0 %v1235
    %1353 = vmatpush.bf16.msra.mxu0 %v1232
    %1354 = vmatpush.bf16.msra.mxu0 %v1229
    %1355 = vmatpush.bf16.msra.mxu0 %v1226
    %1356 = vmatpush.bf16.msra.mxu0 %v1223
    %1357 = vmatpush.bf16.msra.mxu0 %v1220
    %1358 = vmatpush.bf16.msra.mxu0 %v1217
    %1359 = vmatmul.bf16.gmra.mxu0 %v337
    %v1360 = vpop.f32.mrf.mxu0
    %v1361 = vadd.f32 %v1342, %v1360
    %v1362 = vpop.f32.mrf.mxu0
    %v1363 = vadd.f32 %v1344, %v1362
    %1364 = vmatmul.bf16.gmra.mxu0 %v340
    %v1365 = vpop.f32.mrf.mxu0
    %v1366 = vadd.f32 %v1347, %v1365
    %v1367 = vpop.f32.mrf.mxu0
    %v1368 = vadd.f32 %v1349, %v1367
    %1369 = vdwg.mxu0
    %1370 = vmatpush.bf16.msra.mxu0 %v1191
    %1371 = vmatpush.bf16.msra.mxu0 %v1188
    %1372 = vmatpush.bf16.msra.mxu0 %v1185
    %1373 = vmatpush.bf16.msra.mxu0 %v1182
    %1374 = vmatpush.bf16.msra.mxu0 %v1179
    %1375 = vmatpush.bf16.msra.mxu0 %v1176
    %1376 = vmatpush.bf16.msra.mxu0 %v1173
    %1377 = vmatpush.bf16.msra.mxu0 %v1170
    %1378 = vmatmul.bf16.gmra.mxu0 %v335
    %v1379 = vpop.f32.mrf.mxu0
    %v1380 = vadd.f32 %v924, %v1379
    %v1381 = vpop.f32.mrf.mxu0
    %v1382 = vadd.f32 %v921, %v1381
    %1383 = vmatmul.bf16.gmra.mxu0 %v338
    %v1384 = vpop.f32.mrf.mxu0
    %v1385 = vadd.f32 %v918, %v1384
    %v1386 = vpop.f32.mrf.mxu0
    %v1387 = vadd.f32 %v927, %v1386
    %1388 = vdwg.mxu0
    %1389 = vmatpush.bf16.msra.mxu0 %v1215
    %1390 = vmatpush.bf16.msra.mxu0 %v1212
    %1391 = vmatpush.bf16.msra.mxu0 %v1209
    %1392 = vmatpush.bf16.msra.mxu0 %v1206
    %1393 = vmatpush.bf16.msra.mxu0 %v1203
    %1394 = vmatpush.bf16.msra.mxu0 %v1200
    %1395 = vmatpush.bf16.msra.mxu0 %v1197
    %1396 = vmatpush.bf16.msra.mxu0 %v1194
    %1397 = vmatmul.bf16.gmra.mxu0 %v336
    %v1398 = vpop.f32.mrf.mxu0
    %v1399 = vadd.f32 %v1380, %v1398
    %v1400 = vpop.f32.mrf.mxu0
    %v1401 = vadd.f32 %v1382, %v1400
    %1402 = vmatmul.bf16.gmra.mxu0 %v339
    %v1403 = vpop.f32.mrf.mxu0
    %v1404 = vadd.f32 %v1385, %v1403
    %v1405 = vpop.f32.mrf.mxu0
    %v1406 = vadd.f32 %v1387, %v1405
    %1407 = vdwg.mxu0
    %1408 = vmatpush.bf16.msra.mxu0 %v1239
    %1409 = vmatpush.bf16.msra.mxu0 %v1236
    %1410 = vmatpush.bf16.msra.mxu0 %v1233
    %1411 = vmatpush.bf16.msra.mxu0 %v1230
    %1412 = vmatpush.bf16.msra.mxu0 %v1227
    %1413 = vmatpush.bf16.msra.mxu0 %v1224
    %1414 = vmatpush.bf16.msra.mxu0 %v1221
    %1415 = vmatpush.bf16.msra.mxu0 %v1218
    %1416 = vmatmul.bf16.gmra.mxu0 %v337
    %v1417 = vpop.f32.mrf.mxu0
    %v1418 = vadd.f32 %v1399, %v1417
    %v1419 = vpop.f32.mrf.mxu0
    %v1420 = vadd.f32 %v1401, %v1419
    %1421 = vmatmul.bf16.gmra.mxu0 %v340
    %v1422 = vpop.f32.mrf.mxu0
    %v1423 = vadd.f32 %v1404, %v1422
    %v1424 = vpop.f32.mrf.mxu0
    %v1425 = vadd.f32 %v1406, %v1424
    %1426 = vdwg.mxu0
    %1427 = vmatpush.bf16.msra.mxu0 %v1192
    %1428 = vmatpush.bf16.msra.mxu0 %v1189
    %1429 = vmatpush.bf16.msra.mxu0 %v1186
    %1430 = vmatpush.bf16.msra.mxu0 %v1183
    %1431 = vmatpush.bf16.msra.mxu0 %v1180
    %1432 = vmatpush.bf16.msra.mxu0 %v1177
    %1433 = vmatpush.bf16.msra.mxu0 %v1174
    %1434 = vmatpush.bf16.msra.mxu0 %v1171
    %1435 = vmatmul.bf16.gmra.mxu0 %v335
    %v1436 = vpop.f32.mrf.mxu0
    %v1437 = vadd.f32 %v925, %v1436
    %v1438 = vpop.f32.mrf.mxu0
    %v1439 = vadd.f32 %v922, %v1438
    %1440 = vmatmul.bf16.gmra.mxu0 %v338
    %v1441 = vpop.f32.mrf.mxu0
    %v1442 = vadd.f32 %v919, %v1441
    %v1443 = vpop.f32.mrf.mxu0
    %v1444 = vadd.f32 %v928, %v1443
    %1445 = vdwg.mxu0
    %1446 = vmatpush.bf16.msra.mxu0 %v1216
    %1447 = vmatpush.bf16.msra.mxu0 %v1213
    %1448 = vmatpush.bf16.msra.mxu0 %v1210
    %1449 = vmatpush.bf16.msra.mxu0 %v1207
    %1450 = vmatpush.bf16.msra.mxu0 %v1204
    %1451 = vmatpush.bf16.msra.mxu0 %v1201
    %1452 = vmatpush.bf16.msra.mxu0 %v1198
    %1453 = vmatpush.bf16.msra.mxu0 %v1195
    %1454 = vmatmul.bf16.gmra.mxu0 %v336
    %v1455 = vpop.f32.mrf.mxu0
    %v1456 = vadd.f32 %v1437, %v1455
    %v1457 = vpop.f32.mrf.mxu0
    %v1458 = vadd.f32 %v1439, %v1457
    %1459 = vmatmul.bf16.gmra.mxu0 %v339
    %v1460 = vpop.f32.mrf.mxu0
    %v1461 = vadd.f32 %v1442, %v1460
    %v1462 = vpop.f32.mrf.mxu0
    %v1463 = vadd.f32 %v1444, %v1462
    %1464 = vdwg.mxu0
    %1465 = vmatpush.bf16.msra.mxu0 %v1240
    %1466 = vmatpush.bf16.msra.mxu0 %v1237
    %1467 = vmatpush.bf16.msra.mxu0 %v1234
    %1468 = vmatpush.bf16.msra.mxu0 %v1231
    %1469 = vmatpush.bf16.msra.mxu0 %v1228
    %1470 = vmatpush.bf16.msra.mxu0 %v1225
    %1471 = vmatpush.bf16.msra.mxu0 %v1222
    %1472 = vmatpush.bf16.msra.mxu0 %v1219
    %1473 = vmatmul.bf16.gmra.mxu0 %v337
    %v1474 = vpop.f32.mrf.mxu0
    %v1475 = vadd.f32 %v1456, %v1474
    %v1476 = vpop.f32.mrf.mxu0
    %v1477 = vadd.f32 %v1458, %v1476
    %1478 = vmatmul.bf16.gmra.mxu0 %v340
    %v1479 = vpop.f32.mrf.mxu0
    %v1480 = vadd.f32 %v1461, %v1479
    %v1481 = vpop.f32.mrf.mxu0
    %v1482 = vadd.f32 %v1463, %v1481
    %1483 = vdwg.mxu0
    %s1484 = scalar_lea.vmem [#allocation5], 1152
    %v1485 = vld [vmem:[%s1484] sm:$0xff]
    %v1486 = vld [vmem:[%s1484 + $0x8] sm:$0xf]
    %v1487 = vld [vmem:[%s1484 + $0xc] sm:$0xff]
    %v1488 = vld [vmem:[%s1484 + $0x14] sm:$0xf]
    %v1489 = vld [vmem:[%s1484 + $0x18] sm:$0xff]
    %v1490 = vld [vmem:[%s1484 + $0x20] sm:$0xf]
    %v1491 = vld [vmem:[%s1484 + $0x24] sm:$0xff]
    %v1492 = vld [vmem:[%s1484 + $0x2c] sm:$0xf]
    %v1493 = vld [vmem:[%s1484 + $0x30] sm:$0xff]
    %v1494 = vld [vmem:[%s1484 + $0x38] sm:$0xf]
    %v1495 = vld [vmem:[%s1484 + $0x3c] sm:$0xff]
    %v1496 = vld [vmem:[%s1484 + $0x44] sm:$0xf]
    %v1497 = vld [vmem:[%s1484 + $0x48] sm:$0xff]
    %v1498 = vld [vmem:[%s1484 + $0x50] sm:$0xf]
    %v1499 = vld [vmem:[%s1484 + $0x54] sm:$0xff]
    %v1500 = vld [vmem:[%s1484 + $0x5c] sm:$0xf]
    %v1501 = vld [vmem:[%s1484 + $0x60] sm:$0xff]
    %v1502 = vld [vmem:[%s1484 + $0x68] sm:$0xf]
    %v1503 = vld [vmem:[%s1484 + $0x6c] sm:$0xff]
    %v1504 = vld [vmem:[%s1484 + $0x74] sm:$0xf]
    %v1505 = vld [vmem:[%s1484 + $0x78] sm:$0xff]
    %v1506 = vld [vmem:[%s1484 + $0x80] sm:$0xf]
    %v1507 = vld [vmem:[%s1484 + $0x84] sm:$0xff]
    %v1508 = vld [vmem:[%s1484 + $0x8c] sm:$0xf]
    %v1509 = vld [vmem:[%s1484 + $0x90] sm:$0xff]
    %v1510 = vld [vmem:[%s1484 + $0x98] sm:$0xf]
    %v1511 = vld [vmem:[%s1484 + $0x9c] sm:$0xff]
    %v1512 = vld [vmem:[%s1484 + $0xa4] sm:$0xf]
    %v1513 = vld [vmem:[%s1484 + $0xa8] sm:$0xff]
    %v1514 = vld [vmem:[%s1484 + $0xb0] sm:$0xf]
    %v1515 = vld [vmem:[%s1484 + $0xb4] sm:$0xff]
    %v1516 = vld [vmem:[%s1484 + $0xbc] sm:$0xf]
    %v1517 = vld [vmem:[%s1484 + $0xc0] sm:$0xff]
    %v1518 = vld [vmem:[%s1484 + $0xc8] sm:$0xf]
    %v1519 = vld [vmem:[%s1484 + $0xcc] sm:$0xff]
    %v1520 = vld [vmem:[%s1484 + $0xd4] sm:$0xf]
    %v1521 = vld [vmem:[%s1484 + $0xd8] sm:$0xff]
    %v1522 = vld [vmem:[%s1484 + $0xe0] sm:$0xf]
    %v1523 = vld [vmem:[%s1484 + $0xe4] sm:$0xff]
    %v1524 = vld [vmem:[%s1484 + $0xec] sm:$0xf]
    %v1525 = vld [vmem:[%s1484 + $0xf0] sm:$0xff]
    %v1526 = vld [vmem:[%s1484 + $0xf8] sm:$0xf]
    %v1527 = vld [vmem:[%s1484 + $0xfc] sm:$0xff]
    %v1528 = vld [vmem:[%s1484 + $0x104] sm:$0xf]
    %v1529 = vld [vmem:[%s1484 + $0x108] sm:$0xff]
    %v1530 = vld [vmem:[%s1484 + $0x110] sm:$0xf]
    %v1531 = vld [vmem:[%s1484 + $0x114] sm:$0xff]
    %v1532 = vld [vmem:[%s1484 + $0x11c] sm:$0xf]
    %v1533 = vld [vmem:[%s1484 + $0x120] sm:$0xff]
    %v1534 = vld [vmem:[%s1484 + $0x128] sm:$0xf]
    %v1535 = vld [vmem:[%s1484 + $0x12c] sm:$0xff]
    %v1536 = vld [vmem:[%s1484 + $0x134] sm:$0xf]
    %v1537 = vld [vmem:[%s1484 + $0x138] sm:$0xff]
    %v1538 = vld [vmem:[%s1484 + $0x140] sm:$0xf]
    %v1539 = vld [vmem:[%s1484 + $0x144] sm:$0xff]
    %v1540 = vld [vmem:[%s1484 + $0x14c] sm:$0xf]
    %v1541 = vld [vmem:[%s1484 + $0x150] sm:$0xff]
    %v1542 = vld [vmem:[%s1484 + $0x158] sm:$0xf]
    %v1543 = vld [vmem:[%s1484 + $0x15c] sm:$0xff]
    %v1544 = vld [vmem:[%s1484 + $0x164] sm:$0xf]
    %v1545 = vld [vmem:[%s1484 + $0x168] sm:$0xff]
    %v1546 = vld [vmem:[%s1484 + $0x170] sm:$0xf]
    %v1547 = vld [vmem:[%s1484 + $0x174] sm:$0xff]
    %v1548 = vld [vmem:[%s1484 + $0x17c] sm:$0xf]
    %v1549 = vld [vmem:[%s1484 + $0x180] sm:$0xff]
    %v1550 = vld [vmem:[%s1484 + $0x188] sm:$0xf]
    %v1551 = vld [vmem:[%s1484 + $0x18c] sm:$0xff]
    %v1552 = vld [vmem:[%s1484 + $0x194] sm:$0xf]
    %v1553 = vld [vmem:[%s1484 + $0x198] sm:$0xff]
    %v1554 = vld [vmem:[%s1484 + $0x1a0] sm:$0xf]
    %v1555 = vld [vmem:[%s1484 + $0x1a4] sm:$0xff]
    %v1556 = vld [vmem:[%s1484 + $0x1ac] sm:$0xf]
    %v1557 = vld [vmem:[%s1484 + $0x1b0] sm:$0xff]
    %v1558 = vld [vmem:[%s1484 + $0x1b8] sm:$0xf]
    %v1559 = vld [vmem:[%s1484 + $0x1bc] sm:$0xff]
    %v1560 = vld [vmem:[%s1484 + $0x1c4] sm:$0xf]
    %v1561 = vld [vmem:[%s1484 + $0x1c8] sm:$0xff]
    %v1562 = vld [vmem:[%s1484 + $0x1d0] sm:$0xf]
    %v1563 = vld [vmem:[%s1484 + $0x1d4] sm:$0xff]
    %v1564 = vld [vmem:[%s1484 + $0x1dc] sm:$0xf]
    %v1565 = vld [vmem:[%s1484 + $0x1e0] sm:$0xff]
    %v1566 = vld [vmem:[%s1484 + $0x1e8] sm:$0xf]
    %v1567 = vld [vmem:[%s1484 + $0x1ec] sm:$0xff]
    %v1568 = vld [vmem:[%s1484 + $0x1f4] sm:$0xf]
    %v1569 = vld [vmem:[%s1484 + $0x1f8] sm:$0xff]
    %v1570 = vld [vmem:[%s1484 + $0x200] sm:$0xf]
    %v1571 = vld [vmem:[%s1484 + $0x204] sm:$0xff]
    %v1572 = vld [vmem:[%s1484 + $0x20c] sm:$0xf]
    %v1573 = vld [vmem:[%s1484 + $0x210] sm:$0xff]
    %v1574 = vld [vmem:[%s1484 + $0x218] sm:$0xf]
    %v1575 = vld [vmem:[%s1484 + $0x21c] sm:$0xff]
    %v1576 = vld [vmem:[%s1484 + $0x224] sm:$0xf]
    %v1577 = vld [vmem:[%s1484 + $0x228] sm:$0xff]
    %v1578 = vld [vmem:[%s1484 + $0x230] sm:$0xf]
    %v1579 = vld [vmem:[%s1484 + $0x234] sm:$0xff]
    %v1580 = vld [vmem:[%s1484 + $0x23c] sm:$0xf]
    %v1677 = vunpack.c.l.b16 %v1485
    %v1678 = vunpack.c.h.b16 %v1485
    %v1679 = vunpack.c.l.b16 %v1486
    %v1680 = vunpack.c.l.b16 %v1487
    %v1681 = vunpack.c.h.b16 %v1487
    %v1682 = vunpack.c.l.b16 %v1488
    %v1683 = vunpack.c.l.b16 %v1489
    %v1684 = vunpack.c.h.b16 %v1489
    %v1685 = vunpack.c.l.b16 %v1490
    %v1686 = vunpack.c.l.b16 %v1491
    %v1687 = vunpack.c.h.b16 %v1491
    %v1688 = vunpack.c.l.b16 %v1492
    %v1689 = vunpack.c.l.b16 %v1493
    %v1690 = vunpack.c.h.b16 %v1493
    %v1691 = vunpack.c.l.b16 %v1494
    %v1692 = vunpack.c.l.b16 %v1495
    %v1693 = vunpack.c.h.b16 %v1495
    %v1694 = vunpack.c.l.b16 %v1496
    %v1695 = vunpack.c.l.b16 %v1497
    %v1696 = vunpack.c.h.b16 %v1497
    %v1697 = vunpack.c.l.b16 %v1498
    %v1698 = vunpack.c.l.b16 %v1499
    %v1699 = vunpack.c.h.b16 %v1499
    %v1700 = vunpack.c.l.b16 %v1500
    %v1701 = vunpack.c.l.b16 %v1501
    %v1702 = vunpack.c.h.b16 %v1501
    %v1703 = vunpack.c.l.b16 %v1502
    %v1704 = vunpack.c.l.b16 %v1503
    %v1705 = vunpack.c.h.b16 %v1503
    %v1706 = vunpack.c.l.b16 %v1504
    %v1707 = vunpack.c.l.b16 %v1505
    %v1708 = vunpack.c.h.b16 %v1505
    %v1709 = vunpack.c.l.b16 %v1506
    %v1710 = vunpack.c.l.b16 %v1507
    %v1711 = vunpack.c.h.b16 %v1507
    %v1712 = vunpack.c.l.b16 %v1508
    %v1713 = vunpack.c.l.b16 %v1509
    %v1714 = vunpack.c.h.b16 %v1509
    %v1715 = vunpack.c.l.b16 %v1510
    %v1716 = vunpack.c.l.b16 %v1511
    %v1717 = vunpack.c.h.b16 %v1511
    %v1718 = vunpack.c.l.b16 %v1512
    %v1719 = vunpack.c.l.b16 %v1513
    %v1720 = vunpack.c.h.b16 %v1513
    %v1721 = vunpack.c.l.b16 %v1514
    %v1722 = vunpack.c.l.b16 %v1515
    %v1723 = vunpack.c.h.b16 %v1515
    %v1724 = vunpack.c.l.b16 %v1516
    %v1725 = vunpack.c.l.b16 %v1517
    %v1726 = vunpack.c.h.b16 %v1517
    %v1727 = vunpack.c.l.b16 %v1518
    %v1728 = vunpack.c.l.b16 %v1519
    %v1729 = vunpack.c.h.b16 %v1519
    %v1730 = vunpack.c.l.b16 %v1520
    %v1731 = vunpack.c.l.b16 %v1521
    %v1732 = vunpack.c.h.b16 %v1521
    %v1733 = vunpack.c.l.b16 %v1522
    %v1734 = vunpack.c.l.b16 %v1523
    %v1735 = vunpack.c.h.b16 %v1523
    %v1736 = vunpack.c.l.b16 %v1524
    %v1737 = vunpack.c.l.b16 %v1525
    %v1738 = vunpack.c.h.b16 %v1525
    %v1739 = vunpack.c.l.b16 %v1526
    %v1740 = vunpack.c.l.b16 %v1527
    %v1741 = vunpack.c.h.b16 %v1527
    %v1742 = vunpack.c.l.b16 %v1528
    %v1743 = vunpack.c.l.b16 %v1529
    %v1744 = vunpack.c.h.b16 %v1529
    %v1745 = vunpack.c.l.b16 %v1530
    %v1746 = vunpack.c.l.b16 %v1531
    %v1747 = vunpack.c.h.b16 %v1531
    %v1748 = vunpack.c.l.b16 %v1532
    %v1749 = vunpack.c.l.b16 %v1533
    %v1750 = vunpack.c.h.b16 %v1533
    %v1751 = vunpack.c.l.b16 %v1534
    %v1752 = vunpack.c.l.b16 %v1535
    %v1753 = vunpack.c.h.b16 %v1535
    %v1754 = vunpack.c.l.b16 %v1536
    %v1755 = vunpack.c.l.b16 %v1537
    %v1756 = vunpack.c.h.b16 %v1537
    %v1757 = vunpack.c.l.b16 %v1538
    %v1758 = vunpack.c.l.b16 %v1539
    %v1759 = vunpack.c.h.b16 %v1539
    %v1760 = vunpack.c.l.b16 %v1540
    %v1761 = vunpack.c.l.b16 %v1541
    %v1762 = vunpack.c.h.b16 %v1541
    %v1763 = vunpack.c.l.b16 %v1542
    %v1764 = vunpack.c.l.b16 %v1543
    %v1765 = vunpack.c.h.b16 %v1543
    %v1766 = vunpack.c.l.b16 %v1544
    %v1767 = vunpack.c.l.b16 %v1545
    %v1768 = vunpack.c.h.b16 %v1545
    %v1769 = vunpack.c.l.b16 %v1546
    %v1770 = vunpack.c.l.b16 %v1547
    %v1771 = vunpack.c.h.b16 %v1547
    %v1772 = vunpack.c.l.b16 %v1548
    %v1773 = vunpack.c.l.b16 %v1549
    %v1774 = vunpack.c.h.b16 %v1549
    %v1775 = vunpack.c.l.b16 %v1550
    %v1776 = vunpack.c.l.b16 %v1551
    %v1777 = vunpack.c.h.b16 %v1551
    %v1778 = vunpack.c.l.b16 %v1552
    %v1779 = vunpack.c.l.b16 %v1553
    %v1780 = vunpack.c.h.b16 %v1553
    %v1781 = vunpack.c.l.b16 %v1554
    %v1782 = vunpack.c.l.b16 %v1555
    %v1783 = vunpack.c.h.b16 %v1555
    %v1784 = vunpack.c.l.b16 %v1556
    %v1785 = vunpack.c.l.b16 %v1557
    %v1786 = vunpack.c.h.b16 %v1557
    %v1787 = vunpack.c.l.b16 %v1558
    %v1788 = vunpack.c.l.b16 %v1559
    %v1789 = vunpack.c.h.b16 %v1559
    %v1790 = vunpack.c.l.b16 %v1560
    %v1791 = vunpack.c.l.b16 %v1561
    %v1792 = vunpack.c.h.b16 %v1561
    %v1793 = vunpack.c.l.b16 %v1562
    %v1794 = vunpack.c.l.b16 %v1563
    %v1795 = vunpack.c.h.b16 %v1563
    %v1796 = vunpack.c.l.b16 %v1564
    %v1797 = vunpack.c.l.b16 %v1565
    %v1798 = vunpack.c.h.b16 %v1565
    %v1799 = vunpack.c.l.b16 %v1566
    %v1800 = vunpack.c.l.b16 %v1567
    %v1801 = vunpack.c.h.b16 %v1567
    %v1802 = vunpack.c.l.b16 %v1568
    %v1803 = vunpack.c.l.b16 %v1569
    %v1804 = vunpack.c.h.b16 %v1569
    %v1805 = vunpack.c.l.b16 %v1570
    %v1806 = vunpack.c.l.b16 %v1571
    %v1807 = vunpack.c.h.b16 %v1571
    %v1808 = vunpack.c.l.b16 %v1572
    %v1809 = vunpack.c.l.b16 %v1573
    %v1810 = vunpack.c.h.b16 %v1573
    %v1811 = vunpack.c.l.b16 %v1574
    %v1812 = vunpack.c.l.b16 %v1575
    %v1813 = vunpack.c.h.b16 %v1575
    %v1814 = vunpack.c.l.b16 %v1576
    %v1815 = vunpack.c.l.b16 %v1577
    %v1816 = vunpack.c.h.b16 %v1577
    %v1817 = vunpack.c.l.b16 %v1578
    %v1818 = vunpack.c.l.b16 %v1579
    %v1819 = vunpack.c.h.b16 %v1579
    %v1820 = vunpack.c.l.b16 %v1580
    %v1821 = vpack.c.b16 %v1680, %v1677
    %v1822 = vpack.c.b16 %v1681, %v1678
    %v1823 = vpack.c.b16 %v1682, %v1679
    %v1824 = vpack.c.b16 %v1686, %v1683
    %v1825 = vpack.c.b16 %v1687, %v1684
    %v1826 = vpack.c.b16 %v1688, %v1685
    %v1827 = vpack.c.b16 %v1692, %v1689
    %v1828 = vpack.c.b16 %v1693, %v1690
    %v1829 = vpack.c.b16 %v1694, %v1691
    %v1830 = vpack.c.b16 %v1698, %v1695
    %v1831 = vpack.c.b16 %v1699, %v1696
    %v1832 = vpack.c.b16 %v1700, %v1697
    %v1833 = vpack.c.b16 %v1704, %v1701
    %v1834 = vpack.c.b16 %v1705, %v1702
    %v1835 = vpack.c.b16 %v1706, %v1703
    %v1836 = vpack.c.b16 %v1710, %v1707
    %v1837 = vpack.c.b16 %v1711, %v1708
    %v1838 = vpack.c.b16 %v1712, %v1709
    %v1839 = vpack.c.b16 %v1716, %v1713
    %v1840 = vpack.c.b16 %v1717, %v1714
    %v1841 = vpack.c.b16 %v1718, %v1715
    %v1842 = vpack.c.b16 %v1722, %v1719
    %v1843 = vpack.c.b16 %v1723, %v1720
    %v1844 = vpack.c.b16 %v1724, %v1721
    %v1845 = vpack.c.b16 %v1728, %v1725
    %v1846 = vpack.c.b16 %v1729, %v1726
    %v1847 = vpack.c.b16 %v1730, %v1727
    %v1848 = vpack.c.b16 %v1734, %v1731
    %v1849 = vpack.c.b16 %v1735, %v1732
    %v1850 = vpack.c.b16 %v1736, %v1733
    %v1851 = vpack.c.b16 %v1740, %v1737
    %v1852 = vpack.c.b16 %v1741, %v1738
    %v1853 = vpack.c.b16 %v1742, %v1739
    %v1854 = vpack.c.b16 %v1746, %v1743
    %v1855 = vpack.c.b16 %v1747, %v1744
    %v1856 = vpack.c.b16 %v1748, %v1745
    %v1857 = vpack.c.b16 %v1752, %v1749
    %v1858 = vpack.c.b16 %v1753, %v1750
    %v1859 = vpack.c.b16 %v1754, %v1751
    %v1860 = vpack.c.b16 %v1758, %v1755
    %v1861 = vpack.c.b16 %v1759, %v1756
    %v1862 = vpack.c.b16 %v1760, %v1757
    %v1863 = vpack.c.b16 %v1764, %v1761
    %v1864 = vpack.c.b16 %v1765, %v1762
    %v1865 = vpack.c.b16 %v1766, %v1763
    %v1866 = vpack.c.b16 %v1770, %v1767
    %v1867 = vpack.c.b16 %v1771, %v1768
    %v1868 = vpack.c.b16 %v1772, %v1769
    %v1869 = vpack.c.b16 %v1776, %v1773
    %v1870 = vpack.c.b16 %v1777, %v1774
    %v1871 = vpack.c.b16 %v1778, %v1775
    %v1872 = vpack.c.b16 %v1782, %v1779
    %v1873 = vpack.c.b16 %v1783, %v1780
    %v1874 = vpack.c.b16 %v1784, %v1781
    %v1875 = vpack.c.b16 %v1788, %v1785
    %v1876 = vpack.c.b16 %v1789, %v1786
    %v1877 = vpack.c.b16 %v1790, %v1787
    %v1878 = vpack.c.b16 %v1794, %v1791
    %v1879 = vpack.c.b16 %v1795, %v1792
    %v1880 = vpack.c.b16 %v1796, %v1793
    %v1881 = vpack.c.b16 %v1800, %v1797
    %v1882 = vpack.c.b16 %v1801, %v1798
    %v1883 = vpack.c.b16 %v1802, %v1799
    %v1884 = vpack.c.b16 %v1806, %v1803
    %v1885 = vpack.c.b16 %v1807, %v1804
    %v1886 = vpack.c.b16 %v1808, %v1805
    %v1887 = vpack.c.b16 %v1812, %v1809
    %v1888 = vpack.c.b16 %v1813, %v1810
    %v1889 = vpack.c.b16 %v1814, %v1811
    %v1890 = vpack.c.b16 %v1818, %v1815
    %v1891 = vpack.c.b16 %v1819, %v1816
    %v1892 = vpack.c.b16 %v1820, %v1817
    %1965 = vmatpush.bf16.msra.mxu0 %v1842
    %1966 = vmatpush.bf16.msra.mxu0 %v1839
    %1967 = vmatpush.bf16.msra.mxu0 %v1836
    %1968 = vmatpush.bf16.msra.mxu0 %v1833
    %1969 = vmatpush.bf16.msra.mxu0 %v1830
    %1970 = vmatpush.bf16.msra.mxu0 %v1827
    %1971 = vmatpush.bf16.msra.mxu0 %v1824
    %1972 = vmatpush.bf16.msra.mxu0 %v1821
    %1973 = vmatmul.bf16.gmra.mxu0 %v335
    %v1974 = vpop.f32.mrf.mxu0
    %v1975 = vadd.f32 0.0, %v1974
    %v1976 = vpop.f32.mrf.mxu0
    %v1977 = vadd.f32 0.0, %v1976
    %1978 = vmatmul.bf16.gmra.mxu0 %v338
    %v1979 = vpop.f32.mrf.mxu0
    %v1980 = vadd.f32 0.0, %v1979
    %v1981 = vpop.f32.mrf.mxu0
    %v1982 = vadd.f32 0.0, %v1981
    %1983 = vdwg.mxu0
    %1984 = vmatpush.bf16.msra.mxu0 %v1866
    %1985 = vmatpush.bf16.msra.mxu0 %v1863
    %1986 = vmatpush.bf16.msra.mxu0 %v1860
    %1987 = vmatpush.bf16.msra.mxu0 %v1857
    %1988 = vmatpush.bf16.msra.mxu0 %v1854
    %1989 = vmatpush.bf16.msra.mxu0 %v1851
    %1990 = vmatpush.bf16.msra.mxu0 %v1848
    %1991 = vmatpush.bf16.msra.mxu0 %v1845
    %1992 = vmatmul.bf16.gmra.mxu0 %v336
    %v1993 = vpop.f32.mrf.mxu0
    %v1994 = vadd.f32 %v1975, %v1993
    %v1995 = vpop.f32.mrf.mxu0
    %v1996 = vadd.f32 %v1977, %v1995
    %1997 = vmatmul.bf16.gmra.mxu0 %v339
    %v1998 = vpop.f32.mrf.mxu0
    %v1999 = vadd.f32 %v1980, %v1998
    %v2000 = vpop.f32.mrf.mxu0
    %v2001 = vadd.f32 %v1982, %v2000
    %2002 = vdwg.mxu0
    %2003 = vmatpush.bf16.msra.mxu0 %v1890
    %2004 = vmatpush.bf16.msra.mxu0 %v1887
    %2005 = vmatpush.bf16.msra.mxu0 %v1884
    %2006 = vmatpush.bf16.msra.mxu0 %v1881
    %2007 = vmatpush.bf16.msra.mxu0 %v1878
    %2008 = vmatpush.bf16.msra.mxu0 %v1875
    %2009 = vmatpush.bf16.msra.mxu0 %v1872
    %2010 = vmatpush.bf16.msra.mxu0 %v1869
    %2011 = vmatmul.bf16.gmra.mxu0 %v337
    %v2012 = vpop.f32.mrf.mxu0
    %v2013 = vadd.f32 %v1994, %v2012
    %v2014 = vpop.f32.mrf.mxu0
    %v2015 = vadd.f32 %v1996, %v2014
    %2016 = vmatmul.bf16.gmra.mxu0 %v340
    %v2017 = vpop.f32.mrf.mxu0
    %v2018 = vadd.f32 %v1999, %v2017
    %v2019 = vpop.f32.mrf.mxu0
    %v2020 = vadd.f32 %v2001, %v2019
    %2021 = vdwg.mxu0
    %2022 = vmatpush.bf16.msra.mxu0 %v1843
    %2023 = vmatpush.bf16.msra.mxu0 %v1840
    %2024 = vmatpush.bf16.msra.mxu0 %v1837
    %2025 = vmatpush.bf16.msra.mxu0 %v1834
    %2026 = vmatpush.bf16.msra.mxu0 %v1831
    %2027 = vmatpush.bf16.msra.mxu0 %v1828
    %2028 = vmatpush.bf16.msra.mxu0 %v1825
    %2029 = vmatpush.bf16.msra.mxu0 %v1822
    %2030 = vmatmul.bf16.gmra.mxu0 %v335
    %v2031 = vpop.f32.mrf.mxu0
    %v2032 = vadd.f32 0.0, %v2031
    %v2033 = vpop.f32.mrf.mxu0
    %v2034 = vadd.f32 0.0, %v2033
    %2035 = vmatmul.bf16.gmra.mxu0 %v338
    %v2036 = vpop.f32.mrf.mxu0
    %v2037 = vadd.f32 0.0, %v2036
    %v2038 = vpop.f32.mrf.mxu0
    %v2039 = vadd.f32 0.0, %v2038
    %2040 = vdwg.mxu0
    %2041 = vmatpush.bf16.msra.mxu0 %v1867
    %2042 = vmatpush.bf16.msra.mxu0 %v1864
    %2043 = vmatpush.bf16.msra.mxu0 %v1861
    %2044 = vmatpush.bf16.msra.mxu0 %v1858
    %2045 = vmatpush.bf16.msra.mxu0 %v1855
    %2046 = vmatpush.bf16.msra.mxu0 %v1852
    %2047 = vmatpush.bf16.msra.mxu0 %v1849
    %2048 = vmatpush.bf16.msra.mxu0 %v1846
    %2049 = vmatmul.bf16.gmra.mxu0 %v336
    %v2050 = vpop.f32.mrf.mxu0
    %v2051 = vadd.f32 %v2032, %v2050
    %v2052 = vpop.f32.mrf.mxu0
    %v2053 = vadd.f32 %v2034, %v2052
    %2054 = vmatmul.bf16.gmra.mxu0 %v339
    %v2055 = vpop.f32.mrf.mxu0
    %v2056 = vadd.f32 %v2037, %v2055
    %v2057 = vpop.f32.mrf.mxu0
    %v2058 = vadd.f32 %v2039, %v2057
    %2059 = vdwg.mxu0
    %2060 = vmatpush.bf16.msra.mxu0 %v1891
    %2061 = vmatpush.bf16.msra.mxu0 %v1888
    %2062 = vmatpush.bf16.msra.mxu0 %v1885
    %2063 = vmatpush.bf16.msra.mxu0 %v1882
    %2064 = vmatpush.bf16.msra.mxu0 %v1879
    %2065 = vmatpush.bf16.msra.mxu0 %v1876
    %2066 = vmatpush.bf16.msra.mxu0 %v1873
    %2067 = vmatpush.bf16.msra.mxu0 %v1870
    %2068 = vmatmul.bf16.gmra.mxu0 %v337
    %v2069 = vpop.f32.mrf.mxu0
    %v2070 = vadd.f32 %v2051, %v2069
    %v2071 = vpop.f32.mrf.mxu0
    %v2072 = vadd.f32 %v2053, %v2071
    %2073 = vmatmul.bf16.gmra.mxu0 %v340
    %v2074 = vpop.f32.mrf.mxu0
    %v2075 = vadd.f32 %v2056, %v2074
    %v2076 = vpop.f32.mrf.mxu0
    %v2077 = vadd.f32 %v2058, %v2076
    %2078 = vdwg.mxu0
    %2079 = vmatpush.bf16.msra.mxu0 %v1844
    %2080 = vmatpush.bf16.msra.mxu0 %v1841
    %2081 = vmatpush.bf16.msra.mxu0 %v1838
    %2082 = vmatpush.bf16.msra.mxu0 %v1835
    %2083 = vmatpush.bf16.msra.mxu0 %v1832
    %2084 = vmatpush.bf16.msra.mxu0 %v1829
    %2085 = vmatpush.bf16.msra.mxu0 %v1826
    %2086 = vmatpush.bf16.msra.mxu0 %v1823
    %2087 = vmatmul.bf16.gmra.mxu0 %v335
    %v2088 = vpop.f32.mrf.mxu0
    %v2089 = vadd.f32 0.0, %v2088
    %v2090 = vpop.f32.mrf.mxu0
    %v2091 = vadd.f32 0.0, %v2090
    %2092 = vmatmul.bf16.gmra.mxu0 %v338
    %v2093 = vpop.f32.mrf.mxu0
    %v2094 = vadd.f32 0.0, %v2093
    %v2095 = vpop.f32.mrf.mxu0
    %v2096 = vadd.f32 0.0, %v2095
    %2097 = vdwg.mxu0
    %2098 = vmatpush.bf16.msra.mxu0 %v1868
    %2099 = vmatpush.bf16.msra.mxu0 %v1865
    %2100 = vmatpush.bf16.msra.mxu0 %v1862
    %2101 = vmatpush.bf16.msra.mxu0 %v1859
    %2102 = vmatpush.bf16.msra.mxu0 %v1856
    %2103 = vmatpush.bf16.msra.mxu0 %v1853
    %2104 = vmatpush.bf16.msra.mxu0 %v1850
    %2105 = vmatpush.bf16.msra.mxu0 %v1847
    %2106 = vmatmul.bf16.gmra.mxu0 %v336
    %v2107 = vpop.f32.mrf.mxu0
    %v2108 = vadd.f32 %v2089, %v2107
    %v2109 = vpop.f32.mrf.mxu0
    %v2110 = vadd.f32 %v2091, %v2109
    %2111 = vmatmul.bf16.gmra.mxu0 %v339
    %v2112 = vpop.f32.mrf.mxu0
    %v2113 = vadd.f32 %v2094, %v2112
    %v2114 = vpop.f32.mrf.mxu0
    %v2115 = vadd.f32 %v2096, %v2114
    %2116 = vdwg.mxu0
    %2117 = vmatpush.bf16.msra.mxu0 %v1892
    %2118 = vmatpush.bf16.msra.mxu0 %v1889
    %2119 = vmatpush.bf16.msra.mxu0 %v1886
    %2120 = vmatpush.bf16.msra.mxu0 %v1883
    %2121 = vmatpush.bf16.msra.mxu0 %v1880
    %2122 = vmatpush.bf16.msra.mxu0 %v1877
    %2123 = vmatpush.bf16.msra.mxu0 %v1874
    %2124 = vmatpush.bf16.msra.mxu0 %v1871
    %2125 = vmatmul.bf16.gmra.mxu0 %v337
    %v2126 = vpop.f32.mrf.mxu0
    %v2127 = vadd.f32 %v2108, %v2126
    %v2128 = vpop.f32.mrf.mxu0
    %v2129 = vadd.f32 %v2110, %v2128
    %2130 = vmatmul.bf16.gmra.mxu0 %v340
    %v2131 = vpop.f32.mrf.mxu0
    %v2132 = vadd.f32 %v2113, %v2131
    %v2133 = vpop.f32.mrf.mxu0
    %v2134 = vadd.f32 %v2115, %v2133
    %2135 = vdwg.mxu0
    %v2136 = vrot.slane %v2013, 2
    %v2137 = vrot.slane %v2070, 2
    %v2138 = vrot.slane %v2127, 2
    %v2139 = vrot.slane %v2015, 2
    %v2140 = vrot.slane %v2072, 2
    %v2141 = vrot.slane %v2129, 2
    %v2142 = vrot.slane %v2018, 2
    %v2143 = vrot.slane %v2075, 2
    %v2144 = vrot.slane %v2132, 2
    %v2145 = vrot.slane %v2020, 2
    %v2146 = vrot.slane %v2077, 2
    %v2147 = vrot.slane %v2134, 2
    %vm2148 = vcmp.lt.s32.totalorder %v915, 6
    %v2149 = vsel %vm2148, %v2142, %v2145
    %v2150 = vsel %vm2148, %v2143, %v2146
    %v2151 = vsel %vm2148, %v2144, %v2147
    %v2152 = vsel %vm2148, %v2139, %v2142
    %v2153 = vsel %vm2148, %v2140, %v2143
    %v2154 = vsel %vm2148, %v2141, %v2144
    %v2155 = vsel %vm2148, %v2136, %v2139
    %v2156 = vsel %vm2148, %v2137, %v2140
    %v2157 = vsel %vm2148, %v2138, %v2141
    %v2158 = vsel %vm2148, %v2145, %v2136
    %v2159 = vsel %vm2148, %v2146, %v2137
    %v2160 = vsel %vm2148, %v2147, %v2138
    %v2161 = vadd.f32 %v1361, %v2155
    %v2162 = vadd.f32 %v1418, %v2156
    %v2163 = vadd.f32 %v1475, %v2157
    %v2164 = vadd.f32 %v1363, %v2152
    %v2165 = vadd.f32 %v1420, %v2153
    %v2166 = vadd.f32 %v1477, %v2154
    %v2167 = vadd.f32 %v1366, %v2149
    %v2168 = vadd.f32 %v1423, %v2150
    %v2169 = vadd.f32 %v1480, %v2151
    %v2170 = vadd.f32 %v1368, %v2158
    %v2171 = vadd.f32 %v1425, %v2159
    %v2172 = vadd.f32 %v1482, %v2160
    %s2173 = scalar_lea.vmem [#allocation5], 1728
    %v2174 = vld [vmem:[%s2173] sm:$0xff]
    %v2175 = vld [vmem:[%s2173 + $0x8] sm:$0xf]
    %v2176 = vld [vmem:[%s2173 + $0xc] sm:$0xff]
    %v2177 = vld [vmem:[%s2173 + $0x14] sm:$0xf]
    %v2178 = vld [vmem:[%s2173 + $0x18] sm:$0xff]
    %v2179 = vld [vmem:[%s2173 + $0x20] sm:$0xf]
    %v2180 = vld [vmem:[%s2173 + $0x24] sm:$0xff]
    %v2181 = vld [vmem:[%s2173 + $0x2c] sm:$0xf]
    %v2182 = vld [vmem:[%s2173 + $0x30] sm:$0xff]
    %v2183 = vld [vmem:[%s2173 + $0x38] sm:$0xf]
    %v2184 = vld [vmem:[%s2173 + $0x3c] sm:$0xff]
    %v2185 = vld [vmem:[%s2173 + $0x44] sm:$0xf]
    %v2186 = vld [vmem:[%s2173 + $0x48] sm:$0xff]
    %v2187 = vld [vmem:[%s2173 + $0x50] sm:$0xf]
    %v2188 = vld [vmem:[%s2173 + $0x54] sm:$0xff]
    %v2189 = vld [vmem:[%s2173 + $0x5c] sm:$0xf]
    %v2190 = vld [vmem:[%s2173 + $0x60] sm:$0xff]
    %v2191 = vld [vmem:[%s2173 + $0x68] sm:$0xf]
    %v2192 = vld [vmem:[%s2173 + $0x6c] sm:$0xff]
    %v2193 = vld [vmem:[%s2173 + $0x74] sm:$0xf]
    %v2194 = vld [vmem:[%s2173 + $0x78] sm:$0xff]
    %v2195 = vld [vmem:[%s2173 + $0x80] sm:$0xf]
    %v2196 = vld [vmem:[%s2173 + $0x84] sm:$0xff]
    %v2197 = vld [vmem:[%s2173 + $0x8c] sm:$0xf]
    %v2198 = vld [vmem:[%s2173 + $0x90] sm:$0xff]
    %v2199 = vld [vmem:[%s2173 + $0x98] sm:$0xf]
    %v2200 = vld [vmem:[%s2173 + $0x9c] sm:$0xff]
    %v2201 = vld [vmem:[%s2173 + $0xa4] sm:$0xf]
    %v2202 = vld [vmem:[%s2173 + $0xa8] sm:$0xff]
    %v2203 = vld [vmem:[%s2173 + $0xb0] sm:$0xf]
    %v2204 = vld [vmem:[%s2173 + $0xb4] sm:$0xff]
    %v2205 = vld [vmem:[%s2173 + $0xbc] sm:$0xf]
    %v2206 = vld [vmem:[%s2173 + $0xc0] sm:$0xff]
    %v2207 = vld [vmem:[%s2173 + $0xc8] sm:$0xf]
    %v2208 = vld [vmem:[%s2173 + $0xcc] sm:$0xff]
    %v2209 = vld [vmem:[%s2173 + $0xd4] sm:$0xf]
    %v2210 = vld [vmem:[%s2173 + $0xd8] sm:$0xff]
    %v2211 = vld [vmem:[%s2173 + $0xe0] sm:$0xf]
    %v2212 = vld [vmem:[%s2173 + $0xe4] sm:$0xff]
    %v2213 = vld [vmem:[%s2173 + $0xec] sm:$0xf]
    %v2214 = vld [vmem:[%s2173 + $0xf0] sm:$0xff]
    %v2215 = vld [vmem:[%s2173 + $0xf8] sm:$0xf]
    %v2216 = vld [vmem:[%s2173 + $0xfc] sm:$0xff]
    %v2217 = vld [vmem:[%s2173 + $0x104] sm:$0xf]
    %v2218 = vld [vmem:[%s2173 + $0x108] sm:$0xff]
    %v2219 = vld [vmem:[%s2173 + $0x110] sm:$0xf]
    %v2220 = vld [vmem:[%s2173 + $0x114] sm:$0xff]
    %v2221 = vld [vmem:[%s2173 + $0x11c] sm:$0xf]
    %v2222 = vld [vmem:[%s2173 + $0x120] sm:$0xff]
    %v2223 = vld [vmem:[%s2173 + $0x128] sm:$0xf]
    %v2224 = vld [vmem:[%s2173 + $0x12c] sm:$0xff]
    %v2225 = vld [vmem:[%s2173 + $0x134] sm:$0xf]
    %v2226 = vld [vmem:[%s2173 + $0x138] sm:$0xff]
    %v2227 = vld [vmem:[%s2173 + $0x140] sm:$0xf]
    %v2228 = vld [vmem:[%s2173 + $0x144] sm:$0xff]
    %v2229 = vld [vmem:[%s2173 + $0x14c] sm:$0xf]
    %v2230 = vld [vmem:[%s2173 + $0x150] sm:$0xff]
    %v2231 = vld [vmem:[%s2173 + $0x158] sm:$0xf]
    %v2232 = vld [vmem:[%s2173 + $0x15c] sm:$0xff]
    %v2233 = vld [vmem:[%s2173 + $0x164] sm:$0xf]
    %v2234 = vld [vmem:[%s2173 + $0x168] sm:$0xff]
    %v2235 = vld [vmem:[%s2173 + $0x170] sm:$0xf]
    %v2236 = vld [vmem:[%s2173 + $0x174] sm:$0xff]
    %v2237 = vld [vmem:[%s2173 + $0x17c] sm:$0xf]
    %v2238 = vld [vmem:[%s2173 + $0x180] sm:$0xff]
    %v2239 = vld [vmem:[%s2173 + $0x188] sm:$0xf]
    %v2240 = vld [vmem:[%s2173 + $0x18c] sm:$0xff]
    %v2241 = vld [vmem:[%s2173 + $0x194] sm:$0xf]
    %v2242 = vld [vmem:[%s2173 + $0x198] sm:$0xff]
    %v2243 = vld [vmem:[%s2173 + $0x1a0] sm:$0xf]
    %v2244 = vld [vmem:[%s2173 + $0x1a4] sm:$0xff]
    %v2245 = vld [vmem:[%s2173 + $0x1ac] sm:$0xf]
    %v2246 = vld [vmem:[%s2173 + $0x1b0] sm:$0xff]
    %v2247 = vld [vmem:[%s2173 + $0x1b8] sm:$0xf]
    %v2248 = vld [vmem:[%s2173 + $0x1bc] sm:$0xff]
    %v2249 = vld [vmem:[%s2173 + $0x1c4] sm:$0xf]
    %v2250 = vld [vmem:[%s2173 + $0x1c8] sm:$0xff]
    %v2251 = vld [vmem:[%s2173 + $0x1d0] sm:$0xf]
    %v2252 = vld [vmem:[%s2173 + $0x1d4] sm:$0xff]
    %v2253 = vld [vmem:[%s2173 + $0x1dc] sm:$0xf]
    %v2254 = vld [vmem:[%s2173 + $0x1e0] sm:$0xff]
    %v2255 = vld [vmem:[%s2173 + $0x1e8] sm:$0xf]
    %v2256 = vld [vmem:[%s2173 + $0x1ec] sm:$0xff]
    %v2257 = vld [vmem:[%s2173 + $0x1f4] sm:$0xf]
    %v2258 = vld [vmem:[%s2173 + $0x1f8] sm:$0xff]
    %v2259 = vld [vmem:[%s2173 + $0x200] sm:$0xf]
    %v2260 = vld [vmem:[%s2173 + $0x204] sm:$0xff]
    %v2261 = vld [vmem:[%s2173 + $0x20c] sm:$0xf]
    %v2262 = vld [vmem:[%s2173 + $0x210] sm:$0xff]
    %v2263 = vld [vmem:[%s2173 + $0x218] sm:$0xf]
    %v2264 = vld [vmem:[%s2173 + $0x21c] sm:$0xff]
    %v2265 = vld [vmem:[%s2173 + $0x224] sm:$0xf]
    %v2266 = vld [vmem:[%s2173 + $0x228] sm:$0xff]
    %v2267 = vld [vmem:[%s2173 + $0x230] sm:$0xf]
    %v2268 = vld [vmem:[%s2173 + $0x234] sm:$0xff]
    %v2269 = vld [vmem:[%s2173 + $0x23c] sm:$0xf]
    %v2366 = vunpack.c.l.b16 %v2174
    %v2367 = vunpack.c.h.b16 %v2174
    %v2368 = vunpack.c.l.b16 %v2175
    %v2369 = vunpack.c.l.b16 %v2176
    %v2370 = vunpack.c.h.b16 %v2176
    %v2371 = vunpack.c.l.b16 %v2177
    %v2372 = vunpack.c.l.b16 %v2178
    %v2373 = vunpack.c.h.b16 %v2178
    %v2374 = vunpack.c.l.b16 %v2179
    %v2375 = vunpack.c.l.b16 %v2180
    %v2376 = vunpack.c.h.b16 %v2180
    %v2377 = vunpack.c.l.b16 %v2181
    %v2378 = vunpack.c.l.b16 %v2182
    %v2379 = vunpack.c.h.b16 %v2182
    %v2380 = vunpack.c.l.b16 %v2183
    %v2381 = vunpack.c.l.b16 %v2184
    %v2382 = vunpack.c.h.b16 %v2184
    %v2383 = vunpack.c.l.b16 %v2185
    %v2384 = vunpack.c.l.b16 %v2186
    %v2385 = vunpack.c.h.b16 %v2186
    %v2386 = vunpack.c.l.b16 %v2187
    %v2387 = vunpack.c.l.b16 %v2188
    %v2388 = vunpack.c.h.b16 %v2188
    %v2389 = vunpack.c.l.b16 %v2189
    %v2390 = vunpack.c.l.b16 %v2190
    %v2391 = vunpack.c.h.b16 %v2190
    %v2392 = vunpack.c.l.b16 %v2191
    %v2393 = vunpack.c.l.b16 %v2192
    %v2394 = vunpack.c.h.b16 %v2192
    %v2395 = vunpack.c.l.b16 %v2193
    %v2396 = vunpack.c.l.b16 %v2194
    %v2397 = vunpack.c.h.b16 %v2194
    %v2398 = vunpack.c.l.b16 %v2195
    %v2399 = vunpack.c.l.b16 %v2196
    %v2400 = vunpack.c.h.b16 %v2196
    %v2401 = vunpack.c.l.b16 %v2197
    %v2402 = vunpack.c.l.b16 %v2198
    %v2403 = vunpack.c.h.b16 %v2198
    %v2404 = vunpack.c.l.b16 %v2199
    %v2405 = vunpack.c.l.b16 %v2200
    %v2406 = vunpack.c.h.b16 %v2200
    %v2407 = vunpack.c.l.b16 %v2201
    %v2408 = vunpack.c.l.b16 %v2202
    %v2409 = vunpack.c.h.b16 %v2202
    %v2410 = vunpack.c.l.b16 %v2203
    %v2411 = vunpack.c.l.b16 %v2204
    %v2412 = vunpack.c.h.b16 %v2204
    %v2413 = vunpack.c.l.b16 %v2205
    %v2414 = vunpack.c.l.b16 %v2206
    %v2415 = vunpack.c.h.b16 %v2206
    %v2416 = vunpack.c.l.b16 %v2207
    %v2417 = vunpack.c.l.b16 %v2208
    %v2418 = vunpack.c.h.b16 %v2208
    %v2419 = vunpack.c.l.b16 %v2209
    %v2420 = vunpack.c.l.b16 %v2210
    %v2421 = vunpack.c.h.b16 %v2210
    %v2422 = vunpack.c.l.b16 %v2211
    %v2423 = vunpack.c.l.b16 %v2212
    %v2424 = vunpack.c.h.b16 %v2212
    %v2425 = vunpack.c.l.b16 %v2213
    %v2426 = vunpack.c.l.b16 %v2214
    %v2427 = vunpack.c.h.b16 %v2214
    %v2428 = vunpack.c.l.b16 %v2215
    %v2429 = vunpack.c.l.b16 %v2216
    %v2430 = vunpack.c.h.b16 %v2216
    %v2431 = vunpack.c.l.b16 %v2217
    %v2432 = vunpack.c.l.b16 %v2218
    %v2433 = vunpack.c.h.b16 %v2218
    %v2434 = vunpack.c.l.b16 %v2219
    %v2435 = vunpack.c.l.b16 %v2220
    %v2436 = vunpack.c.h.b16 %v2220
    %v2437 = vunpack.c.l.b16 %v2221
    %v2438 = vunpack.c.l.b16 %v2222
    %v2439 = vunpack.c.h.b16 %v2222
    %v2440 = vunpack.c.l.b16 %v2223
    %v2441 = vunpack.c.l.b16 %v2224
    %v2442 = vunpack.c.h.b16 %v2224
    %v2443 = vunpack.c.l.b16 %v2225
    %v2444 = vunpack.c.l.b16 %v2226
    %v2445 = vunpack.c.h.b16 %v2226
    %v2446 = vunpack.c.l.b16 %v2227
    %v2447 = vunpack.c.l.b16 %v2228
    %v2448 = vunpack.c.h.b16 %v2228
    %v2449 = vunpack.c.l.b16 %v2229
    %v2450 = vunpack.c.l.b16 %v2230
    %v2451 = vunpack.c.h.b16 %v2230
    %v2452 = vunpack.c.l.b16 %v2231
    %v2453 = vunpack.c.l.b16 %v2232
    %v2454 = vunpack.c.h.b16 %v2232
    %v2455 = vunpack.c.l.b16 %v2233
    %v2456 = vunpack.c.l.b16 %v2234
    %v2457 = vunpack.c.h.b16 %v2234
    %v2458 = vunpack.c.l.b16 %v2235
    %v2459 = vunpack.c.l.b16 %v2236
    %v2460 = vunpack.c.h.b16 %v2236
    %v2461 = vunpack.c.l.b16 %v2237
    %v2462 = vunpack.c.l.b16 %v2238
    %v2463 = vunpack.c.h.b16 %v2238
    %v2464 = vunpack.c.l.b16 %v2239
    %v2465 = vunpack.c.l.b16 %v2240
    %v2466 = vunpack.c.h.b16 %v2240
    %v2467 = vunpack.c.l.b16 %v2241
    %v2468 = vunpack.c.l.b16 %v2242
    %v2469 = vunpack.c.h.b16 %v2242
    %v2470 = vunpack.c.l.b16 %v2243
    %v2471 = vunpack.c.l.b16 %v2244
    %v2472 = vunpack.c.h.b16 %v2244
    %v2473 = vunpack.c.l.b16 %v2245
    %v2474 = vunpack.c.l.b16 %v2246
    %v2475 = vunpack.c.h.b16 %v2246
    %v2476 = vunpack.c.l.b16 %v2247
    %v2477 = vunpack.c.l.b16 %v2248
    %v2478 = vunpack.c.h.b16 %v2248
    %v2479 = vunpack.c.l.b16 %v2249
    %v2480 = vunpack.c.l.b16 %v2250
    %v2481 = vunpack.c.h.b16 %v2250
    %v2482 = vunpack.c.l.b16 %v2251
    %v2483 = vunpack.c.l.b16 %v2252
    %v2484 = vunpack.c.h.b16 %v2252
    %v2485 = vunpack.c.l.b16 %v2253
    %v2486 = vunpack.c.l.b16 %v2254
    %v2487 = vunpack.c.h.b16 %v2254
    %v2488 = vunpack.c.l.b16 %v2255
    %v2489 = vunpack.c.l.b16 %v2256
    %v2490 = vunpack.c.h.b16 %v2256
    %v2491 = vunpack.c.l.b16 %v2257
    %v2492 = vunpack.c.l.b16 %v2258
    %v2493 = vunpack.c.h.b16 %v2258
    %v2494 = vunpack.c.l.b16 %v2259
    %v2495 = vunpack.c.l.b16 %v2260
    %v2496 = vunpack.c.h.b16 %v2260
    %v2497 = vunpack.c.l.b16 %v2261
    %v2498 = vunpack.c.l.b16 %v2262
    %v2499 = vunpack.c.h.b16 %v2262
    %v2500 = vunpack.c.l.b16 %v2263
    %v2501 = vunpack.c.l.b16 %v2264
    %v2502 = vunpack.c.h.b16 %v2264
    %v2503 = vunpack.c.l.b16 %v2265
    %v2504 = vunpack.c.l.b16 %v2266
    %v2505 = vunpack.c.h.b16 %v2266
    %v2506 = vunpack.c.l.b16 %v2267
    %v2507 = vunpack.c.l.b16 %v2268
    %v2508 = vunpack.c.h.b16 %v2268
    %v2509 = vunpack.c.l.b16 %v2269
    %v2510 = vpack.c.b16 %v2369, %v2366
    %v2511 = vpack.c.b16 %v2370, %v2367
    %v2512 = vpack.c.b16 %v2371, %v2368
    %v2513 = vpack.c.b16 %v2375, %v2372
    %v2514 = vpack.c.b16 %v2376, %v2373
    %v2515 = vpack.c.b16 %v2377, %v2374
    %v2516 = vpack.c.b16 %v2381, %v2378
    %v2517 = vpack.c.b16 %v2382, %v2379
    %v2518 = vpack.c.b16 %v2383, %v2380
    %v2519 = vpack.c.b16 %v2387, %v2384
    %v2520 = vpack.c.b16 %v2388, %v2385
    %v2521 = vpack.c.b16 %v2389, %v2386
    %v2522 = vpack.c.b16 %v2393, %v2390
    %v2523 = vpack.c.b16 %v2394, %v2391
    %v2524 = vpack.c.b16 %v2395, %v2392
    %v2525 = vpack.c.b16 %v2399, %v2396
    %v2526 = vpack.c.b16 %v2400, %v2397
    %v2527 = vpack.c.b16 %v2401, %v2398
    %v2528 = vpack.c.b16 %v2405, %v2402
    %v2529 = vpack.c.b16 %v2406, %v2403
    %v2530 = vpack.c.b16 %v2407, %v2404
    %v2531 = vpack.c.b16 %v2411, %v2408
    %v2532 = vpack.c.b16 %v2412, %v2409
    %v2533 = vpack.c.b16 %v2413, %v2410
    %v2534 = vpack.c.b16 %v2417, %v2414
    %v2535 = vpack.c.b16 %v2418, %v2415
    %v2536 = vpack.c.b16 %v2419, %v2416
    %v2537 = vpack.c.b16 %v2423, %v2420
    %v2538 = vpack.c.b16 %v2424, %v2421
    %v2539 = vpack.c.b16 %v2425, %v2422
    %v2540 = vpack.c.b16 %v2429, %v2426
    %v2541 = vpack.c.b16 %v2430, %v2427
    %v2542 = vpack.c.b16 %v2431, %v2428
    %v2543 = vpack.c.b16 %v2435, %v2432
    %v2544 = vpack.c.b16 %v2436, %v2433
    %v2545 = vpack.c.b16 %v2437, %v2434
    %v2546 = vpack.c.b16 %v2441, %v2438
    %v2547 = vpack.c.b16 %v2442, %v2439
    %v2548 = vpack.c.b16 %v2443, %v2440
    %v2549 = vpack.c.b16 %v2447, %v2444
    %v2550 = vpack.c.b16 %v2448, %v2445
    %v2551 = vpack.c.b16 %v2449, %v2446
    %v2552 = vpack.c.b16 %v2453, %v2450
    %v2553 = vpack.c.b16 %v2454, %v2451
    %v2554 = vpack.c.b16 %v2455, %v2452
    %v2555 = vpack.c.b16 %v2459, %v2456
    %v2556 = vpack.c.b16 %v2460, %v2457
    %v2557 = vpack.c.b16 %v2461, %v2458
    %v2558 = vpack.c.b16 %v2465, %v2462
    %v2559 = vpack.c.b16 %v2466, %v2463
    %v2560 = vpack.c.b16 %v2467, %v2464
    %v2561 = vpack.c.b16 %v2471, %v2468
    %v2562 = vpack.c.b16 %v2472, %v2469
    %v2563 = vpack.c.b16 %v2473, %v2470
    %v2564 = vpack.c.b16 %v2477, %v2474
    %v2565 = vpack.c.b16 %v2478, %v2475
    %v2566 = vpack.c.b16 %v2479, %v2476
    %v2567 = vpack.c.b16 %v2483, %v2480
    %v2568 = vpack.c.b16 %v2484, %v2481
    %v2569 = vpack.c.b16 %v2485, %v2482
    %v2570 = vpack.c.b16 %v2489, %v2486
    %v2571 = vpack.c.b16 %v2490, %v2487
    %v2572 = vpack.c.b16 %v2491, %v2488
    %v2573 = vpack.c.b16 %v2495, %v2492
    %v2574 = vpack.c.b16 %v2496, %v2493
    %v2575 = vpack.c.b16 %v2497, %v2494
    %v2576 = vpack.c.b16 %v2501, %v2498
    %v2577 = vpack.c.b16 %v2502, %v2499
    %v2578 = vpack.c.b16 %v2503, %v2500
    %v2579 = vpack.c.b16 %v2507, %v2504
    %v2580 = vpack.c.b16 %v2508, %v2505
    %v2581 = vpack.c.b16 %v2509, %v2506
    %2654 = vmatpush.bf16.msra.mxu0 %v2531
    %2655 = vmatpush.bf16.msra.mxu0 %v2528
    %2656 = vmatpush.bf16.msra.mxu0 %v2525
    %2657 = vmatpush.bf16.msra.mxu0 %v2522
    %2658 = vmatpush.bf16.msra.mxu0 %v2519
    %2659 = vmatpush.bf16.msra.mxu0 %v2516
    %2660 = vmatpush.bf16.msra.mxu0 %v2513
    %2661 = vmatpush.bf16.msra.mxu0 %v2510
    %2662 = vmatmul.bf16.gmra.mxu0 %v335
    %v2663 = vpop.f32.mrf.mxu0
    %v2664 = vadd.f32 0.0, %v2663
    %v2665 = vpop.f32.mrf.mxu0
    %v2666 = vadd.f32 0.0, %v2665
    %2667 = vmatmul.bf16.gmra.mxu0 %v338
    %v2668 = vpop.f32.mrf.mxu0
    %v2669 = vadd.f32 0.0, %v2668
    %v2670 = vpop.f32.mrf.mxu0
    %v2671 = vadd.f32 0.0, %v2670
    %2672 = vdwg.mxu0
    %2673 = vmatpush.bf16.msra.mxu0 %v2555
    %2674 = vmatpush.bf16.msra.mxu0 %v2552
    %2675 = vmatpush.bf16.msra.mxu0 %v2549
    %2676 = vmatpush.bf16.msra.mxu0 %v2546
    %2677 = vmatpush.bf16.msra.mxu0 %v2543
    %2678 = vmatpush.bf16.msra.mxu0 %v2540
    %2679 = vmatpush.bf16.msra.mxu0 %v2537
    %2680 = vmatpush.bf16.msra.mxu0 %v2534
    %2681 = vmatmul.bf16.gmra.mxu0 %v336
    %v2682 = vpop.f32.mrf.mxu0
    %v2683 = vadd.f32 %v2664, %v2682
    %v2684 = vpop.f32.mrf.mxu0
    %v2685 = vadd.f32 %v2666, %v2684
    %2686 = vmatmul.bf16.gmra.mxu0 %v339
    %v2687 = vpop.f32.mrf.mxu0
    %v2688 = vadd.f32 %v2669, %v2687
    %v2689 = vpop.f32.mrf.mxu0
    %v2690 = vadd.f32 %v2671, %v2689
    %2691 = vdwg.mxu0
    %2692 = vmatpush.bf16.msra.mxu0 %v2579
    %2693 = vmatpush.bf16.msra.mxu0 %v2576
    %2694 = vmatpush.bf16.msra.mxu0 %v2573
    %2695 = vmatpush.bf16.msra.mxu0 %v2570
    %2696 = vmatpush.bf16.msra.mxu0 %v2567
    %2697 = vmatpush.bf16.msra.mxu0 %v2564
    %2698 = vmatpush.bf16.msra.mxu0 %v2561
    %2699 = vmatpush.bf16.msra.mxu0 %v2558
    %2700 = vmatmul.bf16.gmra.mxu0 %v337
    %v2701 = vpop.f32.mrf.mxu0
    %v2702 = vadd.f32 %v2683, %v2701
    %v2703 = vpop.f32.mrf.mxu0
    %v2704 = vadd.f32 %v2685, %v2703
    %2705 = vmatmul.bf16.gmra.mxu0 %v340
    %v2706 = vpop.f32.mrf.mxu0
    %v2707 = vadd.f32 %v2688, %v2706
    %v2708 = vpop.f32.mrf.mxu0
    %v2709 = vadd.f32 %v2690, %v2708
    %2710 = vdwg.mxu0
    %2711 = vmatpush.bf16.msra.mxu0 %v2532
    %2712 = vmatpush.bf16.msra.mxu0 %v2529
    %2713 = vmatpush.bf16.msra.mxu0 %v2526
    %2714 = vmatpush.bf16.msra.mxu0 %v2523
    %2715 = vmatpush.bf16.msra.mxu0 %v2520
    %2716 = vmatpush.bf16.msra.mxu0 %v2517
    %2717 = vmatpush.bf16.msra.mxu0 %v2514
    %2718 = vmatpush.bf16.msra.mxu0 %v2511
    %2719 = vmatmul.bf16.gmra.mxu0 %v335
    %v2720 = vpop.f32.mrf.mxu0
    %v2721 = vadd.f32 0.0, %v2720
    %v2722 = vpop.f32.mrf.mxu0
    %v2723 = vadd.f32 0.0, %v2722
    %2724 = vmatmul.bf16.gmra.mxu0 %v338
    %v2725 = vpop.f32.mrf.mxu0
    %v2726 = vadd.f32 0.0, %v2725
    %v2727 = vpop.f32.mrf.mxu0
    %v2728 = vadd.f32 0.0, %v2727
    %2729 = vdwg.mxu0
    %2730 = vmatpush.bf16.msra.mxu0 %v2556
    %2731 = vmatpush.bf16.msra.mxu0 %v2553
    %2732 = vmatpush.bf16.msra.mxu0 %v2550
    %2733 = vmatpush.bf16.msra.mxu0 %v2547
    %2734 = vmatpush.bf16.msra.mxu0 %v2544
    %2735 = vmatpush.bf16.msra.mxu0 %v2541
    %2736 = vmatpush.bf16.msra.mxu0 %v2538
    %2737 = vmatpush.bf16.msra.mxu0 %v2535
    %2738 = vmatmul.bf16.gmra.mxu0 %v336
    %v2739 = vpop.f32.mrf.mxu0
    %v2740 = vadd.f32 %v2721, %v2739
    %v2741 = vpop.f32.mrf.mxu0
    %v2742 = vadd.f32 %v2723, %v2741
    %2743 = vmatmul.bf16.gmra.mxu0 %v339
    %v2744 = vpop.f32.mrf.mxu0
    %v2745 = vadd.f32 %v2726, %v2744
    %v2746 = vpop.f32.mrf.mxu0
    %v2747 = vadd.f32 %v2728, %v2746
    %2748 = vdwg.mxu0
    %2749 = vmatpush.bf16.msra.mxu0 %v2580
    %2750 = vmatpush.bf16.msra.mxu0 %v2577
    %2751 = vmatpush.bf16.msra.mxu0 %v2574
    %2752 = vmatpush.bf16.msra.mxu0 %v2571
    %2753 = vmatpush.bf16.msra.mxu0 %v2568
    %2754 = vmatpush.bf16.msra.mxu0 %v2565
    %2755 = vmatpush.bf16.msra.mxu0 %v2562
    %2756 = vmatpush.bf16.msra.mxu0 %v2559
    %2757 = vmatmul.bf16.gmra.mxu0 %v337
    %v2758 = vpop.f32.mrf.mxu0
    %v2759 = vadd.f32 %v2740, %v2758
    %v2760 = vpop.f32.mrf.mxu0
    %v2761 = vadd.f32 %v2742, %v2760
    %2762 = vmatmul.bf16.gmra.mxu0 %v340
    %v2763 = vpop.f32.mrf.mxu0
    %v2764 = vadd.f32 %v2745, %v2763
    %v2765 = vpop.f32.mrf.mxu0
    %v2766 = vadd.f32 %v2747, %v2765
    %2767 = vdwg.mxu0
    %2768 = vmatpush.bf16.msra.mxu0 %v2533
    %2769 = vmatpush.bf16.msra.mxu0 %v2530
    %2770 = vmatpush.bf16.msra.mxu0 %v2527
    %2771 = vmatpush.bf16.msra.mxu0 %v2524
    %2772 = vmatpush.bf16.msra.mxu0 %v2521
    %2773 = vmatpush.bf16.msra.mxu0 %v2518
    %2774 = vmatpush.bf16.msra.mxu0 %v2515
    %2775 = vmatpush.bf16.msra.mxu0 %v2512
    %2776 = vmatmul.bf16.gmra.mxu0 %v335
    %v2777 = vpop.f32.mrf.mxu0
    %v2778 = vadd.f32 0.0, %v2777
    %v2779 = vpop.f32.mrf.mxu0
    %v2780 = vadd.f32 0.0, %v2779
    %2781 = vmatmul.bf16.gmra.mxu0 %v338
    %v2782 = vpop.f32.mrf.mxu0
    %v2783 = vadd.f32 0.0, %v2782
    %v2784 = vpop.f32.mrf.mxu0
    %v2785 = vadd.f32 0.0, %v2784
    %2786 = vdwg.mxu0
    %2787 = vmatpush.bf16.msra.mxu0 %v2557
    %2788 = vmatpush.bf16.msra.mxu0 %v2554
    %2789 = vmatpush.bf16.msra.mxu0 %v2551
    %2790 = vmatpush.bf16.msra.mxu0 %v2548
    %2791 = vmatpush.bf16.msra.mxu0 %v2545
    %2792 = vmatpush.bf16.msra.mxu0 %v2542
    %2793 = vmatpush.bf16.msra.mxu0 %v2539
    %2794 = vmatpush.bf16.msra.mxu0 %v2536
    %2795 = vmatmul.bf16.gmra.mxu0 %v336
    %v2796 = vpop.f32.mrf.mxu0
    %v2797 = vadd.f32 %v2778, %v2796
    %v2798 = vpop.f32.mrf.mxu0
    %v2799 = vadd.f32 %v2780, %v2798
    %2800 = vmatmul.bf16.gmra.mxu0 %v339
    %v2801 = vpop.f32.mrf.mxu0
    %v2802 = vadd.f32 %v2783, %v2801
    %v2803 = vpop.f32.mrf.mxu0
    %v2804 = vadd.f32 %v2785, %v2803
    %2805 = vdwg.mxu0
    %2806 = vmatpush.bf16.msra.mxu0 %v2581
    %2807 = vmatpush.bf16.msra.mxu0 %v2578
    %2808 = vmatpush.bf16.msra.mxu0 %v2575
    %2809 = vmatpush.bf16.msra.mxu0 %v2572
    %2810 = vmatpush.bf16.msra.mxu0 %v2569
    %2811 = vmatpush.bf16.msra.mxu0 %v2566
    %2812 = vmatpush.bf16.msra.mxu0 %v2563
    %2813 = vmatpush.bf16.msra.mxu0 %v2560
    %2814 = vmatmul.bf16.gmra.mxu0 %v337
    %v2815 = vpop.f32.mrf.mxu0
    %v2816 = vadd.f32 %v2797, %v2815
    %v2817 = vpop.f32.mrf.mxu0
    %v2818 = vadd.f32 %v2799, %v2817
    %2819 = vmatmul.bf16.gmra.mxu0 %v340
    %v2820 = vpop.f32.mrf.mxu0
    %v2821 = vadd.f32 %v2802, %v2820
    %v2822 = vpop.f32.mrf.mxu0
    %v2823 = vadd.f32 %v2804, %v2822
    %2824 = vdwg.mxu0
    %v2825 = vrot.slane %v2702, 3
    %v2826 = vrot.slane %v2759, 3
    %v2827 = vrot.slane %v2816, 3
    %v2828 = vrot.slane %v2704, 3
    %v2829 = vrot.slane %v2761, 3
    %v2830 = vrot.slane %v2818, 3
    %v2831 = vrot.slane %v2707, 3
    %v2832 = vrot.slane %v2764, 3
    %v2833 = vrot.slane %v2821, 3
    %v2834 = vrot.slane %v2709, 3
    %v2835 = vrot.slane %v2766, 3
    %v2836 = vrot.slane %v2823, 3
    %vm2837 = vcmp.lt.s32.totalorder %v915, 5
    %v2838 = vsel %vm2837, %v2831, %v2834
    %v2839 = vsel %vm2837, %v2832, %v2835
    %v2840 = vsel %vm2837, %v2833, %v2836
    %v2841 = vsel %vm2837, %v2828, %v2831
    %v2842 = vsel %vm2837, %v2829, %v2832
    %v2843 = vsel %vm2837, %v2830, %v2833
    %v2844 = vsel %vm2837, %v2825, %v2828
    %v2845 = vsel %vm2837, %v2826, %v2829
    %v2846 = vsel %vm2837, %v2827, %v2830
    %v2847 = vsel %vm2837, %v2834, %v2825
    %v2848 = vsel %vm2837, %v2835, %v2826
    %v2849 = vsel %vm2837, %v2836, %v2827
    %v2850 = vadd.f32 %v2161, %v2844
    %v2851 = vadd.f32 %v2162, %v2845
    %v2852 = vadd.f32 %v2163, %v2846
    %v2853 = vadd.f32 %v2164, %v2841
    %v2854 = vadd.f32 %v2165, %v2842
    %v2855 = vadd.f32 %v2166, %v2843
    %v2856 = vadd.f32 %v2167, %v2838
    %v2857 = vadd.f32 %v2168, %v2839
    %v2858 = vadd.f32 %v2169, %v2840
    %v2859 = vadd.f32 %v2170, %v2847
    %v2860 = vadd.f32 %v2171, %v2848
    %v2861 = vadd.f32 %v2172, %v2849
    %s2862 = scalar_lea.vmem [#allocation5], 2304
    %v2863 = vld [vmem:[%s2862] sm:$0xff]
    %v2864 = vld [vmem:[%s2862 + $0x8] sm:$0xf]
    %v2865 = vld [vmem:[%s2862 + $0xc] sm:$0xff]
    %v2866 = vld [vmem:[%s2862 + $0x14] sm:$0xf]
    %v2867 = vld [vmem:[%s2862 + $0x18] sm:$0xff]
    %v2868 = vld [vmem:[%s2862 + $0x20] sm:$0xf]
    %v2869 = vld [vmem:[%s2862 + $0x24] sm:$0xff]
    %v2870 = vld [vmem:[%s2862 + $0x2c] sm:$0xf]
    %v2871 = vld [vmem:[%s2862 + $0x30] sm:$0xff]
    %v2872 = vld [vmem:[%s2862 + $0x38] sm:$0xf]
    %v2873 = vld [vmem:[%s2862 + $0x3c] sm:$0xff]
    %v2874 = vld [vmem:[%s2862 + $0x44] sm:$0xf]
    %v2875 = vld [vmem:[%s2862 + $0x48] sm:$0xff]
    %v2876 = vld [vmem:[%s2862 + $0x50] sm:$0xf]
    %v2877 = vld [vmem:[%s2862 + $0x54] sm:$0xff]
    %v2878 = vld [vmem:[%s2862 + $0x5c] sm:$0xf]
    %v2879 = vld [vmem:[%s2862 + $0x60] sm:$0xff]
    %v2880 = vld [vmem:[%s2862 + $0x68] sm:$0xf]
    %v2881 = vld [vmem:[%s2862 + $0x6c] sm:$0xff]
    %v2882 = vld [vmem:[%s2862 + $0x74] sm:$0xf]
    %v2883 = vld [vmem:[%s2862 + $0x78] sm:$0xff]
    %v2884 = vld [vmem:[%s2862 + $0x80] sm:$0xf]
    %v2885 = vld [vmem:[%s2862 + $0x84] sm:$0xff]
    %v2886 = vld [vmem:[%s2862 + $0x8c] sm:$0xf]
    %v2887 = vld [vmem:[%s2862 + $0x90] sm:$0xff]
    %v2888 = vld [vmem:[%s2862 + $0x98] sm:$0xf]
    %v2889 = vld [vmem:[%s2862 + $0x9c] sm:$0xff]
    %v2890 = vld [vmem:[%s2862 + $0xa4] sm:$0xf]
    %v2891 = vld [vmem:[%s2862 + $0xa8] sm:$0xff]
    %v2892 = vld [vmem:[%s2862 + $0xb0] sm:$0xf]
    %v2893 = vld [vmem:[%s2862 + $0xb4] sm:$0xff]
    %v2894 = vld [vmem:[%s2862 + $0xbc] sm:$0xf]
    %v2895 = vld [vmem:[%s2862 + $0xc0] sm:$0xff]
    %v2896 = vld [vmem:[%s2862 + $0xc8] sm:$0xf]
    %v2897 = vld [vmem:[%s2862 + $0xcc] sm:$0xff]
    %v2898 = vld [vmem:[%s2862 + $0xd4] sm:$0xf]
    %v2899 = vld [vmem:[%s2862 + $0xd8] sm:$0xff]
    %v2900 = vld [vmem:[%s2862 + $0xe0] sm:$0xf]
    %v2901 = vld [vmem:[%s2862 + $0xe4] sm:$0xff]
    %v2902 = vld [vmem:[%s2862 + $0xec] sm:$0xf]
    %v2903 = vld [vmem:[%s2862 + $0xf0] sm:$0xff]
    %v2904 = vld [vmem:[%s2862 + $0xf8] sm:$0xf]
    %v2905 = vld [vmem:[%s2862 + $0xfc] sm:$0xff]
    %v2906 = vld [vmem:[%s2862 + $0x104] sm:$0xf]
    %v2907 = vld [vmem:[%s2862 + $0x108] sm:$0xff]
    %v2908 = vld [vmem:[%s2862 + $0x110] sm:$0xf]
    %v2909 = vld [vmem:[%s2862 + $0x114] sm:$0xff]
    %v2910 = vld [vmem:[%s2862 + $0x11c] sm:$0xf]
    %v2911 = vld [vmem:[%s2862 + $0x120] sm:$0xff]
    %v2912 = vld [vmem:[%s2862 + $0x128] sm:$0xf]
    %v2913 = vld [vmem:[%s2862 + $0x12c] sm:$0xff]
    %v2914 = vld [vmem:[%s2862 + $0x134] sm:$0xf]
    %v2915 = vld [vmem:[%s2862 + $0x138] sm:$0xff]
    %v2916 = vld [vmem:[%s2862 + $0x140] sm:$0xf]
    %v2917 = vld [vmem:[%s2862 + $0x144] sm:$0xff]
    %v2918 = vld [vmem:[%s2862 + $0x14c] sm:$0xf]
    %v2919 = vld [vmem:[%s2862 + $0x150] sm:$0xff]
    %v2920 = vld [vmem:[%s2862 + $0x158] sm:$0xf]
    %v2921 = vld [vmem:[%s2862 + $0x15c] sm:$0xff]
    %v2922 = vld [vmem:[%s2862 + $0x164] sm:$0xf]
    %v2923 = vld [vmem:[%s2862 + $0x168] sm:$0xff]
    %v2924 = vld [vmem:[%s2862 + $0x170] sm:$0xf]
    %v2925 = vld [vmem:[%s2862 + $0x174] sm:$0xff]
    %v2926 = vld [vmem:[%s2862 + $0x17c] sm:$0xf]
    %v2927 = vld [vmem:[%s2862 + $0x180] sm:$0xff]
    %v2928 = vld [vmem:[%s2862 + $0x188] sm:$0xf]
    %v2929 = vld [vmem:[%s2862 + $0x18c] sm:$0xff]
    %v2930 = vld [vmem:[%s2862 + $0x194] sm:$0xf]
    %v2931 = vld [vmem:[%s2862 + $0x198] sm:$0xff]
    %v2932 = vld [vmem:[%s2862 + $0x1a0] sm:$0xf]
    %v2933 = vld [vmem:[%s2862 + $0x1a4] sm:$0xff]
    %v2934 = vld [vmem:[%s2862 + $0x1ac] sm:$0xf]
    %v2935 = vld [vmem:[%s2862 + $0x1b0] sm:$0xff]
    %v2936 = vld [vmem:[%s2862 + $0x1b8] sm:$0xf]
    %v2937 = vld [vmem:[%s2862 + $0x1bc] sm:$0xff]
    %v2938 = vld [vmem:[%s2862 + $0x1c4] sm:$0xf]
    %v2939 = vld [vmem:[%s2862 + $0x1c8] sm:$0xff]
    %v2940 = vld [vmem:[%s2862 + $0x1d0] sm:$0xf]
    %v2941 = vld [vmem:[%s2862 + $0x1d4] sm:$0xff]
    %v2942 = vld [vmem:[%s2862 + $0x1dc] sm:$0xf]
    %v2943 = vld [vmem:[%s2862 + $0x1e0] sm:$0xff]
    %v2944 = vld [vmem:[%s2862 + $0x1e8] sm:$0xf]
    %v2945 = vld [vmem:[%s2862 + $0x1ec] sm:$0xff]
    %v2946 = vld [vmem:[%s2862 + $0x1f4] sm:$0xf]
    %v2947 = vld [vmem:[%s2862 + $0x1f8] sm:$0xff]
    %v2948 = vld [vmem:[%s2862 + $0x200] sm:$0xf]
    %v2949 = vld [vmem:[%s2862 + $0x204] sm:$0xff]
    %v2950 = vld [vmem:[%s2862 + $0x20c] sm:$0xf]
    %v2951 = vld [vmem:[%s2862 + $0x210] sm:$0xff]
    %v2952 = vld [vmem:[%s2862 + $0x218] sm:$0xf]
    %v2953 = vld [vmem:[%s2862 + $0x21c] sm:$0xff]
    %v2954 = vld [vmem:[%s2862 + $0x224] sm:$0xf]
    %v2955 = vld [vmem:[%s2862 + $0x228] sm:$0xff]
    %v2956 = vld [vmem:[%s2862 + $0x230] sm:$0xf]
    %v2957 = vld [vmem:[%s2862 + $0x234] sm:$0xff]
    %v2958 = vld [vmem:[%s2862 + $0x23c] sm:$0xf]
    %v3055 = vunpack.c.l.b16 %v2863
    %v3056 = vunpack.c.h.b16 %v2863
    %v3057 = vunpack.c.l.b16 %v2864
    %v3058 = vunpack.c.l.b16 %v2865
    %v3059 = vunpack.c.h.b16 %v2865
    %v3060 = vunpack.c.l.b16 %v2866
    %v3061 = vunpack.c.l.b16 %v2867
    %v3062 = vunpack.c.h.b16 %v2867
    %v3063 = vunpack.c.l.b16 %v2868
    %v3064 = vunpack.c.l.b16 %v2869
    %v3065 = vunpack.c.h.b16 %v2869
    %v3066 = vunpack.c.l.b16 %v2870
    %v3067 = vunpack.c.l.b16 %v2871
    %v3068 = vunpack.c.h.b16 %v2871
    %v3069 = vunpack.c.l.b16 %v2872
    %v3070 = vunpack.c.l.b16 %v2873
    %v3071 = vunpack.c.h.b16 %v2873
    %v3072 = vunpack.c.l.b16 %v2874
    %v3073 = vunpack.c.l.b16 %v2875
    %v3074 = vunpack.c.h.b16 %v2875
    %v3075 = vunpack.c.l.b16 %v2876
    %v3076 = vunpack.c.l.b16 %v2877
    %v3077 = vunpack.c.h.b16 %v2877
    %v3078 = vunpack.c.l.b16 %v2878
    %v3079 = vunpack.c.l.b16 %v2879
    %v3080 = vunpack.c.h.b16 %v2879
    %v3081 = vunpack.c.l.b16 %v2880
    %v3082 = vunpack.c.l.b16 %v2881
    %v3083 = vunpack.c.h.b16 %v2881
    %v3084 = vunpack.c.l.b16 %v2882
    %v3085 = vunpack.c.l.b16 %v2883
    %v3086 = vunpack.c.h.b16 %v2883
    %v3087 = vunpack.c.l.b16 %v2884
    %v3088 = vunpack.c.l.b16 %v2885
    %v3089 = vunpack.c.h.b16 %v2885
    %v3090 = vunpack.c.l.b16 %v2886
    %v3091 = vunpack.c.l.b16 %v2887
    %v3092 = vunpack.c.h.b16 %v2887
    %v3093 = vunpack.c.l.b16 %v2888
    %v3094 = vunpack.c.l.b16 %v2889
    %v3095 = vunpack.c.h.b16 %v2889
    %v3096 = vunpack.c.l.b16 %v2890
    %v3097 = vunpack.c.l.b16 %v2891
    %v3098 = vunpack.c.h.b16 %v2891
    %v3099 = vunpack.c.l.b16 %v2892
    %v3100 = vunpack.c.l.b16 %v2893
    %v3101 = vunpack.c.h.b16 %v2893
    %v3102 = vunpack.c.l.b16 %v2894
    %v3103 = vunpack.c.l.b16 %v2895
    %v3104 = vunpack.c.h.b16 %v2895
    %v3105 = vunpack.c.l.b16 %v2896
    %v3106 = vunpack.c.l.b16 %v2897
    %v3107 = vunpack.c.h.b16 %v2897
    %v3108 = vunpack.c.l.b16 %v2898
    %v3109 = vunpack.c.l.b16 %v2899
    %v3110 = vunpack.c.h.b16 %v2899
    %v3111 = vunpack.c.l.b16 %v2900
    %v3112 = vunpack.c.l.b16 %v2901
    %v3113 = vunpack.c.h.b16 %v2901
    %v3114 = vunpack.c.l.b16 %v2902
    %v3115 = vunpack.c.l.b16 %v2903
    %v3116 = vunpack.c.h.b16 %v2903
    %v3117 = vunpack.c.l.b16 %v2904
    %v3118 = vunpack.c.l.b16 %v2905
    %v3119 = vunpack.c.h.b16 %v2905
    %v3120 = vunpack.c.l.b16 %v2906
    %v3121 = vunpack.c.l.b16 %v2907
    %v3122 = vunpack.c.h.b16 %v2907
    %v3123 = vunpack.c.l.b16 %v2908
    %v3124 = vunpack.c.l.b16 %v2909
    %v3125 = vunpack.c.h.b16 %v2909
    %v3126 = vunpack.c.l.b16 %v2910
    %v3127 = vunpack.c.l.b16 %v2911
    %v3128 = vunpack.c.h.b16 %v2911
    %v3129 = vunpack.c.l.b16 %v2912
    %v3130 = vunpack.c.l.b16 %v2913
    %v3131 = vunpack.c.h.b16 %v2913
    %v3132 = vunpack.c.l.b16 %v2914
    %v3133 = vunpack.c.l.b16 %v2915
    %v3134 = vunpack.c.h.b16 %v2915
    %v3135 = vunpack.c.l.b16 %v2916
    %v3136 = vunpack.c.l.b16 %v2917
    %v3137 = vunpack.c.h.b16 %v2917
    %v3138 = vunpack.c.l.b16 %v2918
    %v3139 = vunpack.c.l.b16 %v2919
    %v3140 = vunpack.c.h.b16 %v2919
    %v3141 = vunpack.c.l.b16 %v2920
    %v3142 = vunpack.c.l.b16 %v2921
    %v3143 = vunpack.c.h.b16 %v2921
    %v3144 = vunpack.c.l.b16 %v2922
    %v3145 = vunpack.c.l.b16 %v2923
    %v3146 = vunpack.c.h.b16 %v2923
    %v3147 = vunpack.c.l.b16 %v2924
    %v3148 = vunpack.c.l.b16 %v2925
    %v3149 = vunpack.c.h.b16 %v2925
    %v3150 = vunpack.c.l.b16 %v2926
    %v3151 = vunpack.c.l.b16 %v2927
    %v3152 = vunpack.c.h.b16 %v2927
    %v3153 = vunpack.c.l.b16 %v2928
    %v3154 = vunpack.c.l.b16 %v2929
    %v3155 = vunpack.c.h.b16 %v2929
    %v3156 = vunpack.c.l.b16 %v2930
    %v3157 = vunpack.c.l.b16 %v2931
    %v3158 = vunpack.c.h.b16 %v2931
    %v3159 = vunpack.c.l.b16 %v2932
    %v3160 = vunpack.c.l.b16 %v2933
    %v3161 = vunpack.c.h.b16 %v2933
    %v3162 = vunpack.c.l.b16 %v2934
    %v3163 = vunpack.c.l.b16 %v2935
    %v3164 = vunpack.c.h.b16 %v2935
    %v3165 = vunpack.c.l.b16 %v2936
    %v3166 = vunpack.c.l.b16 %v2937
    %v3167 = vunpack.c.h.b16 %v2937
    %v3168 = vunpack.c.l.b16 %v2938
    %v3169 = vunpack.c.l.b16 %v2939
    %v3170 = vunpack.c.h.b16 %v2939
    %v3171 = vunpack.c.l.b16 %v2940
    %v3172 = vunpack.c.l.b16 %v2941
    %v3173 = vunpack.c.h.b16 %v2941
    %v3174 = vunpack.c.l.b16 %v2942
    %v3175 = vunpack.c.l.b16 %v2943
    %v3176 = vunpack.c.h.b16 %v2943
    %v3177 = vunpack.c.l.b16 %v2944
    %v3178 = vunpack.c.l.b16 %v2945
    %v3179 = vunpack.c.h.b16 %v2945
    %v3180 = vunpack.c.l.b16 %v2946
    %v3181 = vunpack.c.l.b16 %v2947
    %v3182 = vunpack.c.h.b16 %v2947
    %v3183 = vunpack.c.l.b16 %v2948
    %v3184 = vunpack.c.l.b16 %v2949
    %v3185 = vunpack.c.h.b16 %v2949
    %v3186 = vunpack.c.l.b16 %v2950
    %v3187 = vunpack.c.l.b16 %v2951
    %v3188 = vunpack.c.h.b16 %v2951
    %v3189 = vunpack.c.l.b16 %v2952
    %v3190 = vunpack.c.l.b16 %v2953
    %v3191 = vunpack.c.h.b16 %v2953
    %v3192 = vunpack.c.l.b16 %v2954
    %v3193 = vunpack.c.l.b16 %v2955
    %v3194 = vunpack.c.h.b16 %v2955
    %v3195 = vunpack.c.l.b16 %v2956
    %v3196 = vunpack.c.l.b16 %v2957
    %v3197 = vunpack.c.h.b16 %v2957
    %v3198 = vunpack.c.l.b16 %v2958
    %v3199 = vpack.c.b16 %v3058, %v3055
    %v3200 = vpack.c.b16 %v3059, %v3056
    %v3201 = vpack.c.b16 %v3060, %v3057
    %v3202 = vpack.c.b16 %v3064, %v3061
    %v3203 = vpack.c.b16 %v3065, %v3062
    %v3204 = vpack.c.b16 %v3066, %v3063
    %v3205 = vpack.c.b16 %v3070, %v3067
    %v3206 = vpack.c.b16 %v3071, %v3068
    %v3207 = vpack.c.b16 %v3072, %v3069
    %v3208 = vpack.c.b16 %v3076, %v3073
    %v3209 = vpack.c.b16 %v3077, %v3074
    %v3210 = vpack.c.b16 %v3078, %v3075
    %v3211 = vpack.c.b16 %v3082, %v3079
    %v3212 = vpack.c.b16 %v3083, %v3080
    %v3213 = vpack.c.b16 %v3084, %v3081
    %v3214 = vpack.c.b16 %v3088, %v3085
    %v3215 = vpack.c.b16 %v3089, %v3086
    %v3216 = vpack.c.b16 %v3090, %v3087
    %v3217 = vpack.c.b16 %v3094, %v3091
    %v3218 = vpack.c.b16 %v3095, %v3092
    %v3219 = vpack.c.b16 %v3096, %v3093
    %v3220 = vpack.c.b16 %v3100, %v3097
    %v3221 = vpack.c.b16 %v3101, %v3098
    %v3222 = vpack.c.b16 %v3102, %v3099
    %v3223 = vpack.c.b16 %v3106, %v3103
    %v3224 = vpack.c.b16 %v3107, %v3104
    %v3225 = vpack.c.b16 %v3108, %v3105
    %v3226 = vpack.c.b16 %v3112, %v3109
    %v3227 = vpack.c.b16 %v3113, %v3110
    %v3228 = vpack.c.b16 %v3114, %v3111
    %v3229 = vpack.c.b16 %v3118, %v3115
    %v3230 = vpack.c.b16 %v3119, %v3116
    %v3231 = vpack.c.b16 %v3120, %v3117
    %v3232 = vpack.c.b16 %v3124, %v3121
    %v3233 = vpack.c.b16 %v3125, %v3122
    %v3234 = vpack.c.b16 %v3126, %v3123
    %v3235 = vpack.c.b16 %v3130, %v3127
    %v3236 = vpack.c.b16 %v3131, %v3128
    %v3237 = vpack.c.b16 %v3132, %v3129
    %v3238 = vpack.c.b16 %v3136, %v3133
    %v3239 = vpack.c.b16 %v3137, %v3134
    %v3240 = vpack.c.b16 %v3138, %v3135
    %v3241 = vpack.c.b16 %v3142, %v3139
    %v3242 = vpack.c.b16 %v3143, %v3140
    %v3243 = vpack.c.b16 %v3144, %v3141
    %v3244 = vpack.c.b16 %v3148, %v3145
    %v3245 = vpack.c.b16 %v3149, %v3146
    %v3246 = vpack.c.b16 %v3150, %v3147
    %v3247 = vpack.c.b16 %v3154, %v3151
    %v3248 = vpack.c.b16 %v3155, %v3152
    %v3249 = vpack.c.b16 %v3156, %v3153
    %v3250 = vpack.c.b16 %v3160, %v3157
    %v3251 = vpack.c.b16 %v3161, %v3158
    %v3252 = vpack.c.b16 %v3162, %v3159
    %v3253 = vpack.c.b16 %v3166, %v3163
    %v3254 = vpack.c.b16 %v3167, %v3164
    %v3255 = vpack.c.b16 %v3168, %v3165
    %v3256 = vpack.c.b16 %v3172, %v3169
    %v3257 = vpack.c.b16 %v3173, %v3170
    %v3258 = vpack.c.b16 %v3174, %v3171
    %v3259 = vpack.c.b16 %v3178, %v3175
    %v3260 = vpack.c.b16 %v3179, %v3176
    %v3261 = vpack.c.b16 %v3180, %v3177
    %v3262 = vpack.c.b16 %v3184, %v3181
    %v3263 = vpack.c.b16 %v3185, %v3182
    %v3264 = vpack.c.b16 %v3186, %v3183
    %v3265 = vpack.c.b16 %v3190, %v3187
    %v3266 = vpack.c.b16 %v3191, %v3188
    %v3267 = vpack.c.b16 %v3192, %v3189
    %v3268 = vpack.c.b16 %v3196, %v3193
    %v3269 = vpack.c.b16 %v3197, %v3194
    %v3270 = vpack.c.b16 %v3198, %v3195
    %3343 = vmatpush.bf16.msra.mxu0 %v3220
    %3344 = vmatpush.bf16.msra.mxu0 %v3217
    %3345 = vmatpush.bf16.msra.mxu0 %v3214
    %3346 = vmatpush.bf16.msra.mxu0 %v3211
    %3347 = vmatpush.bf16.msra.mxu0 %v3208
    %3348 = vmatpush.bf16.msra.mxu0 %v3205
    %3349 = vmatpush.bf16.msra.mxu0 %v3202
    %3350 = vmatpush.bf16.msra.mxu0 %v3199
    %3351 = vmatmul.bf16.gmra.mxu0 %v335
    %v3352 = vpop.f32.mrf.mxu0
    %v3353 = vadd.f32 0.0, %v3352
    %v3354 = vpop.f32.mrf.mxu0
    %v3355 = vadd.f32 0.0, %v3354
    %3356 = vmatmul.bf16.gmra.mxu0 %v338
    %v3357 = vpop.f32.mrf.mxu0
    %v3358 = vadd.f32 0.0, %v3357
    %v3359 = vpop.f32.mrf.mxu0
    %v3360 = vadd.f32 0.0, %v3359
    %3361 = vdwg.mxu0
    %3362 = vmatpush.bf16.msra.mxu0 %v3244
    %3363 = vmatpush.bf16.msra.mxu0 %v3241
    %3364 = vmatpush.bf16.msra.mxu0 %v3238
    %3365 = vmatpush.bf16.msra.mxu0 %v3235
    %3366 = vmatpush.bf16.msra.mxu0 %v3232
    %3367 = vmatpush.bf16.msra.mxu0 %v3229
    %3368 = vmatpush.bf16.msra.mxu0 %v3226
    %3369 = vmatpush.bf16.msra.mxu0 %v3223
    %3370 = vmatmul.bf16.gmra.mxu0 %v336
    %v3371 = vpop.f32.mrf.mxu0
    %v3372 = vadd.f32 %v3353, %v3371
    %v3373 = vpop.f32.mrf.mxu0
    %v3374 = vadd.f32 %v3355, %v3373
    %3375 = vmatmul.bf16.gmra.mxu0 %v339
    %v3376 = vpop.f32.mrf.mxu0
    %v3377 = vadd.f32 %v3358, %v3376
    %v3378 = vpop.f32.mrf.mxu0
    %v3379 = vadd.f32 %v3360, %v3378
    %3380 = vdwg.mxu0
    %3381 = vmatpush.bf16.msra.mxu0 %v3268
    %3382 = vmatpush.bf16.msra.mxu0 %v3265
    %3383 = vmatpush.bf16.msra.mxu0 %v3262
    %3384 = vmatpush.bf16.msra.mxu0 %v3259
    %3385 = vmatpush.bf16.msra.mxu0 %v3256
    %3386 = vmatpush.bf16.msra.mxu0 %v3253
    %3387 = vmatpush.bf16.msra.mxu0 %v3250
    %3388 = vmatpush.bf16.msra.mxu0 %v3247
    %3389 = vmatmul.bf16.gmra.mxu0 %v337
    %v3390 = vpop.f32.mrf.mxu0
    %v3391 = vadd.f32 %v3372, %v3390
    %v3392 = vpop.f32.mrf.mxu0
    %v3393 = vadd.f32 %v3374, %v3392
    %3394 = vmatmul.bf16.gmra.mxu0 %v340
    %v3395 = vpop.f32.mrf.mxu0
    %v3396 = vadd.f32 %v3377, %v3395
    %v3397 = vpop.f32.mrf.mxu0
    %v3398 = vadd.f32 %v3379, %v3397
    %3399 = vdwg.mxu0
    %3400 = vmatpush.bf16.msra.mxu0 %v3221
    %3401 = vmatpush.bf16.msra.mxu0 %v3218
    %3402 = vmatpush.bf16.msra.mxu0 %v3215
    %3403 = vmatpush.bf16.msra.mxu0 %v3212
    %3404 = vmatpush.bf16.msra.mxu0 %v3209
    %3405 = vmatpush.bf16.msra.mxu0 %v3206
    %3406 = vmatpush.bf16.msra.mxu0 %v3203
    %3407 = vmatpush.bf16.msra.mxu0 %v3200
    %3408 = vmatmul.bf16.gmra.mxu0 %v335
    %v3409 = vpop.f32.mrf.mxu0
    %v3410 = vadd.f32 0.0, %v3409
    %v3411 = vpop.f32.mrf.mxu0
    %v3412 = vadd.f32 0.0, %v3411
    %3413 = vmatmul.bf16.gmra.mxu0 %v338
    %v3414 = vpop.f32.mrf.mxu0
    %v3415 = vadd.f32 0.0, %v3414
    %v3416 = vpop.f32.mrf.mxu0
    %v3417 = vadd.f32 0.0, %v3416
    %3418 = vdwg.mxu0
    %3419 = vmatpush.bf16.msra.mxu0 %v3245
    %3420 = vmatpush.bf16.msra.mxu0 %v3242
    %3421 = vmatpush.bf16.msra.mxu0 %v3239
    %3422 = vmatpush.bf16.msra.mxu0 %v3236
    %3423 = vmatpush.bf16.msra.mxu0 %v3233
    %3424 = vmatpush.bf16.msra.mxu0 %v3230
    %3425 = vmatpush.bf16.msra.mxu0 %v3227
    %3426 = vmatpush.bf16.msra.mxu0 %v3224
    %3427 = vmatmul.bf16.gmra.mxu0 %v336
    %v3428 = vpop.f32.mrf.mxu0
    %v3429 = vadd.f32 %v3410, %v3428
    %v3430 = vpop.f32.mrf.mxu0
    %v3431 = vadd.f32 %v3412, %v3430
    %3432 = vmatmul.bf16.gmra.mxu0 %v339
    %v3433 = vpop.f32.mrf.mxu0
    %v3434 = vadd.f32 %v3415, %v3433
    %v3435 = vpop.f32.mrf.mxu0
    %v3436 = vadd.f32 %v3417, %v3435
    %3437 = vdwg.mxu0
    %3438 = vmatpush.bf16.msra.mxu0 %v3269
    %3439 = vmatpush.bf16.msra.mxu0 %v3266
    %3440 = vmatpush.bf16.msra.mxu0 %v3263
    %3441 = vmatpush.bf16.msra.mxu0 %v3260
    %3442 = vmatpush.bf16.msra.mxu0 %v3257
    %3443 = vmatpush.bf16.msra.mxu0 %v3254
    %3444 = vmatpush.bf16.msra.mxu0 %v3251
    %3445 = vmatpush.bf16.msra.mxu0 %v3248
    %3446 = vmatmul.bf16.gmra.mxu0 %v337
    %v3447 = vpop.f32.mrf.mxu0
    %v3448 = vadd.f32 %v3429, %v3447
    %v3449 = vpop.f32.mrf.mxu0
    %v3450 = vadd.f32 %v3431, %v3449
    %3451 = vmatmul.bf16.gmra.mxu0 %v340
    %v3452 = vpop.f32.mrf.mxu0
    %v3453 = vadd.f32 %v3434, %v3452
    %v3454 = vpop.f32.mrf.mxu0
    %v3455 = vadd.f32 %v3436, %v3454
    %3456 = vdwg.mxu0
    %3457 = vmatpush.bf16.msra.mxu0 %v3222
    %3458 = vmatpush.bf16.msra.mxu0 %v3219
    %3459 = vmatpush.bf16.msra.mxu0 %v3216
    %3460 = vmatpush.bf16.msra.mxu0 %v3213
    %3461 = vmatpush.bf16.msra.mxu0 %v3210
    %3462 = vmatpush.bf16.msra.mxu0 %v3207
    %3463 = vmatpush.bf16.msra.mxu0 %v3204
    %3464 = vmatpush.bf16.msra.mxu0 %v3201
    %3465 = vmatmul.bf16.gmra.mxu0 %v335
    %v3466 = vpop.f32.mrf.mxu0
    %v3467 = vadd.f32 0.0, %v3466
    %v3468 = vpop.f32.mrf.mxu0
    %v3469 = vadd.f32 0.0, %v3468
    %3470 = vmatmul.bf16.gmra.mxu0 %v338
    %v3471 = vpop.f32.mrf.mxu0
    %v3472 = vadd.f32 0.0, %v3471
    %v3473 = vpop.f32.mrf.mxu0
    %v3474 = vadd.f32 0.0, %v3473
    %3475 = vdwg.mxu0
    %3476 = vmatpush.bf16.msra.mxu0 %v3246
    %3477 = vmatpush.bf16.msra.mxu0 %v3243
    %3478 = vmatpush.bf16.msra.mxu0 %v3240
    %3479 = vmatpush.bf16.msra.mxu0 %v3237
    %3480 = vmatpush.bf16.msra.mxu0 %v3234
    %3481 = vmatpush.bf16.msra.mxu0 %v3231
    %3482 = vmatpush.bf16.msra.mxu0 %v3228
    %3483 = vmatpush.bf16.msra.mxu0 %v3225
    %3484 = vmatmul.bf16.gmra.mxu0 %v336
    %v3485 = vpop.f32.mrf.mxu0
    %v3486 = vadd.f32 %v3467, %v3485
    %v3487 = vpop.f32.mrf.mxu0
    %v3488 = vadd.f32 %v3469, %v3487
    %3489 = vmatmul.bf16.gmra.mxu0 %v339
    %v3490 = vpop.f32.mrf.mxu0
    %v3491 = vadd.f32 %v3472, %v3490
    %v3492 = vpop.f32.mrf.mxu0
    %v3493 = vadd.f32 %v3474, %v3492
    %3494 = vdwg.mxu0
    %3495 = vmatpush.bf16.msra.mxu0 %v3270
    %3496 = vmatpush.bf16.msra.mxu0 %v3267
    %3497 = vmatpush.bf16.msra.mxu0 %v3264
    %3498 = vmatpush.bf16.msra.mxu0 %v3261
    %3499 = vmatpush.bf16.msra.mxu0 %v3258
    %3500 = vmatpush.bf16.msra.mxu0 %v3255
    %3501 = vmatpush.bf16.msra.mxu0 %v3252
    %3502 = vmatpush.bf16.msra.mxu0 %v3249
    %3503 = vmatmul.bf16.gmra.mxu0 %v337
    %v3504 = vpop.f32.mrf.mxu0
    %v3505 = vadd.f32 %v3486, %v3504
    %v3506 = vpop.f32.mrf.mxu0
    %v3507 = vadd.f32 %v3488, %v3506
    %3508 = vmatmul.bf16.gmra.mxu0 %v340
    %v3509 = vpop.f32.mrf.mxu0
    %v3510 = vadd.f32 %v3491, %v3509
    %v3511 = vpop.f32.mrf.mxu0
    %v3512 = vadd.f32 %v3493, %v3511
    %3513 = vdwg.mxu0
    %v3514 = vrot.slane %v3391, 4
    %v3515 = vrot.slane %v3448, 4
    %v3516 = vrot.slane %v3505, 4
    %v3517 = vrot.slane %v3393, 4
    %v3518 = vrot.slane %v3450, 4
    %v3519 = vrot.slane %v3507, 4
    %v3520 = vrot.slane %v3396, 4
    %v3521 = vrot.slane %v3453, 4
    %v3522 = vrot.slane %v3510, 4
    %v3523 = vrot.slane %v3398, 4
    %v3524 = vrot.slane %v3455, 4
    %v3525 = vrot.slane %v3512, 4
    %vm3526 = vcmp.lt.s32.totalorder %v915, 4
    %v3527 = vsel %vm3526, %v3520, %v3523
    %v3528 = vsel %vm3526, %v3521, %v3524
    %v3529 = vsel %vm3526, %v3522, %v3525
    %v3530 = vsel %vm3526, %v3517, %v3520
    %v3531 = vsel %vm3526, %v3518, %v3521
    %v3532 = vsel %vm3526, %v3519, %v3522
    %v3533 = vsel %vm3526, %v3514, %v3517
    %v3534 = vsel %vm3526, %v3515, %v3518
    %v3535 = vsel %vm3526, %v3516, %v3519
    %v3536 = vsel %vm3526, %v3523, %v3514
    %v3537 = vsel %vm3526, %v3524, %v3515
    %v3538 = vsel %vm3526, %v3525, %v3516
    %v3539 = vadd.f32 %v2850, %v3533
    %v3540 = vadd.f32 %v2851, %v3534
    %v3541 = vadd.f32 %v2852, %v3535
    %v3542 = vadd.f32 %v2853, %v3530
    %v3543 = vadd.f32 %v2854, %v3531
    %v3544 = vadd.f32 %v2855, %v3532
    %v3545 = vadd.f32 %v2856, %v3527
    %v3546 = vadd.f32 %v2857, %v3528
    %v3547 = vadd.f32 %v2858, %v3529
    %v3548 = vadd.f32 %v2859, %v3536
    %v3549 = vadd.f32 %v2860, %v3537
    %v3550 = vadd.f32 %v2861, %v3538
    %v3551 = vld [vmem:[#allocation7] sm:$0x7]
    %v3553 = vperm.slane %v3551, 0
    %v3554 = vperm.slane %v3551, 1
    %v3555 = vperm.slane %v3551, 2
    %v3559 = vadd.f32 %v3539, %v3553
    %v3560 = vadd.f32 %v3540, %v3554
    %v3561 = vadd.f32 %v3541, %v3555
    %v3562 = vadd.f32 %v3542, %v3553
    %v3563 = vadd.f32 %v3543, %v3554
    %v3564 = vadd.f32 %v3544, %v3555
    %v3565 = vadd.f32 %v3545, %v3553
    %v3566 = vadd.f32 %v3546, %v3554
    %v3567 = vadd.f32 %v3547, %v3555
    %v3568 = vadd.f32 %v3548, %v3553
    %v3569 = vadd.f32 %v3549, %v3554
    %v3570 = vadd.f32 %v3550, %v3555
    %v3571 = vmax.f32 %v3559, 0.0
    %v3572 = vmax.f32 %v3560, 0.0
    %v3573 = vmax.f32 %v3561, 0.0
    %v3574 = vmax.f32 %v3562, 0.0
    %v3575 = vmax.f32 %v3563, 0.0
    %v3576 = vmax.f32 %v3564, 0.0
    %v3577 = vmax.f32 %v3565, 0.0
    %v3578 = vmax.f32 %v3566, 0.0
    %v3579 = vmax.f32 %v3567, 0.0
    %v3580 = vmax.f32 %v3568, 0.0
    %v3581 = vmax.f32 %v3569, 0.0
    %v3582 = vmax.f32 %v3570, 0.0
    %v3583 = vld [vmem:[#allocation8] sm:$0xff]
    %v3584 = vld [vmem:[#allocation8 + $0x8] sm:$0xff]
    %v3585 = vld [vmem:[#allocation8 + $0x10] sm:$0xff]
    %v3586 = vld [vmem:[#allocation8 + $0x18] sm:$0xff]
    %v3587 = vld [vmem:[#allocation8 + $0x20] sm:$0xff]
    %v3588 = vld [vmem:[#allocation8 + $0x28] sm:$0xff]
    %v3589 = vmul.f32 %v3571, %v3583
    %v3590 = vmul.f32 %v3572, %v3584
    %v3591 = vmul.f32 %v3573, %v3585
    %v3592 = vmul.f32 %v3574, %v3586
    %v3593 = vmul.f32 %v3575, %v3587
    %v3594 = vmul.f32 %v3576, %v3588
    %v3595 = vmul.f32 %v3577, %v3583
    %v3596 = vmul.f32 %v3578, %v3584
    %v3597 = vmul.f32 %v3579, %v3585
    %v3598 = vmul.f32 %v3580, %v3586
    %v3599 = vmul.f32 %v3581, %v3587
    %v3600 = vmul.f32 %v3582, %v3588
    %v3601 = vmax.f32 %v3589, %v3592
    %v3602 = vrot.slane %v3601, 4
    %v3603 = vmax.f32 %v3601, %v3602
    %v3604 = vrot.slane %v3603, 2
    %v3605 = vmax.f32 %v3603, %v3604
    %v3606 = vrot.slane %v3605, 1
    %v3607 = vmax.f32 %v3605, %v3606
    %v3608 = vmax.f32 %v3590, %v3593
    %v3609 = vrot.slane %v3608, 4
    %v3610 = vmax.f32 %v3608, %v3609
    %v3611 = vrot.slane %v3610, 2
    %v3612 = vmax.f32 %v3610, %v3611
    %v3613 = vrot.slane %v3612, 1
    %v3614 = vmax.f32 %v3612, %v3613
    %v3615 = vmax.f32 %v3591, %v3594
    %v3616 = vrot.slane %v3615, 4
    %v3617 = vmax.f32 %v3615, %v3616
    %v3618 = vrot.slane %v3617, 2
    %v3619 = vmax.f32 %v3617, %v3618
    %v3620 = vrot.slane %v3619, 1
    %v3621 = vmax.f32 %v3619, %v3620
    %v3622 = vmax.f32 %v3595, %v3598
    %v3623 = vrot.slane %v3622, 4
    %v3624 = vmax.f32 %v3622, %v3623
    %v3625 = vrot.slane %v3624, 2
    %v3626 = vmax.f32 %v3624, %v3625
    %v3627 = vrot.slane %v3626, 1
    %v3628 = vmax.f32 %v3626, %v3627
    %v3629 = vmax.f32 %v3596, %v3599
    %v3630 = vrot.slane %v3629, 4
    %v3631 = vmax.f32 %v3629, %v3630
    %v3632 = vrot.slane %v3631, 2
    %v3633 = vmax.f32 %v3631, %v3632
    %v3634 = vrot.slane %v3633, 1
    %v3635 = vmax.f32 %v3633, %v3634
    %v3636 = vmax.f32 %v3597, %v3600
    %v3637 = vrot.slane %v3636, 4
    %v3638 = vmax.f32 %v3636, %v3637
    %v3639 = vrot.slane %v3638, 2
    %v3640 = vmax.f32 %v3638, %v3639
    %v3641 = vrot.slane %v3640, 1
    %v3642 = vmax.f32 %v3640, %v3641
    %v3643 = vpack.c.bf16 %v3607, %v3607
    %v3644 = vpack.c.bf16 %v3614, %v3614
    %v3645 = vpack.c.bf16 %v3621, %v3621
    %v3646 = vpack.c.bf16 %v3628, %v3628
    %v3647 = vpack.c.bf16 %v3635, %v3635
    %v3648 = vpack.c.bf16 %v3642, %v3642
    %v3649 = vld [vmem:[#allocation10] sm:$0xf]
    %v3650 = vld [vmem:[#allocation10 + $0x4] sm:$0xf]
    %v3651 = vld [vmem:[#allocation10 + $0x8] sm:$0xf]
    %v3652 = vld [vmem:[#allocation10 + $0xc] sm:$0xf]
    %v3653 = vld [vmem:[#allocation10 + $0x10] sm:$0xf]
    %v3654 = vld [vmem:[#allocation10 + $0x14] sm:$0xf]
    %v3655 = vld [vmem:[#allocation10 + $0x18] sm:$0xf]
    %v3656 = vld [vmem:[#allocation10 + $0x1c] sm:$0xf]
    %v3657 = vld [vmem:[#allocation10 + $0x20] sm:$0xf]
    %v3658 = vld [vmem:[#allocation10 + $0x24] sm:$0xf]
    %v3659 = vld [vmem:[#allocation10 + $0x28] sm:$0xf]
    %v3660 = vld [vmem:[#allocation10 + $0x2c] sm:$0xf]
    %v3661 = vld [vmem:[#allocation10 + $0x30] sm:$0xf]
    %v3662 = vld [vmem:[#allocation10 + $0x34] sm:$0xf]
    %v3663 = vld [vmem:[#allocation10 + $0x38] sm:$0xf]
    %v3664 = vld [vmem:[#allocation10 + $0x3c] sm:$0xf]
    %v3665 = vld [vmem:[#allocation10 + $0x40] sm:$0xf]
    %v3666 = vld [vmem:[#allocation10 + $0x44] sm:$0xf]
    %v3667 = vld [vmem:[#allocation10 + $0x48] sm:$0xf]
    %v3668 = vld [vmem:[#allocation10 + $0x4c] sm:$0xf]
    %v3669 = vld [vmem:[#allocation10 + $0x50] sm:$0xf]
    %v3670 = vld [vmem:[#allocation10 + $0x54] sm:$0xf]
    %v3671 = vld [vmem:[#allocation10 + $0x58] sm:$0xf]
    %v3672 = vld [vmem:[#allocation10 + $0x5c] sm:$0xf]
    %v3673 = vld [vmem:[#allocation10 + $0x60] sm:$0xf]
    %v3674 = vld [vmem:[#allocation10 + $0x64] sm:$0xf]
    %v3675 = vld [vmem:[#allocation10 + $0x68] sm:$0xf]
    %v3676 = vld [vmem:[#allocation10 + $0x6c] sm:$0xf]
    %v3677 = vld [vmem:[#allocation10 + $0x70] sm:$0xf]
    %v3678 = vld [vmem:[#allocation10 + $0x74] sm:$0xf]
    %v3679 = vld [vmem:[#allocation10 + $0x78] sm:$0xf]
    %v3680 = vld [vmem:[#allocation10 + $0x7c] sm:$0xf]
    %v3681 = vld [vmem:[#allocation10 + $0x80] sm:$0xf]
    %v3682 = vld [vmem:[#allocation10 + $0x84] sm:$0xf]
    %v3683 = vld [vmem:[#allocation10 + $0x88] sm:$0xf]
    %v3684 = vld [vmem:[#allocation10 + $0x8c] sm:$0xf]
    %v3685 = vld [vmem:[#allocation10 + $0x90] sm:$0xf]
    %v3686 = vld [vmem:[#allocation10 + $0x94] sm:$0xf]
    %v3687 = vld [vmem:[#allocation10 + $0x98] sm:$0xf]
    %v3688 = vld [vmem:[#allocation10 + $0x9c] sm:$0xf]
    %v3689 = vld [vmem:[#allocation10 + $0xa0] sm:$0xf]
    %v3690 = vld [vmem:[#allocation10 + $0xa4] sm:$0xf]
    %v3691 = vld [vmem:[#allocation10 + $0xa8] sm:$0xf]
    %v3692 = vld [vmem:[#allocation10 + $0xac] sm:$0xf]
    %v3693 = vld [vmem:[#allocation10 + $0xb0] sm:$0xf]
    %v3694 = vld [vmem:[#allocation10 + $0xb4] sm:$0xf]
    %v3695 = vld [vmem:[#allocation10 + $0xb8] sm:$0xf]
    %v3696 = vld [vmem:[#allocation10 + $0xbc] sm:$0xf]
    %v3697 = vld [vmem:[#allocation11] sm:$0x1]
    %v3699 = vperm.slane %v3697, 0
    %v3707 = vunpack.c.l.b16 %v3643
    %v3708 = vunpack.c.l.b16 %v3644
    %v3709 = vunpack.c.l.b16 %v3645
    %v3710 = vunpack.c.l.b16 %v3646
    %v3711 = vunpack.c.l.b16 %v3647
    %v3712 = vunpack.c.l.b16 %v3648
    %vm3713 = vcmask 1041409
    %v3714 = vsel %vm3713, %v3710, %v3707
    %v3715 = vsel %vm3713, %v3711, %v3708
    %v3716 = vsel %vm3713, %v3712, %v3709
    %v3717 = vpack.c.b16 %v3714, %v3714
    %v3718 = vpack.c.b16 %v3715, %v3715
    %v3719 = vpack.c.b16 %v3716, %v3716
    %v3771 = vunpack.c.l.b16 %v3649
    %v3772 = vunpack.c.l.b16 %v3650
    %v3773 = vunpack.c.l.b16 %v3651
    %v3774 = vunpack.c.l.b16 %v3652
    %v3775 = vunpack.c.l.b16 %v3653
    %v3776 = vunpack.c.l.b16 %v3654
    %v3777 = vunpack.c.l.b16 %v3655
    %v3778 = vunpack.c.l.b16 %v3656
    %v3779 = vunpack.c.l.b16 %v3657
    %v3780 = vunpack.c.l.b16 %v3658
    %v3781 = vunpack.c.l.b16 %v3659
    %v3782 = vunpack.c.l.b16 %v3660
    %v3783 = vunpack.c.l.b16 %v3661
    %v3784 = vunpack.c.l.b16 %v3662
    %v3785 = vunpack.c.l.b16 %v3663
    %v3786 = vunpack.c.l.b16 %v3664
    %v3787 = vunpack.c.l.b16 %v3665
    %v3788 = vunpack.c.l.b16 %v3666
    %v3789 = vunpack.c.l.b16 %v3667
    %v3790 = vunpack.c.l.b16 %v3668
    %v3791 = vunpack.c.l.b16 %v3669
    %v3792 = vunpack.c.l.b16 %v3670
    %v3793 = vunpack.c.l.b16 %v3671
    %v3794 = vunpack.c.l.b16 %v3672
    %v3795 = vunpack.c.l.b16 %v3673
    %v3796 = vunpack.c.l.b16 %v3674
    %v3797 = vunpack.c.l.b16 %v3675
    %v3798 = vunpack.c.l.b16 %v3676
    %v3799 = vunpack.c.l.b16 %v3677
    %v3800 = vunpack.c.l.b16 %v3678
    %v3801 = vunpack.c.l.b16 %v3679
    %v3802 = vunpack.c.l.b16 %v3680
    %v3803 = vunpack.c.l.b16 %v3681
    %v3804 = vunpack.c.l.b16 %v3682
    %v3805 = vunpack.c.l.b16 %v3683
    %v3806 = vunpack.c.l.b16 %v3684
    %v3807 = vunpack.c.l.b16 %v3685
    %v3808 = vunpack.c.l.b16 %v3686
    %v3809 = vunpack.c.l.b16 %v3687
    %v3810 = vunpack.c.l.b16 %v3688
    %v3811 = vunpack.c.l.b16 %v3689
    %v3812 = vunpack.c.l.b16 %v3690
    %v3813 = vunpack.c.l.b16 %v3691
    %v3814 = vunpack.c.l.b16 %v3692
    %v3815 = vunpack.c.l.b16 %v3693
    %v3816 = vunpack.c.l.b16 %v3694
    %v3817 = vunpack.c.l.b16 %v3695
    %v3818 = vunpack.c.l.b16 %v3696
    %v3819 = vpack.c.b16 %v3772, %v3771
    %v3820 = vpack.c.b16 %v3774, %v3773
    %v3821 = vpack.c.b16 %v3776, %v3775
    %v3822 = vpack.c.b16 %v3778, %v3777
    %v3823 = vpack.c.b16 %v3780, %v3779
    %v3824 = vpack.c.b16 %v3782, %v3781
    %v3825 = vpack.c.b16 %v3784, %v3783
    %v3826 = vpack.c.b16 %v3786, %v3785
    %v3827 = vpack.c.b16 %v3788, %v3787
    %v3828 = vpack.c.b16 %v3790, %v3789
    %v3829 = vpack.c.b16 %v3792, %v3791
    %v3830 = vpack.c.b16 %v3794, %v3793
    %v3831 = vpack.c.b16 %v3796, %v3795
    %v3832 = vpack.c.b16 %v3798, %v3797
    %v3833 = vpack.c.b16 %v3800, %v3799
    %v3834 = vpack.c.b16 %v3802, %v3801
    %v3835 = vpack.c.b16 %v3804, %v3803
    %v3836 = vpack.c.b16 %v3806, %v3805
    %v3837 = vpack.c.b16 %v3808, %v3807
    %v3838 = vpack.c.b16 %v3810, %v3809
    %v3839 = vpack.c.b16 %v3812, %v3811
    %v3840 = vpack.c.b16 %v3814, %v3813
    %v3841 = vpack.c.b16 %v3816, %v3815
    %v3842 = vpack.c.b16 %v3818, %v3817
    %3867 = vmatpush.bf16.msra.mxu0 %v3826
    %3868 = vmatpush.bf16.msra.mxu0 %v3825
    %3869 = vmatpush.bf16.msra.mxu0 %v3824
    %3870 = vmatpush.bf16.msra.mxu0 %v3823
    %3871 = vmatpush.bf16.msra.mxu0 %v3822
    %3872 = vmatpush.bf16.msra.mxu0 %v3821
    %3873 = vmatpush.bf16.msra.mxu0 %v3820
    %3874 = vmatpush.bf16.msra.mxu0 %v3819
    %3875 = vmatmul.bf16.gmra.mxu0 %v3717
    %v3876 = vpop.f32.mrf.mxu0
    %v3877 = vadd.f32 %v3699, %v3876
    %v3878 = vpop.f32.mrf.mxu0
    %3879 = vdwg.mxu0
    %3880 = vmatpush.bf16.msra.mxu0 %v3834
    %3881 = vmatpush.bf16.msra.mxu0 %v3833
    %3882 = vmatpush.bf16.msra.mxu0 %v3832
    %3883 = vmatpush.bf16.msra.mxu0 %v3831
    %3884 = vmatpush.bf16.msra.mxu0 %v3830
    %3885 = vmatpush.bf16.msra.mxu0 %v3829
    %3886 = vmatpush.bf16.msra.mxu0 %v3828
    %3887 = vmatpush.bf16.msra.mxu0 %v3827
    %3888 = vmatmul.bf16.gmra.mxu0 %v3718
    %v3889 = vpop.f32.mrf.mxu0
    %v3890 = vadd.f32 %v3877, %v3889
    %v3891 = vpop.f32.mrf.mxu0
    %3892 = vdwg.mxu0
    %3893 = vmatpush.bf16.msra.mxu0 %v3842
    %3894 = vmatpush.bf16.msra.mxu0 %v3841
    %3895 = vmatpush.bf16.msra.mxu0 %v3840
    %3896 = vmatpush.bf16.msra.mxu0 %v3839
    %3897 = vmatpush.bf16.msra.mxu0 %v3838
    %3898 = vmatpush.bf16.msra.mxu0 %v3837
    %3899 = vmatpush.bf16.msra.mxu0 %v3836
    %3900 = vmatpush.bf16.msra.mxu0 %v3835
    %3901 = vmatmul.bf16.gmra.mxu0 %v3719
    %v3902 = vpop.f32.mrf.mxu0
    %v3903 = vadd.f32 %v3890, %v3902
    %v3904 = vpop.f32.mrf.mxu0
    %3905 = vdwg.mxu0
    %3906 = vst [vmem:[#allocation13] sm:$0x3] %v3903
    // Predicated region
    $region50: #{tpu_custom_call.1} parent=1 // pred_check
      _
    $region51: #{tpu_custom_call.1} parent=1 // pred_check_branch
      %3908 = sbr.rel (0) target = $region53
    $region52: #{tpu_custom_call.1} parent=1 // pred_region
      %3910 = vsyncadd [#allocation4], 0
      %s3912 = sshll.u32 [#allocation13], 4
      %s3913 = int_to_ptr.vmem [resolvable:$true] %s3912
      %s3914 = sshll.u32 %s6, 4
      %s3915 = int_to_ptr.hbm [resolvable:$true] %s3914
      %3917 = dma.vmem_to_hbm [thread:$0]  %s3913, 32, %s3915, [#allocation4]
    $region53: #{tpu_custom_call.1} parent=1 // pred_fallthru
      _
    // Predicated region
    $region54: #{tpu_custom_call.1} parent=1 // pred_check
      _
    $region55: #{tpu_custom_call.1} parent=1 // pred_check_branch
      %3919 = sbr.rel (0) target = $region57
    $region56: #{tpu_custom_call.1} parent=1 // pred_region
      %3921 = dma.done [#allocation4], 32
    $region57: #{tpu_custom_call.1} parent=1 // pred_fallthru
      _
    %3922 = vsyncpa [#allocation3], 1
    %3923 = vsyncpa [#allocation6], 1
    %3924 = vsyncpa [#allocation9], 1
    %3925 = vsyncpa [#allocation12], 1
    %3926 = vsyncpa [#allocation4], 1

</llo_original>
